<compile_context>
chip_gen: v7x
topology: tpu7x:2x2x1
jax: 0.10.0
libtpu: 0.0.40
codegen_flags: <defaults>
</compile_context>

<pallas_src>
import functools
import math

import jax
import jax.numpy as jnp
from jax.experimental import pallas as pl
from jax.experimental.pallas import tpu as pltpu

# ----------------------------- configuration --------------------------------
B, C, H, W = 2, 3, 16, 16
PATCH = 8
N_PATCH = (H // PATCH) ** 2          # 4 patches
PATCH_DIM = PATCH * PATCH * C        # 192
EMBED = 64
N_HEADS = 8                          # Transformer_block default
D_HEAD = EMBED // N_HEADS            # 8
FF_HIDDEN = 256                      # FeedForward hidden dim is hard-coded to 256
NUM_BLOCKS = 2
SEQ = N_PATCH + 1                    # CLS token is concatenated at the END (dim=1)
L_PAD = 8                            # sequence padded to a sublane multiple
HL = N_HEADS * L_PAD                 # flattened (head, key) axis per batch = 64
SCALE = 1.0 / math.sqrt(D_HEAD)

assert L_PAD & (L_PAD - 1) == 0 and D_HEAD & (D_HEAD - 1) == 0
assert N_HEADS & (N_HEADS - 1) == 0
LOG2_LP = int(math.log2(L_PAD))
LOG2_DH = int(math.log2(D_HEAD))
LOG2_H = int(math.log2(N_HEADS))

# TODO(synk): nn.Dropout layers are stochastic in train mode; they are implemented
# here as eval-mode identity (the only deterministic semantics).


# ------------------------------ patch extraction -----------------------------
def patchify(x, p):
    """Exactly mirrors the torch unfold/permute/flatten/reshape sequence."""
    b, c, h, w = x.shape
    x = x.reshape(b, c, h // p, p, w).transpose(0, 1, 2, 4, 3)   # unfold(2,p,p)
    x = x.transpose(0, 4, 1, 2, 3)                               # permute(0,4,1,2,3)
    x = x.reshape(b, p, c, h // p, w // p, p)                    # unfold(4,p,p)
    x = x.transpose(0, 1, 5, 2, 3, 4)                            # permute(0,1,5,2,3,4)
    return x.reshape(b, -1, p * p * c)                           # flatten + reshape


# ------------------------------- kernel helpers -------------------------------
def _layernorm(x, g, b, eps=1e-5):
    mu = jnp.mean(x, axis=-1, keepdims=True)
    var = jnp.mean(jnp.square(x - mu), axis=-1, keepdims=True)
    return (x - mu) * jax.lax.rsqrt(var + eps) * g + b


def _gelu(x):  # exact (erf) GELU, matching torch nn.GELU() default
    return 0.5 * x * (1.0 + jax.lax.erf(x * 0.7071067811865476))


def _iota(shape, dim):
    return jax.lax.broadcasted_iota(jnp.int32, shape, dim)


def _attn_constants(batch):
    """Selector / mask matrices for all-(batch,head)-blocks-in-one-matmul attention.

    Flattened column axis c in [0, batch*HL):
      batch(c) = c >> (LOG2_LP + LOG2_H);  head(c) = (c >> LOG2_LP) & (N_HEADS-1)
      key(c)   = c & (L_PAD-1);            block(c) = c >> LOG2_LP  (= batch*H + head)
    Row axis r in [0, batch*L_PAD): batch(r) = r >> LOG2_LP; pos(r) = r & (L_PAD-1).
    """
    f32 = jnp.float32
    one, zero = jnp.array(1.0, f32), jnp.array(0.0, f32)
    neg = jnp.array(-1e30, f32)
    BL, BHL = batch * L_PAD, batch * HL

    rr, cc = _iota((BL, BHL), 0), _iota((BL, BHL), 1)
    same_b = (rr >> LOG2_LP) == (cc >> (LOG2_LP + LOG2_H))
    same_k = (rr & (L_PAD - 1)) == (cc & (L_PAD - 1))
    tile = jnp.where(same_b & same_k, one, zero)                          # (BL, BHL)
    addmask = jnp.where(same_b & ((cc & (L_PAD - 1)) < SEQ), zero, neg)   # (BL, BHL)

    er, ec = _iota((EMBED, BHL), 0), _iota((EMBED, BHL), 1)
    kmask = jnp.where((er >> LOG2_DH) == ((ec >> LOG2_LP) & (N_HEADS - 1)), one, zero)

    tr, tc = _iota((BHL, BL), 0), _iota((BHL, BL), 1)
    tile_t = jnp.where(((tr >> (LOG2_LP + LOG2_H)) == (tc >> LOG2_LP))
                       & ((tr & (L_PAD - 1)) == (tc & (L_PAD - 1))), one, zero)

    vr, vc = _iota((BHL, EMBED), 0), _iota((BHL, EMBED), 1)
    vmask = jnp.where(((vr >> LOG2_LP) & (N_HEADS - 1)) == (vc >> LOG2_DH), one, zero)

    sr, sc = _iota((BHL, BHL), 0), _iota((BHL, BHL), 1)
    segsum = jnp.where((sr >> LOG2_LP) == (sc >> LOG2_LP), one, zero)
    return tile, tile_t, kmask, vmask, segsum, addmask


def _mha(x, wqkv, bqkv, consts):
    """Multi-head attention for all (batch, head) blocks via full-width 2-D matmuls."""
    f32 = jnp.float32
    tile, tile_t, kmask, vmask, segsum, addmask = consts
    qkv = jnp.dot(x, wqkv, preferred_element_type=f32) + bqkv           # (BL, 3E)
    q = qkv[:, :EMBED]
    k = qkv[:, EMBED:2 * EMBED]
    v = qkv[:, 2 * EMBED:]

    # mk[e, c] = k[batch(c)*L + key(c), e] if e belongs to head(c) else 0
    mk = jnp.dot(k.T, tile, preferred_element_type=f32) * kmask         # (E, BHL)
    # s[r, c] = <q_head(c)[r], k_head(c)[batch(c)*L + key(c)]>  (scaled + masked)
    s = jnp.dot(q, mk, preferred_element_type=f32) * SCALE + addmask    # (BL, BHL)
    s = s - jnp.max(s, axis=-1, keepdims=True)                          # per-row shift
    p = jnp.exp(s)                                                      # masked cols -> exact 0
    denom = jnp.dot(p, segsum, preferred_element_type=f32) + 1e-30      # per-block sums
    inv = pl.reciprocal(denom, approx=True)                             # EUP slot
    inv = inv * (2.0 - denom * inv)                                     # Newton step -> ~f32 exact
    p = p * inv                                                         # per-block softmax
    # TODO(synk): attention dropout (eval-mode identity).

    # vb[c, e] = v[batch(c)*L + key(c), e] if e belongs to head(c) else 0
    vb = jnp.dot(tile_t, v, preferred_element_type=f32) * vmask         # (BHL, E)
    return jnp.dot(p, vb, preferred_element_type=f32)                   # (BL, E)


def _tblock(x, wqkv, bqkv, wo, bo, g1, be1, w1, bf1, w2, bf2, g2, be2, consts):
    f32 = jnp.float32
    attn = _mha(x, wqkv, bqkv, consts)
    x1 = jnp.dot(attn, wo, preferred_element_type=f32) + bo
    x1 = _layernorm(x1, g1, be1)
    x2 = x1 + x
    h = _gelu(jnp.dot(x2, w1, preferred_element_type=f32) + bf1)
    x3 = jnp.dot(h, w2, preferred_element_type=f32) + bf2
    x3 = _layernorm(x3, g2, be2)
    return x3 + x2


def vit_kernel(patches_ref, tok_ref, ew_ref, wqkv_ref, wo_ref, w1_ref, w2_ref,
               bv_ref, o_ref, *, batch):
    """Single grid step = the whole batch through the full ViT encoder."""
    f32 = jnp.float32
    consts = _attn_constants(batch)
    # Patch embedding.  tok_ref already contains (pos + embed_bias) for patch rows,
    # (cls + pos) for the CLS row and zeros for padded rows; padded patch rows are 0.
    x = jnp.dot(patches_ref[...], ew_ref[...],
                preferred_element_type=f32) + tok_ref[...]              # (BL, E)
    for blk in range(NUM_BLOCKS):
        wqkv = wqkv_ref[blk]                 # (E, 3E)
        wo = wo_ref[blk]                     # (E, E)
        w1 = w1_ref[blk]                     # (E, FF)
        w2 = w2_ref[blk]                     # (FF, E)
        bv = bv_ref[blk]                     # (8, 256) packed vectors
        bqkv = bv[0:1, :3 * EMBED]
        bo = bv[1:2, :EMBED]
        g1 = bv[2:3, :EMBED]
        be1 = bv[3:4, :EMBED]
        bf1 = bv[4:5, :FF_HIDDEN]
        bf2 = bv[5:6, :EMBED]
        g2 = bv[6:7, :EMBED]
        be2 = bv[7:8, :EMBED]
        x = _tblock(x, wqkv, bqkv, wo, bo, g1, be1, w1, bf1, w2, bf2, g2, be2, consts)
    o_ref[...] = x


# ------------------------------ parameter packing -----------------------------
def _pad_row(v, width):
    return jnp.pad(v, ((0, 0), (0, width - v.shape[1])))


def pack_params(params):
    """Packs weights into the few, large operands the kernel consumes (done once)."""
    # token additive term: pos(+bias) for patch rows, cls+pos for CLS row, 0 for pads
    tok = jnp.zeros((L_PAD, EMBED), jnp.float32)
    tok = tok.at[:N_PATCH].set(params["pos"][0, :N_PATCH] + params["embed_b"])
    tok = tok.at[N_PATCH].set(params["cls"][0, 0] + params["pos"][0, N_PATCH])

    wqkv, wo, w1, w2, bv = [], [], [], [], []
    for blk in params["blocks"]:
        wqkv.append(jnp.concatenate([blk["wq"], blk["wk"], blk["wv"]], axis=1))
        wo.append(blk["wo"])
        w1.append(blk["w1"])
        w2.append(blk["w2"])
        rows = [
            jnp.concatenate([blk["bq"], blk["bk"], blk["bv"]], axis=1),   # (1, 3E)
            blk["bo"], blk["g1"], blk["be1"],
            blk["bf1"], blk["bf2"], blk["g2"], blk["be2"],
        ]
        bv.append(jnp.concatenate([_pad_row(r, 256) for r in rows], axis=0))  # (8, 256)

    return {
        "tok": tok,
        "embed_w": params["embed_w"],
        "wqkv": jnp.stack(wqkv),   # (NB, E, 3E)
        "wo": jnp.stack(wo),       # (NB, E, E)
        "w1": jnp.stack(w1),       # (NB, E, FF)
        "w2": jnp.stack(w2),       # (NB, FF, E)
        "bv": jnp.stack(bv),       # (NB, 8, 256)
    }


# ------------------------------ wrapper ---------------------------------------
@jax.jit
def vit_forward(x, packed):
    b = x.shape[0]
    bl = b * L_PAD
    patches = patchify(x, PATCH)                                         # (B, N_PATCH, PD)
    patches_pad = jnp.pad(patches, ((0, 0), (0, L_PAD - N_PATCH), (0, 0)))
    patches_flat = patches_pad.reshape(bl, PATCH_DIM).astype(jnp.float32)
    tok = jnp.tile(packed["tok"], (b, 1))                                # (BL, E)

    in_specs = [
        pl.BlockSpec((bl, PATCH_DIM), lambda i: (0, 0)),
        pl.BlockSpec((bl, EMBED), lambda i: (0, 0)),
        pl.BlockSpec((PATCH_DIM, EMBED), lambda i: (0, 0)),
        pl.BlockSpec((NUM_BLOCKS, EMBED, 3 * EMBED), lambda i: (0, 0, 0)),
        pl.BlockSpec((NUM_BLOCKS, EMBED, EMBED), lambda i: (0, 0, 0)),
        pl.BlockSpec((NUM_BLOCKS, EMBED, FF_HIDDEN), lambda i: (0, 0, 0)),
        pl.BlockSpec((NUM_BLOCKS, FF_HIDDEN, EMBED), lambda i: (0, 0, 0)),
        pl.BlockSpec((NUM_BLOCKS, 8, 256), lambda i: (0, 0, 0)),
    ]

    out = pl.pallas_call(
        functools.partial(vit_kernel, batch=b),
        out_shape=jax.ShapeDtypeStruct((bl, EMBED), jnp.float32),
        grid=(1,),
        in_specs=in_specs,
        out_specs=pl.BlockSpec((bl, EMBED), lambda i: (0, 0)),
        compiler_params=pltpu.CompilerParams(dimension_semantics=("arbitrary",)),
    )(patches_flat, tok, packed["embed_w"], packed["wqkv"], packed["wo"],
      packed["w1"], packed["w2"], packed["bv"])
    return out.reshape(b, L_PAD, EMBED)[:, :SEQ, :]


# ------------------------------ parameter setup ------------------------------
def _linear_init(key, d_in, d_out):
    # PyTorch nn.Linear default init; weights stored transposed as (d_in, d_out).
    k1, k2 = jax.random.split(key)
    bound = 1.0 / math.sqrt(d_in)
    w = jax.random.uniform(k1, (d_in, d_out), jnp.float32, -bound, bound)
    b = jax.random.uniform(k2, (1, d_out), jnp.float32, -bound, bound)
    return w, b


def init_params(key):
    keys = jax.random.split(key, 3 + NUM_BLOCKS)
    params = {}
    params["embed_w"], params["embed_b"] = _linear_init(keys[0], PATCH_DIM, EMBED)
    params["cls"] = jax.random.normal(keys[1], (1, 1, EMBED), jnp.float32)
    params["pos"] = jax.random.normal(keys[2], (1, SEQ, EMBED), jnp.float32)
    blocks = []
    for i in range(NUM_BLOCKS):
        bk = jax.random.split(keys[3 + i], 6)
        blk = {}
        blk["wq"], blk["bq"] = _linear_init(bk[0], EMBED, EMBED)
        blk["wk"], blk["bk"] = _linear_init(bk[1], EMBED, EMBED)
        blk["wv"], blk["bv"] = _linear_init(bk[2], EMBED, EMBED)
        blk["wo"], blk["bo"] = _linear_init(bk[3], EMBED, EMBED)
        blk["w1"], blk["bf1"] = _linear_init(bk[4], EMBED, FF_HIDDEN)
        blk["w2"], blk["bf2"] = _linear_init(bk[5], FF_HIDDEN, EMBED)
        blk["g1"] = jnp.ones((1, EMBED), jnp.float32)   # LayerNorm default init
        blk["be1"] = jnp.zeros((1, EMBED), jnp.float32)
        blk["g2"] = jnp.ones((1, EMBED), jnp.float32)
        blk["be2"] = jnp.zeros((1, EMBED), jnp.float32)
        blocks.append(blk)
    params["blocks"] = blocks
    return params


# ------------------------------- pure-JAX reference --------------------------
def _ref_block(x, p):
    b, l, e = x.shape
    lin = lambda t, w, bias: t @ w + bias
    q = lin(x, p["wq"], p["bq"]).reshape(b, l, N_HEADS, D_HEAD).transpose(0, 2, 1, 3)
    k = lin(x, p["wk"], p["bk"]).reshape(b, l, N_HEADS, D_HEAD).transpose(0, 2, 1, 3)
    v = lin(x, p["wv"], p["bv"]).reshape(b, l, N_HEADS, D_HEAD).transpose(0, 2, 1, 3)
    s = jnp.einsum("bhqd,bhkd->bhqk", q, k) / math.sqrt(D_HEAD)
    a = jax.nn.softmax(s, axis=-1)
    o = jnp.einsum("bhqk,bhkd->bhqd", a, v).transpose(0, 2, 1, 3).reshape(b, l, e)
    ln = lambda t, g, bias: ((t - t.mean(-1, keepdims=True))
                             * jax.lax.rsqrt(t.var(-1, keepdims=True) + 1e-5) * g + bias)
    x1 = ln(lin(o, p["wo"], p["bo"]), p["g1"], p["be1"])
    x2 = x1 + x
    hdn = jax.nn.gelu(lin(x2, p["w1"], p["bf1"]), approximate=False)
    x3 = ln(lin(hdn, p["w2"], p["bf2"]), p["g2"], p["be2"])
    return x3 + x2


def vit_reference(x, params):
    b = x.shape[0]
    patches = patchify(x, PATCH)
    emb = patches @ params["embed_w"] + params["embed_b"]
    cls = jnp.broadcast_to(params["cls"], (b, 1, EMBED))
    emb = jnp.concatenate([emb, cls], axis=1) + params["pos"]
    for blk in params["blocks"]:
        emb = _ref_block(emb, blk)
    return emb


# ------------------------------------ main -----------------------------------
if __name__ == "__main__":
    key = jax.random.PRNGKey(0)
    pkey, xkey = jax.random.split(key)
    params = init_params(pkey)
    packed = pack_params(params)
    x = jax.random.normal(xkey, (B, C, H, W), jnp.float32)

    out = jax.block_until_ready(vit_forward(x, packed))
    ref = jax.block_until_ready(vit_reference(x, params))

    assert out.shape == (B, SEQ, EMBED)
    assert bool(jnp.all(jnp.isfinite(out)))
    assert bool(jnp.allclose(out, ref, rtol=1e-3, atol=1e-3)), "mismatch vs reference"

    print("KERNEL_OK")
</pallas_src>

<mosaic_0001>
module attributes {stable_mosaic.version = 11 : i64} {
  func.func @vit_kernel(%arg0: i32, %arg1: memref<16x192xf32, #tpu.memory_space<vmem>>, %arg2: memref<16x64xf32, #tpu.memory_space<vmem>>, %arg3: memref<192x64xf32, #tpu.memory_space<vmem>>, %arg4: memref<2x64x192xf32, #tpu.memory_space<vmem>>, %arg5: memref<2x64x64xf32, #tpu.memory_space<vmem>>, %arg6: memref<2x64x256xf32, #tpu.memory_space<vmem>>, %arg7: memref<2x256x64xf32, #tpu.memory_space<vmem>>, %arg8: memref<2x8x256xf32, #tpu.memory_space<vmem>>, %arg9: memref<16x64xf32, #tpu.memory_space<vmem>>) attributes {dimension_semantics = [#tpu.dimension_semantics<arbitrary>], iteration_bounds = array<i64: 1>, scalar_prefetch = 0 : i64, scratch_operands = 0 : i64, tpu.core_type = #tpu.core_type<tc>, window_params = [{pipeline_mode = #tpu.pipeline_mode<synchronous>, transform_indices = @transform_0, window_bounds = array<i64: 16, 192>}, {pipeline_mode = #tpu.pipeline_mode<synchronous>, transform_indices = @transform_1, window_bounds = array<i64: 16, 64>}, {pipeline_mode = #tpu.pipeline_mode<synchronous>, transform_indices = @transform_2, window_bounds = array<i64: 192, 64>}, {pipeline_mode = #tpu.pipeline_mode<synchronous>, transform_indices = @transform_3, window_bounds = array<i64: 2, 64, 192>}, {pipeline_mode = #tpu.pipeline_mode<synchronous>, transform_indices = @transform_4, window_bounds = array<i64: 2, 64, 64>}, {pipeline_mode = #tpu.pipeline_mode<synchronous>, transform_indices = @transform_5, window_bounds = array<i64: 2, 64, 256>}, {pipeline_mode = #tpu.pipeline_mode<synchronous>, transform_indices = @transform_6, window_bounds = array<i64: 2, 256, 64>}, {pipeline_mode = #tpu.pipeline_mode<synchronous>, transform_indices = @transform_7, window_bounds = array<i64: 2, 8, 256>}, {pipeline_mode = #tpu.pipeline_mode<synchronous>, transform_indices = @transform_8, window_bounds = array<i64: 16, 64>}]} {
    %0 = tpu.iota {dimensions = array<i32: 0>} : vector<16x128xi32>
    %1 = tpu.iota {dimensions = array<i32: 1>} : vector<16x128xi32>
    %c3_i32 = arith.constant 3 : i32
    %2 = vector.broadcast %c3_i32 : i32 to vector<16x128xi32>
    %3 = arith.shrsi %0, %2 : vector<16x128xi32>
    %c6_i32 = arith.constant 6 : i32
    %4 = vector.broadcast %c6_i32 : i32 to vector<16x128xi32>
    %5 = arith.shrsi %1, %4 : vector<16x128xi32>
    %6 = arith.cmpi eq, %3, %5 : vector<16x128xi32>
    %c7_i32 = arith.constant 7 : i32
    %7 = vector.broadcast %c7_i32 : i32 to vector<16x128xi32>
    %8 = arith.andi %0, %7 : vector<16x128xi32>
    %c7_i32_0 = arith.constant 7 : i32
    %9 = vector.broadcast %c7_i32_0 : i32 to vector<16x128xi32>
    %10 = arith.andi %1, %9 : vector<16x128xi32>
    %11 = arith.cmpi eq, %8, %10 : vector<16x128xi32>
    %12 = arith.andi %6, %11 : vector<16x128xi1>
    %cst = arith.constant 1.000000e+00 : f32
    %cst_1 = arith.constant 0.000000e+00 : f32
    %13 = vector.broadcast %cst : f32 to vector<16x128xf32>
    %14 = vector.broadcast %cst_1 : f32 to vector<16x128xf32>
    %15 = arith.select %12, %13, %14 : vector<16x128xi1>, vector<16x128xf32>
    %c7_i32_2 = arith.constant 7 : i32
    %16 = vector.broadcast %c7_i32_2 : i32 to vector<16x128xi32>
    %17 = arith.andi %1, %16 : vector<16x128xi32>
    %c5_i32 = arith.constant 5 : i32
    %18 = vector.broadcast %c5_i32 : i32 to vector<16x128xi32>
    %19 = arith.cmpi slt, %17, %18 : vector<16x128xi32>
    %20 = arith.andi %6, %19 : vector<16x128xi1>
    %cst_3 = arith.constant 0.000000e+00 : f32
    %cst_4 = arith.constant -1.000000e+30 : f32
    %21 = vector.broadcast %cst_3 : f32 to vector<16x128xf32>
    %22 = vector.broadcast %cst_4 : f32 to vector<16x128xf32>
    %23 = arith.select %20, %21, %22 : vector<16x128xi1>, vector<16x128xf32>
    %24 = tpu.iota {dimensions = array<i32: 0>} : vector<64x128xi32>
    %25 = tpu.iota {dimensions = array<i32: 1>} : vector<64x128xi32>
    %c3_i32_5 = arith.constant 3 : i32
    %26 = vector.broadcast %c3_i32_5 : i32 to vector<64x128xi32>
    %27 = arith.shrsi %24, %26 : vector<64x128xi32>
    %c3_i32_6 = arith.constant 3 : i32
    %28 = vector.broadcast %c3_i32_6 : i32 to vector<64x128xi32>
    %29 = arith.shrsi %25, %28 : vector<64x128xi32>
    %c7_i32_7 = arith.constant 7 : i32
    %30 = vector.broadcast %c7_i32_7 : i32 to vector<64x128xi32>
    %31 = arith.andi %29, %30 : vector<64x128xi32>
    %32 = arith.cmpi eq, %27, %31 : vector<64x128xi32>
    %cst_8 = arith.constant 1.000000e+00 : f32
    %cst_9 = arith.constant 0.000000e+00 : f32
    %33 = vector.broadcast %cst_8 : f32 to vector<64x128xf32>
    %34 = vector.broadcast %cst_9 : f32 to vector<64x128xf32>
    %35 = arith.select %32, %33, %34 : vector<64x128xi1>, vector<64x128xf32>
    %36 = tpu.iota {dimensions = array<i32: 0>} : vector<128x16xi32>
    %37 = tpu.iota {dimensions = array<i32: 1>} : vector<128x16xi32>
    %c6_i32_10 = arith.constant 6 : i32
    %38 = vector.broadcast %c6_i32_10 : i32 to vector<128x16xi32>
    %39 = arith.shrsi %36, %38 : vector<128x16xi32>
    %c3_i32_11 = arith.constant 3 : i32
    %40 = vector.broadcast %c3_i32_11 : i32 to vector<128x16xi32>
    %41 = arith.shrsi %37, %40 : vector<128x16xi32>
    %42 = arith.cmpi eq, %39, %41 : vector<128x16xi32>
    %c7_i32_12 = arith.constant 7 : i32
    %43 = vector.broadcast %c7_i32_12 : i32 to vector<128x16xi32>
    %44 = arith.andi %36, %43 : vector<128x16xi32>
    %c7_i32_13 = arith.constant 7 : i32
    %45 = vector.broadcast %c7_i32_13 : i32 to vector<128x16xi32>
    %46 = arith.andi %37, %45 : vector<128x16xi32>
    %47 = arith.cmpi eq, %44, %46 : vector<128x16xi32>
    %48 = arith.andi %42, %47 : vector<128x16xi1>
    %cst_14 = arith.constant 1.000000e+00 : f32
    %cst_15 = arith.constant 0.000000e+00 : f32
    %49 = vector.broadcast %cst_14 : f32 to vector<128x16xf32>
    %50 = vector.broadcast %cst_15 : f32 to vector<128x16xf32>
    %51 = arith.select %48, %49, %50 : vector<128x16xi1>, vector<128x16xf32>
    %52 = tpu.iota {dimensions = array<i32: 0>} : vector<128x64xi32>
    %53 = tpu.iota {dimensions = array<i32: 1>} : vector<128x64xi32>
    %c3_i32_16 = arith.constant 3 : i32
    %54 = vector.broadcast %c3_i32_16 : i32 to vector<128x64xi32>
    %55 = arith.shrsi %52, %54 : vector<128x64xi32>
    %c7_i32_17 = arith.constant 7 : i32
    %56 = vector.broadcast %c7_i32_17 : i32 to vector<128x64xi32>
    %57 = arith.andi %55, %56 : vector<128x64xi32>
    %c3_i32_18 = arith.constant 3 : i32
    %58 = vector.broadcast %c3_i32_18 : i32 to vector<128x64xi32>
    %59 = arith.shrsi %53, %58 : vector<128x64xi32>
    %60 = arith.cmpi eq, %57, %59 : vector<128x64xi32>
    %cst_19 = arith.constant 1.000000e+00 : f32
    %cst_20 = arith.constant 0.000000e+00 : f32
    %61 = vector.broadcast %cst_19 : f32 to vector<128x64xf32>
    %62 = vector.broadcast %cst_20 : f32 to vector<128x64xf32>
    %63 = arith.select %60, %61, %62 : vector<128x64xi1>, vector<128x64xf32>
    %64 = tpu.iota {dimensions = array<i32: 0>} : vector<128x128xi32>
    %65 = tpu.iota {dimensions = array<i32: 1>} : vector<128x128xi32>
    %c3_i32_21 = arith.constant 3 : i32
    %66 = vector.broadcast %c3_i32_21 : i32 to vector<128x128xi32>
    %67 = arith.shrsi %64, %66 : vector<128x128xi32>
    %c3_i32_22 = arith.constant 3 : i32
    %68 = vector.broadcast %c3_i32_22 : i32 to vector<128x128xi32>
    %69 = arith.shrsi %65, %68 : vector<128x128xi32>
    %70 = arith.cmpi eq, %67, %69 : vector<128x128xi32>
    %cst_23 = arith.constant 1.000000e+00 : f32
    %cst_24 = arith.constant 0.000000e+00 : f32
    %71 = vector.broadcast %cst_23 : f32 to vector<128x128xf32>
    %72 = vector.broadcast %cst_24 : f32 to vector<128x128xf32>
    %73 = arith.select %70, %71, %72 : vector<128x128xi1>, vector<128x128xf32>
    %c0 = arith.constant 0 : index
    %c0_25 = arith.constant 0 : index
    %74 = vector.load %arg1[%c0, %c0_25] : memref<16x192xf32, #tpu.memory_space<vmem>>, vector<16x192xf32>
    %c0_26 = arith.constant 0 : index
    %c0_27 = arith.constant 0 : index
    %75 = vector.load %arg3[%c0_26, %c0_27] : memref<192x64xf32, #tpu.memory_space<vmem>>, vector<192x64xf32>
    %cst_28 = arith.constant dense<0.000000e+00> : vector<16x64xf32>
    %76 = tpu.matmul %74, %75, %cst_28 {dimension_numbers = #tpu.dot_dimension_numbers<[1], [0], [0], [1], [0, 0, 1, 1], [], []>} : vector<16x192xf32>, vector<192x64xf32>, vector<16x64xf32> -> vector<16x64xf32>
    %c0_29 = arith.constant 0 : index
    %c0_30 = arith.constant 0 : index
    %77 = vector.load %arg2[%c0_29, %c0_30] : memref<16x64xf32, #tpu.memory_space<vmem>>, vector<16x64xf32>
    %78 = arith.addf %76, %77 : vector<16x64xf32>
    %c0_31 = arith.constant 0 : index
    %c0_32 = arith.constant 0 : index
    %c0_33 = arith.constant 0 : index
    %79 = vector.load %arg4[%c0_31, %c0_32, %c0_33] : memref<2x64x192xf32, #tpu.memory_space<vmem>>, vector<1x64x192xf32>
    %80 = vector.shape_cast %79 : vector<1x64x192xf32> to vector<64x192xf32>
    %c0_34 = arith.constant 0 : index
    %c0_35 = arith.constant 0 : index
    %c0_36 = arith.constant 0 : index
    %81 = vector.load %arg5[%c0_34, %c0_35, %c0_36] : memref<2x64x64xf32, #tpu.memory_space<vmem>>, vector<1x64x64xf32>
    %82 = vector.shape_cast %81 : vector<1x64x64xf32> to vector<64x64xf32>
    %c0_37 = arith.constant 0 : index
    %c0_38 = arith.constant 0 : index
    %c0_39 = arith.constant 0 : index
    %83 = vector.load %arg6[%c0_37, %c0_38, %c0_39] : memref<2x64x256xf32, #tpu.memory_space<vmem>>, vector<1x64x256xf32>
    %84 = vector.shape_cast %83 : vector<1x64x256xf32> to vector<64x256xf32>
    %c0_40 = arith.constant 0 : index
    %c0_41 = arith.constant 0 : index
    %c0_42 = arith.constant 0 : index
    %85 = vector.load %arg7[%c0_40, %c0_41, %c0_42] : memref<2x256x64xf32, #tpu.memory_space<vmem>>, vector<1x256x64xf32>
    %86 = vector.shape_cast %85 : vector<1x256x64xf32> to vector<256x64xf32>
    %c0_43 = arith.constant 0 : index
    %c0_44 = arith.constant 0 : index
    %c0_45 = arith.constant 0 : index
    %87 = vector.load %arg8[%c0_43, %c0_44, %c0_45] : memref<2x8x256xf32, #tpu.memory_space<vmem>>, vector<1x8x256xf32>
    %88 = vector.shape_cast %87 : vector<1x8x256xf32> to vector<8x256xf32>
    %89 = vector.extract_strided_slice %88 {offsets = [0, 0], sizes = [1, 192], strides = [1, 1]} : vector<8x256xf32> to vector<1x192xf32>
    %90 = vector.extract_strided_slice %88 {offsets = [1, 0], sizes = [1, 64], strides = [1, 1]} : vector<8x256xf32> to vector<1x64xf32>
    %91 = vector.extract_strided_slice %88 {offsets = [2, 0], sizes = [1, 64], strides = [1, 1]} : vector<8x256xf32> to vector<1x64xf32>
    %92 = vector.extract_strided_slice %88 {offsets = [3, 0], sizes = [1, 64], strides = [1, 1]} : vector<8x256xf32> to vector<1x64xf32>
    %93 = vector.extract_strided_slice %88 {offsets = [4, 0], sizes = [1, 256], strides = [1, 1]} : vector<8x256xf32> to vector<1x256xf32>
    %94 = vector.extract_strided_slice %88 {offsets = [5, 0], sizes = [1, 64], strides = [1, 1]} : vector<8x256xf32> to vector<1x64xf32>
    %95 = vector.extract_strided_slice %88 {offsets = [6, 0], sizes = [1, 64], strides = [1, 1]} : vector<8x256xf32> to vector<1x64xf32>
    %96 = vector.extract_strided_slice %88 {offsets = [7, 0], sizes = [1, 64], strides = [1, 1]} : vector<8x256xf32> to vector<1x64xf32>
    %cst_46 = arith.constant dense<0.000000e+00> : vector<16x192xf32>
    %97 = tpu.matmul %78, %80, %cst_46 {dimension_numbers = #tpu.dot_dimension_numbers<[1], [0], [0], [1], [0, 0, 1, 1], [], []>} : vector<16x64xf32>, vector<64x192xf32>, vector<16x192xf32> -> vector<16x192xf32>
    %98 = vector.broadcast %89 : vector<1x192xf32> to vector<16x192xf32>
    %99 = arith.addf %97, %98 : vector<16x192xf32>
    %100 = vector.extract_strided_slice %99 {offsets = [0, 0], sizes = [16, 64], strides = [1, 1]} : vector<16x192xf32> to vector<16x64xf32>
    %101 = vector.extract_strided_slice %99 {offsets = [0, 64], sizes = [16, 64], strides = [1, 1]} : vector<16x192xf32> to vector<16x64xf32>
    %102 = vector.extract_strided_slice %99 {offsets = [0, 128], sizes = [16, 64], strides = [1, 1]} : vector<16x192xf32> to vector<16x64xf32>
    %103 = tpu.transpose %101, [1, 0] : vector<16x64xf32> -> vector<64x16xf32>
    %cst_47 = arith.constant dense<0.000000e+00> : vector<64x128xf32>
    %104 = tpu.matmul %103, %15, %cst_47 {dimension_numbers = #tpu.dot_dimension_numbers<[1], [0], [0], [1], [0, 0, 1, 1], [], []>} : vector<64x16xf32>, vector<16x128xf32>, vector<64x128xf32> -> vector<64x128xf32>
    %105 = arith.mulf %104, %35 : vector<64x128xf32>
    %cst_48 = arith.constant dense<0.000000e+00> : vector<16x128xf32>
    %106 = tpu.matmul %100, %105, %cst_48 {dimension_numbers = #tpu.dot_dimension_numbers<[1], [0], [0], [1], [0, 0, 1, 1], [], []>} : vector<16x64xf32>, vector<64x128xf32>, vector<16x128xf32> -> vector<16x128xf32>
    %cst_49 = arith.constant 0.353553385 : f32
    %107 = vector.broadcast %cst_49 : f32 to vector<16x128xf32>
    %108 = arith.mulf %106, %107 : vector<16x128xf32>
    %109 = arith.addf %108, %23 : vector<16x128xf32>
    %cst_50 = arith.constant dense<0xFF800000> : vector<16xf32>
    %110 = vector.multi_reduction <maximumf>, %109, %cst_50 [1] : vector<16x128xf32> to vector<16xf32>
    %111 = vector.shape_cast %110 : vector<16xf32> to vector<16x1xf32>
    %112 = vector.broadcast %111 : vector<16x1xf32> to vector<16x128xf32>
    %113 = arith.subf %109, %112 : vector<16x128xf32>
    %114 = math.exp %113 : vector<16x128xf32>
    %cst_51 = arith.constant dense<0.000000e+00> : vector<16x128xf32>
    %115 = tpu.matmul %114, %73, %cst_51 {dimension_numbers = #tpu.dot_dimension_numbers<[1], [0], [0], [1], [0, 0, 1, 1], [], []>} : vector<16x128xf32>, vector<128x128xf32>, vector<16x128xf32> -> vector<16x128xf32>
    %cst_52 = arith.constant 1.000000e-30 : f32
    %116 = vector.broadcast %cst_52 : f32 to vector<16x128xf32>
    %117 = arith.addf %115, %116 : vector<16x128xf32>
    %118 = tpu.reciprocal %117 {approx = true} : vector<16x128xf32> -> vector<16x128xf32>
    %119 = arith.mulf %117, %118 : vector<16x128xf32>
    %cst_53 = arith.constant 2.000000e+00 : f32
    %120 = vector.broadcast %cst_53 : f32 to vector<16x128xf32>
    %121 = arith.subf %120, %119 : vector<16x128xf32>
    %122 = arith.mulf %118, %121 : vector<16x128xf32>
    %123 = arith.mulf %114, %122 : vector<16x128xf32>
    %cst_54 = arith.constant dense<0.000000e+00> : vector<128x64xf32>
    %124 = tpu.matmul %51, %102, %cst_54 {dimension_numbers = #tpu.dot_dimension_numbers<[1], [0], [0], [1], [0, 0, 1, 1], [], []>} : vector<128x16xf32>, vector<16x64xf32>, vector<128x64xf32> -> vector<128x64xf32>
    %125 = arith.mulf %124, %63 : vector<128x64xf32>
    %cst_55 = arith.constant dense<0.000000e+00> : vector<16x64xf32>
    %126 = tpu.matmul %123, %125, %cst_55 {dimension_numbers = #tpu.dot_dimension_numbers<[1], [0], [0], [1], [0, 0, 1, 1], [], []>} : vector<16x128xf32>, vector<128x64xf32>, vector<16x64xf32> -> vector<16x64xf32>
    %cst_56 = arith.constant dense<0.000000e+00> : vector<16x64xf32>
    %127 = tpu.matmul %126, %82, %cst_56 {dimension_numbers = #tpu.dot_dimension_numbers<[1], [0], [0], [1], [0, 0, 1, 1], [], []>} : vector<16x64xf32>, vector<64x64xf32>, vector<16x64xf32> -> vector<16x64xf32>
    %128 = vector.broadcast %90 : vector<1x64xf32> to vector<16x64xf32>
    %129 = arith.addf %127, %128 : vector<16x64xf32>
    %cst_57 = arith.constant dense<0.000000e+00> : vector<16xf32>
    %130 = vector.multi_reduction <add>, %129, %cst_57 [1] : vector<16x64xf32> to vector<16xf32>
    %131 = vector.shape_cast %130 : vector<16xf32> to vector<16x1xf32>
    %cst_58 = arith.constant 6.400000e+01 : f32
    %132 = vector.broadcast %cst_58 : f32 to vector<16x1xf32>
    %133 = arith.divf %131, %132 : vector<16x1xf32>
    %134 = vector.broadcast %133 : vector<16x1xf32> to vector<16x64xf32>
    %135 = arith.subf %129, %134 : vector<16x64xf32>
    %136 = arith.mulf %135, %135 : vector<16x64xf32>
    %cst_59 = arith.constant dense<0.000000e+00> : vector<16xf32>
    %137 = vector.multi_reduction <add>, %136, %cst_59 [1] : vector<16x64xf32> to vector<16xf32>
    %138 = vector.shape_cast %137 : vector<16xf32> to vector<16x1xf32>
    %cst_60 = arith.constant 6.400000e+01 : f32
    %139 = vector.broadcast %cst_60 : f32 to vector<16x1xf32>
    %140 = arith.divf %138, %139 : vector<16x1xf32>
    %141 = vector.broadcast %133 : vector<16x1xf32> to vector<16x64xf32>
    %142 = arith.subf %129, %141 : vector<16x64xf32>
    %cst_61 = arith.constant 9.99999974E-6 : f32
    %143 = vector.broadcast %cst_61 : f32 to vector<16x1xf32>
    %144 = arith.addf %140, %143 : vector<16x1xf32>
    %145 = math.rsqrt %144 : vector<16x1xf32>
    %146 = vector.broadcast %145 : vector<16x1xf32> to vector<16x64xf32>
    %147 = arith.mulf %142, %146 : vector<16x64xf32>
    %148 = vector.broadcast %91 : vector<1x64xf32> to vector<16x64xf32>
    %149 = arith.mulf %147, %148 : vector<16x64xf32>
    %150 = vector.broadcast %92 : vector<1x64xf32> to vector<16x64xf32>
    %151 = arith.addf %149, %150 : vector<16x64xf32>
    %152 = arith.addf %151, %78 : vector<16x64xf32>
    %cst_62 = arith.constant dense<0.000000e+00> : vector<16x256xf32>
    %153 = tpu.matmul %152, %84, %cst_62 {dimension_numbers = #tpu.dot_dimension_numbers<[1], [0], [0], [1], [0, 0, 1, 1], [], []>} : vector<16x64xf32>, vector<64x256xf32>, vector<16x256xf32> -> vector<16x256xf32>
    %154 = vector.broadcast %93 : vector<1x256xf32> to vector<16x256xf32>
    %155 = arith.addf %153, %154 : vector<16x256xf32>
    %cst_63 = arith.constant 5.000000e-01 : f32
    %156 = vector.broadcast %cst_63 : f32 to vector<16x256xf32>
    %157 = arith.mulf %156, %155 : vector<16x256xf32>
    %cst_64 = arith.constant 0.707106769 : f32
    %158 = vector.broadcast %cst_64 : f32 to vector<16x256xf32>
    %159 = arith.mulf %155, %158 : vector<16x256xf32>
    %160 = math.erf %159 : vector<16x256xf32>
    %cst_65 = arith.constant 1.000000e+00 : f32
    %161 = vector.broadcast %cst_65 : f32 to vector<16x256xf32>
    %162 = arith.addf %161, %160 : vector<16x256xf32>
    %163 = arith.mulf %157, %162 : vector<16x256xf32>
    %cst_66 = arith.constant dense<0.000000e+00> : vector<16x64xf32>
    %164 = tpu.matmul %163, %86, %cst_66 {dimension_numbers = #tpu.dot_dimension_numbers<[1], [0], [0], [1], [0, 0, 1, 1], [], []>} : vector<16x256xf32>, vector<256x64xf32>, vector<16x64xf32> -> vector<16x64xf32>
    %165 = vector.broadcast %94 : vector<1x64xf32> to vector<16x64xf32>
    %166 = arith.addf %164, %165 : vector<16x64xf32>
    %cst_67 = arith.constant dense<0.000000e+00> : vector<16xf32>
    %167 = vector.multi_reduction <add>, %166, %cst_67 [1] : vector<16x64xf32> to vector<16xf32>
    %168 = vector.shape_cast %167 : vector<16xf32> to vector<16x1xf32>
    %cst_68 = arith.constant 6.400000e+01 : f32
    %169 = vector.broadcast %cst_68 : f32 to vector<16x1xf32>
    %170 = arith.divf %168, %169 : vector<16x1xf32>
    %171 = vector.broadcast %170 : vector<16x1xf32> to vector<16x64xf32>
    %172 = arith.subf %166, %171 : vector<16x64xf32>
    %173 = arith.mulf %172, %172 : vector<16x64xf32>
    %cst_69 = arith.constant dense<0.000000e+00> : vector<16xf32>
    %174 = vector.multi_reduction <add>, %173, %cst_69 [1] : vector<16x64xf32> to vector<16xf32>
    %175 = vector.shape_cast %174 : vector<16xf32> to vector<16x1xf32>
    %cst_70 = arith.constant 6.400000e+01 : f32
    %176 = vector.broadcast %cst_70 : f32 to vector<16x1xf32>
    %177 = arith.divf %175, %176 : vector<16x1xf32>
    %178 = vector.broadcast %170 : vector<16x1xf32> to vector<16x64xf32>
    %179 = arith.subf %166, %178 : vector<16x64xf32>
    %cst_71 = arith.constant 9.99999974E-6 : f32
    %180 = vector.broadcast %cst_71 : f32 to vector<16x1xf32>
    %181 = arith.addf %177, %180 : vector<16x1xf32>
    %182 = math.rsqrt %181 : vector<16x1xf32>
    %183 = vector.broadcast %182 : vector<16x1xf32> to vector<16x64xf32>
    %184 = arith.mulf %179, %183 : vector<16x64xf32>
    %185 = vector.broadcast %95 : vector<1x64xf32> to vector<16x64xf32>
    %186 = arith.mulf %184, %185 : vector<16x64xf32>
    %187 = vector.broadcast %96 : vector<1x64xf32> to vector<16x64xf32>
    %188 = arith.addf %186, %187 : vector<16x64xf32>
    %189 = arith.addf %188, %152 : vector<16x64xf32>
    %c1 = arith.constant 1 : index
    %c0_72 = arith.constant 0 : index
    %c0_73 = arith.constant 0 : index
    %190 = vector.load %arg4[%c1, %c0_72, %c0_73] : memref<2x64x192xf32, #tpu.memory_space<vmem>>, vector<1x64x192xf32>
    %191 = vector.shape_cast %190 : vector<1x64x192xf32> to vector<64x192xf32>
    %c1_74 = arith.constant 1 : index
    %c0_75 = arith.constant 0 : index
    %c0_76 = arith.constant 0 : index
    %192 = vector.load %arg5[%c1_74, %c0_75, %c0_76] : memref<2x64x64xf32, #tpu.memory_space<vmem>>, vector<1x64x64xf32>
    %193 = vector.shape_cast %192 : vector<1x64x64xf32> to vector<64x64xf32>
    %c1_77 = arith.constant 1 : index
    %c0_78 = arith.constant 0 : index
    %c0_79 = arith.constant 0 : index
    %194 = vector.load %arg6[%c1_77, %c0_78, %c0_79] : memref<2x64x256xf32, #tpu.memory_space<vmem>>, vector<1x64x256xf32>
    %195 = vector.shape_cast %194 : vector<1x64x256xf32> to vector<64x256xf32>
    %c1_80 = arith.constant 1 : index
    %c0_81 = arith.constant 0 : index
    %c0_82 = arith.constant 0 : index
    %196 = vector.load %arg7[%c1_80, %c0_81, %c0_82] : memref<2x256x64xf32, #tpu.memory_space<vmem>>, vector<1x256x64xf32>
    %197 = vector.shape_cast %196 : vector<1x256x64xf32> to vector<256x64xf32>
    %c1_83 = arith.constant 1 : index
    %c0_84 = arith.constant 0 : index
    %c0_85 = arith.constant 0 : index
    %198 = vector.load %arg8[%c1_83, %c0_84, %c0_85] : memref<2x8x256xf32, #tpu.memory_space<vmem>>, vector<1x8x256xf32>
    %199 = vector.shape_cast %198 : vector<1x8x256xf32> to vector<8x256xf32>
    %200 = vector.extract_strided_slice %199 {offsets = [0, 0], sizes = [1, 192], strides = [1, 1]} : vector<8x256xf32> to vector<1x192xf32>
    %201 = vector.extract_strided_slice %199 {offsets = [1, 0], sizes = [1, 64], strides = [1, 1]} : vector<8x256xf32> to vector<1x64xf32>
    %202 = vector.extract_strided_slice %199 {offsets = [2, 0], sizes = [1, 64], strides = [1, 1]} : vector<8x256xf32> to vector<1x64xf32>
    %203 = vector.extract_strided_slice %199 {offsets = [3, 0], sizes = [1, 64], strides = [1, 1]} : vector<8x256xf32> to vector<1x64xf32>
    %204 = vector.extract_strided_slice %199 {offsets = [4, 0], sizes = [1, 256], strides = [1, 1]} : vector<8x256xf32> to vector<1x256xf32>
    %205 = vector.extract_strided_slice %199 {offsets = [5, 0], sizes = [1, 64], strides = [1, 1]} : vector<8x256xf32> to vector<1x64xf32>
    %206 = vector.extract_strided_slice %199 {offsets = [6, 0], sizes = [1, 64], strides = [1, 1]} : vector<8x256xf32> to vector<1x64xf32>
    %207 = vector.extract_strided_slice %199 {offsets = [7, 0], sizes = [1, 64], strides = [1, 1]} : vector<8x256xf32> to vector<1x64xf32>
    %cst_86 = arith.constant dense<0.000000e+00> : vector<16x192xf32>
    %208 = tpu.matmul %189, %191, %cst_86 {dimension_numbers = #tpu.dot_dimension_numbers<[1], [0], [0], [1], [0, 0, 1, 1], [], []>} : vector<16x64xf32>, vector<64x192xf32>, vector<16x192xf32> -> vector<16x192xf32>
    %209 = vector.broadcast %200 : vector<1x192xf32> to vector<16x192xf32>
    %210 = arith.addf %208, %209 : vector<16x192xf32>
    %211 = vector.extract_strided_slice %210 {offsets = [0, 0], sizes = [16, 64], strides = [1, 1]} : vector<16x192xf32> to vector<16x64xf32>
    %212 = vector.extract_strided_slice %210 {offsets = [0, 64], sizes = [16, 64], strides = [1, 1]} : vector<16x192xf32> to vector<16x64xf32>
    %213 = vector.extract_strided_slice %210 {offsets = [0, 128], sizes = [16, 64], strides = [1, 1]} : vector<16x192xf32> to vector<16x64xf32>
    %214 = tpu.transpose %212, [1, 0] : vector<16x64xf32> -> vector<64x16xf32>
    %cst_87 = arith.constant dense<0.000000e+00> : vector<64x128xf32>
    %215 = tpu.matmul %214, %15, %cst_87 {dimension_numbers = #tpu.dot_dimension_numbers<[1], [0], [0], [1], [0, 0, 1, 1], [], []>} : vector<64x16xf32>, vector<16x128xf32>, vector<64x128xf32> -> vector<64x128xf32>
    %216 = arith.mulf %215, %35 : vector<64x128xf32>
    %cst_88 = arith.constant dense<0.000000e+00> : vector<16x128xf32>
    %217 = tpu.matmul %211, %216, %cst_88 {dimension_numbers = #tpu.dot_dimension_numbers<[1], [0], [0], [1], [0, 0, 1, 1], [], []>} : vector<16x64xf32>, vector<64x128xf32>, vector<16x128xf32> -> vector<16x128xf32>
    %cst_89 = arith.constant 0.353553385 : f32
    %218 = vector.broadcast %cst_89 : f32 to vector<16x128xf32>
    %219 = arith.mulf %217, %218 : vector<16x128xf32>
    %220 = arith.addf %219, %23 : vector<16x128xf32>
    %cst_90 = arith.constant dense<0xFF800000> : vector<16xf32>
    %221 = vector.multi_reduction <maximumf>, %220, %cst_90 [1] : vector<16x128xf32> to vector<16xf32>
    %222 = vector.shape_cast %221 : vector<16xf32> to vector<16x1xf32>
    %223 = vector.broadcast %222 : vector<16x1xf32> to vector<16x128xf32>
    %224 = arith.subf %220, %223 : vector<16x128xf32>
    %225 = math.exp %224 : vector<16x128xf32>
    %cst_91 = arith.constant dense<0.000000e+00> : vector<16x128xf32>
    %226 = tpu.matmul %225, %73, %cst_91 {dimension_numbers = #tpu.dot_dimension_numbers<[1], [0], [0], [1], [0, 0, 1, 1], [], []>} : vector<16x128xf32>, vector<128x128xf32>, vector<16x128xf32> -> vector<16x128xf32>
    %cst_92 = arith.constant 1.000000e-30 : f32
    %227 = vector.broadcast %cst_92 : f32 to vector<16x128xf32>
    %228 = arith.addf %226, %227 : vector<16x128xf32>
    %229 = tpu.reciprocal %228 {approx = true} : vector<16x128xf32> -> vector<16x128xf32>
    %230 = arith.mulf %228, %229 : vector<16x128xf32>
    %cst_93 = arith.constant 2.000000e+00 : f32
    %231 = vector.broadcast %cst_93 : f32 to vector<16x128xf32>
    %232 = arith.subf %231, %230 : vector<16x128xf32>
    %233 = arith.mulf %229, %232 : vector<16x128xf32>
    %234 = arith.mulf %225, %233 : vector<16x128xf32>
    %cst_94 = arith.constant dense<0.000000e+00> : vector<128x64xf32>
    %235 = tpu.matmul %51, %213, %cst_94 {dimension_numbers = #tpu.dot_dimension_numbers<[1], [0], [0], [1], [0, 0, 1, 1], [], []>} : vector<128x16xf32>, vector<16x64xf32>, vector<128x64xf32> -> vector<128x64xf32>
    %236 = arith.mulf %235, %63 : vector<128x64xf32>
    %cst_95 = arith.constant dense<0.000000e+00> : vector<16x64xf32>
    %237 = tpu.matmul %234, %236, %cst_95 {dimension_numbers = #tpu.dot_dimension_numbers<[1], [0], [0], [1], [0, 0, 1, 1], [], []>} : vector<16x128xf32>, vector<128x64xf32>, vector<16x64xf32> -> vector<16x64xf32>
    %cst_96 = arith.constant dense<0.000000e+00> : vector<16x64xf32>
    %238 = tpu.matmul %237, %193, %cst_96 {dimension_numbers = #tpu.dot_dimension_numbers<[1], [0], [0], [1], [0, 0, 1, 1], [], []>} : vector<16x64xf32>, vector<64x64xf32>, vector<16x64xf32> -> vector<16x64xf32>
    %239 = vector.broadcast %201 : vector<1x64xf32> to vector<16x64xf32>
    %240 = arith.addf %238, %239 : vector<16x64xf32>
    %cst_97 = arith.constant dense<0.000000e+00> : vector<16xf32>
    %241 = vector.multi_reduction <add>, %240, %cst_97 [1] : vector<16x64xf32> to vector<16xf32>
    %242 = vector.shape_cast %241 : vector<16xf32> to vector<16x1xf32>
    %cst_98 = arith.constant 6.400000e+01 : f32
    %243 = vector.broadcast %cst_98 : f32 to vector<16x1xf32>
    %244 = arith.divf %242, %243 : vector<16x1xf32>
    %245 = vector.broadcast %244 : vector<16x1xf32> to vector<16x64xf32>
    %246 = arith.subf %240, %245 : vector<16x64xf32>
    %247 = arith.mulf %246, %246 : vector<16x64xf32>
    %cst_99 = arith.constant dense<0.000000e+00> : vector<16xf32>
    %248 = vector.multi_reduction <add>, %247, %cst_99 [1] : vector<16x64xf32> to vector<16xf32>
    %249 = vector.shape_cast %248 : vector<16xf32> to vector<16x1xf32>
    %cst_100 = arith.constant 6.400000e+01 : f32
    %250 = vector.broadcast %cst_100 : f32 to vector<16x1xf32>
    %251 = arith.divf %249, %250 : vector<16x1xf32>
    %252 = vector.broadcast %244 : vector<16x1xf32> to vector<16x64xf32>
    %253 = arith.subf %240, %252 : vector<16x64xf32>
    %cst_101 = arith.constant 9.99999974E-6 : f32
    %254 = vector.broadcast %cst_101 : f32 to vector<16x1xf32>
    %255 = arith.addf %251, %254 : vector<16x1xf32>
    %256 = math.rsqrt %255 : vector<16x1xf32>
    %257 = vector.broadcast %256 : vector<16x1xf32> to vector<16x64xf32>
    %258 = arith.mulf %253, %257 : vector<16x64xf32>
    %259 = vector.broadcast %202 : vector<1x64xf32> to vector<16x64xf32>
    %260 = arith.mulf %258, %259 : vector<16x64xf32>
    %261 = vector.broadcast %203 : vector<1x64xf32> to vector<16x64xf32>
    %262 = arith.addf %260, %261 : vector<16x64xf32>
    %263 = arith.addf %262, %189 : vector<16x64xf32>
    %cst_102 = arith.constant dense<0.000000e+00> : vector<16x256xf32>
    %264 = tpu.matmul %263, %195, %cst_102 {dimension_numbers = #tpu.dot_dimension_numbers<[1], [0], [0], [1], [0, 0, 1, 1], [], []>} : vector<16x64xf32>, vector<64x256xf32>, vector<16x256xf32> -> vector<16x256xf32>
    %265 = vector.broadcast %204 : vector<1x256xf32> to vector<16x256xf32>
    %266 = arith.addf %264, %265 : vector<16x256xf32>
    %cst_103 = arith.constant 5.000000e-01 : f32
    %267 = vector.broadcast %cst_103 : f32 to vector<16x256xf32>
    %268 = arith.mulf %267, %266 : vector<16x256xf32>
    %cst_104 = arith.constant 0.707106769 : f32
    %269 = vector.broadcast %cst_104 : f32 to vector<16x256xf32>
    %270 = arith.mulf %266, %269 : vector<16x256xf32>
    %271 = math.erf %270 : vector<16x256xf32>
    %cst_105 = arith.constant 1.000000e+00 : f32
    %272 = vector.broadcast %cst_105 : f32 to vector<16x256xf32>
    %273 = arith.addf %272, %271 : vector<16x256xf32>
    %274 = arith.mulf %268, %273 : vector<16x256xf32>
    %cst_106 = arith.constant dense<0.000000e+00> : vector<16x64xf32>
    %275 = tpu.matmul %274, %197, %cst_106 {dimension_numbers = #tpu.dot_dimension_numbers<[1], [0], [0], [1], [0, 0, 1, 1], [], []>} : vector<16x256xf32>, vector<256x64xf32>, vector<16x64xf32> -> vector<16x64xf32>
    %276 = vector.broadcast %205 : vector<1x64xf32> to vector<16x64xf32>
    %277 = arith.addf %275, %276 : vector<16x64xf32>
    %cst_107 = arith.constant dense<0.000000e+00> : vector<16xf32>
    %278 = vector.multi_reduction <add>, %277, %cst_107 [1] : vector<16x64xf32> to vector<16xf32>
    %279 = vector.shape_cast %278 : vector<16xf32> to vector<16x1xf32>
    %cst_108 = arith.constant 6.400000e+01 : f32
    %280 = vector.broadcast %cst_108 : f32 to vector<16x1xf32>
    %281 = arith.divf %279, %280 : vector<16x1xf32>
    %282 = vector.broadcast %281 : vector<16x1xf32> to vector<16x64xf32>
    %283 = arith.subf %277, %282 : vector<16x64xf32>
    %284 = arith.mulf %283, %283 : vector<16x64xf32>
    %cst_109 = arith.constant dense<0.000000e+00> : vector<16xf32>
    %285 = vector.multi_reduction <add>, %284, %cst_109 [1] : vector<16x64xf32> to vector<16xf32>
    %286 = vector.shape_cast %285 : vector<16xf32> to vector<16x1xf32>
    %cst_110 = arith.constant 6.400000e+01 : f32
    %287 = vector.broadcast %cst_110 : f32 to vector<16x1xf32>
    %288 = arith.divf %286, %287 : vector<16x1xf32>
    %289 = vector.broadcast %281 : vector<16x1xf32> to vector<16x64xf32>
    %290 = arith.subf %277, %289 : vector<16x64xf32>
    %cst_111 = arith.constant 9.99999974E-6 : f32
    %291 = vector.broadcast %cst_111 : f32 to vector<16x1xf32>
    %292 = arith.addf %288, %291 : vector<16x1xf32>
    %293 = math.rsqrt %292 : vector<16x1xf32>
    %294 = vector.broadcast %293 : vector<16x1xf32> to vector<16x64xf32>
    %295 = arith.mulf %290, %294 : vector<16x64xf32>
    %296 = vector.broadcast %206 : vector<1x64xf32> to vector<16x64xf32>
    %297 = arith.mulf %295, %296 : vector<16x64xf32>
    %298 = vector.broadcast %207 : vector<1x64xf32> to vector<16x64xf32>
    %299 = arith.addf %297, %298 : vector<16x64xf32>
    %300 = arith.addf %299, %263 : vector<16x64xf32>
    %c0_112 = arith.constant 0 : index
    %c0_113 = arith.constant 0 : index
    %301 = vector.load %arg9[%c0_112, %c0_113] : memref<16x64xf32, #tpu.memory_space<vmem>>, vector<16x64xf32>
    tpu.vector_store %arg9[%c0_112, %c0_113], %300 {strides = array<i32>} : memref<16x64xf32, #tpu.memory_space<vmem>>, vector<16x64xf32>,
    return
  }
  func.func @transform_0(%arg0: i32) -> (i32, i32) {
    %c0_i32 = arith.constant 0 : i32
    %c0_i32_0 = arith.constant 0 : i32
    %c0_i32_1 = arith.constant 0 : i32
    return %c0_i32, %c0_i32_0 : i32, i32
  }
  func.func @transform_1(%arg0: i32) -> (i32, i32) {
    %c0_i32 = arith.constant 0 : i32
    %c0_i32_0 = arith.constant 0 : i32
    %c0_i32_1 = arith.constant 0 : i32
    return %c0_i32, %c0_i32_0 : i32, i32
  }
  func.func @transform_2(%arg0: i32) -> (i32, i32) {
    %c0_i32 = arith.constant 0 : i32
    %c0_i32_0 = arith.constant 0 : i32
    %c0_i32_1 = arith.constant 0 : i32
    return %c0_i32, %c0_i32_0 : i32, i32
  }
  func.func @transform_3(%arg0: i32) -> (i32, i32, i32) {
    %c0_i32 = arith.constant 0 : i32
    %c0_i32_0 = arith.constant 0 : i32
    %c0_i32_1 = arith.constant 0 : i32
    %c0_i32_2 = arith.constant 0 : i32
    return %c0_i32, %c0_i32_0, %c0_i32_1 : i32, i32, i32
  }
  func.func @transform_4(%arg0: i32) -> (i32, i32, i32) {
    %c0_i32 = arith.constant 0 : i32
    %c0_i32_0 = arith.constant 0 : i32
    %c0_i32_1 = arith.constant 0 : i32
    %c0_i32_2 = arith.constant 0 : i32
    return %c0_i32, %c0_i32_0, %c0_i32_1 : i32, i32, i32
  }
  func.func @transform_5(%arg0: i32) -> (i32, i32, i32) {
    %c0_i32 = arith.constant 0 : i32
    %c0_i32_0 = arith.constant 0 : i32
    %c0_i32_1 = arith.constant 0 : i32
    %c0_i32_2 = arith.constant 0 : i32
    return %c0_i32, %c0_i32_0, %c0_i32_1 : i32, i32, i32
  }
  func.func @transform_6(%arg0: i32) -> (i32, i32, i32) {
    %c0_i32 = arith.constant 0 : i32
    %c0_i32_0 = arith.constant 0 : i32
    %c0_i32_1 = arith.constant 0 : i32
    %c0_i32_2 = arith.constant 0 : i32
    return %c0_i32, %c0_i32_0, %c0_i32_1 : i32, i32, i32
  }
  func.func @transform_7(%arg0: i32) -> (i32, i32, i32) {
    %c0_i32 = arith.constant 0 : i32
    %c0_i32_0 = arith.constant 0 : i32
    %c0_i32_1 = arith.constant 0 : i32
    %c0_i32_2 = arith.constant 0 : i32
    return %c0_i32, %c0_i32_0, %c0_i32_1 : i32, i32, i32
  }
  func.func @transform_8(%arg0: i32) -> (i32, i32) {
    %c0_i32 = arith.constant 0 : i32
    %c0_i32_0 = arith.constant 0 : i32
    %c0_i32_1 = arith.constant 0 : i32
    return %c0_i32, %c0_i32_0 : i32, i32
  }
}

</mosaic_0001>

<llo_original>
// kernel: vit_forward.1
$region0: #{vit_forward.1}
  #allocation0 [shape = 'u32[]', space=smem, size = 0x4, offset = 0x4, fixed_abs, tag = 'smem constant byte address 0x4 - core index']
  #allocation1 [shape = 'u32[144,128]{1,0:T(1,128)}', space=vmem, size = 0x12000, scoped, tag = 'internal scratch']
  %s0 = inlined_call_operand.vmem [shape: f32[16,192], index: 0, kind: input, shape index: {}]
  %s1 = inlined_call_operand.vmem [shape: f32[16,64], index: 1, kind: input, shape index: {}]
  %s2 = inlined_call_operand.vmem [shape: f32[192,64], index: 2, kind: input, shape index: {}]
  %s3 = inlined_call_operand.vmem [shape: f32[2,64,192], index: 3, kind: input, shape index: {}]
  %s4 = inlined_call_operand.vmem [shape: f32[2,64,64], index: 4, kind: input, shape index: {}]
  %s5 = inlined_call_operand.vmem [shape: f32[2,64,256], index: 5, kind: input, shape index: {}]
  %s6 = inlined_call_operand.vmem [shape: f32[2,256,64], index: 6, kind: input, shape index: {}]
  %s7 = inlined_call_operand.vmem [shape: f32[2,8,256], index: 7, kind: input, shape index: {}]
  %s8 = inlined_call_operand.vmem [shape: f32[16,64], index: 8, kind: output, shape index: {}]
  %s9 = sld [smem:[#allocation0]]
  $region42: #{vit_forward.1} parent=0
    _
  %s11 = ssub.s32 1, %s9
  %s12 = scalar_select 0, %s11, %s9
  // Predicated region
  $region2: #{vit_forward.1} parent=0 // pred_check
    _
  $region3: #{vit_forward.1} parent=0 // pred_check_branch
    %14 = sbr.rel (0) target = $region5
  $region4: #{vit_forward.1} parent=0 // pred_region
    _
  $region5: #{vit_forward.1} parent=0 // pred_fallthru
    _
  // Predicated region
  $region6: #{vit_forward.1} parent=0 // pred_check
    _
  $region7: #{vit_forward.1} parent=0 // pred_check_branch
    %16 = sbr.rel (0) target = $region9
  $region8: #{vit_forward.1} parent=0 // pred_region
    _
  $region9: #{vit_forward.1} parent=0 // pred_fallthru
    _
  // Predicated region
  $region10: #{vit_forward.1} parent=0 // pred_check
    _
  $region11: #{vit_forward.1} parent=0 // pred_check_branch
    %18 = sbr.rel (0) target = $region13
  $region12: #{vit_forward.1} parent=0 // pred_region
    _
  $region13: #{vit_forward.1} parent=0 // pred_fallthru
    _
  // Predicated region
  $region14: #{vit_forward.1} parent=0 // pred_check
    _
  $region15: #{vit_forward.1} parent=0 // pred_check_branch
    %20 = sbr.rel (0) target = $region17
  $region16: #{vit_forward.1} parent=0 // pred_region
    _
  $region17: #{vit_forward.1} parent=0 // pred_fallthru
    _
  // Predicated region
  $region18: #{vit_forward.1} parent=0 // pred_check
    _
  $region19: #{vit_forward.1} parent=0 // pred_check_branch
    %22 = sbr.rel (0) target = $region21
  $region20: #{vit_forward.1} parent=0 // pred_region
    _
  $region21: #{vit_forward.1} parent=0 // pred_fallthru
    _
  // Predicated region
  $region22: #{vit_forward.1} parent=0 // pred_check
    _
  $region23: #{vit_forward.1} parent=0 // pred_check_branch
    %24 = sbr.rel (0) target = $region25
  $region24: #{vit_forward.1} parent=0 // pred_region
    _
  $region25: #{vit_forward.1} parent=0 // pred_fallthru
    _
  // Predicated region
  $region26: #{vit_forward.1} parent=0 // pred_check
    _
  $region27: #{vit_forward.1} parent=0 // pred_check_branch
    %26 = sbr.rel (0) target = $region29
  $region28: #{vit_forward.1} parent=0 // pred_region
    _
  $region29: #{vit_forward.1} parent=0 // pred_fallthru
    _
  // Predicated region
  $region30: #{vit_forward.1} parent=0 // pred_check
    _
  $region31: #{vit_forward.1} parent=0 // pred_check_branch
    %28 = sbr.rel (0) target = $region33
  $region32: #{vit_forward.1} parent=0 // pred_region
    _
  $region33: #{vit_forward.1} parent=0 // pred_fallthru
    _
  %v29 = vlaneseq
  %v30 = vshrl.u32 %v29, 7
  %v31 = vadd.s32 %v30, 8
  %v32 = vlaneseq
  %v33 = vand.u32 %v32, 127
  %v34 = vshra.s32 %v30, 3
  %v35 = vshra.s32 %v31, 3
  %v36 = vshra.s32 %v33, 6
  %vm37 = vcmp.eq.s32.totalorder %v34, %v36
  %vm38 = vcmp.eq.s32.totalorder %v35, %v36
  %v39 = vand.u32 %v30, 7
  %v40 = vand.u32 %v31, 7
  %v41 = vand.u32 %v33, 7
  %vm42 = vcmp.eq.s32.totalorder %v39, %v41
  %vm43 = vcmp.eq.s32.totalorder %v40, %v41
  %vm44 = vmand %vm37, %vm42
  %vm45 = vmand %vm38, %vm43
  %v46 = vsel %vm44, 1.0, 0.0
  %v47 = vsel %vm45, 1.0, 0.0
  %vm48 = vcmp.lt.s32.totalorder %v41, 5
  %vm49 = vmand %vm37, %vm48
  %vm50 = vmand %vm38, %vm48
  %v51 = vsel %vm49, 0.0, -1e+30
  %v52 = vsel %vm50, 0.0, -1e+30
  %v53 = vadd.s32 %v30, 16
  %v54 = vadd.s32 %v30, 24
  %v55 = vadd.s32 %v30, 32
  %v56 = vadd.s32 %v30, 40
  %v57 = vadd.s32 %v30, 48
  %v58 = vadd.s32 %v30, 56
  %v59 = vshra.s32 %v53, 3
  %v60 = vshra.s32 %v54, 3
  %v61 = vshra.s32 %v55, 3
  %v62 = vshra.s32 %v56, 3
  %v63 = vshra.s32 %v57, 3
  %v64 = vshra.s32 %v58, 3
  %v65 = vshra.s32 %v33, 3
  %v66 = vand.u32 %v65, 7
  %vm67 = vcmp.eq.s32.totalorder %v34, %v66
  %vm68 = vcmp.eq.s32.totalorder %v35, %v66
  %vm69 = vcmp.eq.s32.totalorder %v59, %v66
  %vm70 = vcmp.eq.s32.totalorder %v60, %v66
  %vm71 = vcmp.eq.s32.totalorder %v61, %v66
  %vm72 = vcmp.eq.s32.totalorder %v62, %v66
  %vm73 = vcmp.eq.s32.totalorder %v63, %v66
  %vm74 = vcmp.eq.s32.totalorder %v64, %v66
  %v75 = vsel %vm67, 1.0, 0.0
  %v76 = vsel %vm68, 1.0, 0.0
  %v77 = vsel %vm69, 1.0, 0.0
  %v78 = vsel %vm70, 1.0, 0.0
  %v79 = vsel %vm71, 1.0, 0.0
  %v80 = vsel %vm72, 1.0, 0.0
  %v81 = vsel %vm73, 1.0, 0.0
  %v82 = vsel %vm74, 1.0, 0.0
  %v83 = vadd.s32 %v30, 64
  %v84 = vadd.s32 %v30, 72
  %v85 = vadd.s32 %v30, 80
  %v86 = vadd.s32 %v30, 88
  %v87 = vadd.s32 %v30, 96
  %v88 = vadd.s32 %v30, 104
  %v89 = vadd.s32 %v30, 112
  %v90 = vadd.s32 %v30, 120
  %v91 = vshra.s32 %v30, 6
  %v92 = vshra.s32 %v31, 6
  %v93 = vshra.s32 %v53, 6
  %v94 = vshra.s32 %v54, 6
  %v95 = vshra.s32 %v55, 6
  %v96 = vshra.s32 %v56, 6
  %v97 = vshra.s32 %v57, 6
  %v98 = vshra.s32 %v58, 6
  %v99 = vshra.s32 %v83, 6
  %v100 = vshra.s32 %v84, 6
  %v101 = vshra.s32 %v85, 6
  %v102 = vshra.s32 %v86, 6
  %v103 = vshra.s32 %v87, 6
  %v104 = vshra.s32 %v88, 6
  %v105 = vshra.s32 %v89, 6
  %v106 = vshra.s32 %v90, 6
  %vm107 = vcmp.eq.s32.totalorder %v91, %v65
  %vm108 = vcmp.eq.s32.totalorder %v92, %v65
  %vm109 = vcmp.eq.s32.totalorder %v93, %v65
  %vm110 = vcmp.eq.s32.totalorder %v94, %v65
  %vm111 = vcmp.eq.s32.totalorder %v95, %v65
  %vm112 = vcmp.eq.s32.totalorder %v96, %v65
  %vm113 = vcmp.eq.s32.totalorder %v97, %v65
  %vm114 = vcmp.eq.s32.totalorder %v98, %v65
  %vm115 = vcmp.eq.s32.totalorder %v99, %v65
  %vm116 = vcmp.eq.s32.totalorder %v100, %v65
  %vm117 = vcmp.eq.s32.totalorder %v101, %v65
  %vm118 = vcmp.eq.s32.totalorder %v102, %v65
  %vm119 = vcmp.eq.s32.totalorder %v103, %v65
  %vm120 = vcmp.eq.s32.totalorder %v104, %v65
  %vm121 = vcmp.eq.s32.totalorder %v105, %v65
  %vm122 = vcmp.eq.s32.totalorder %v106, %v65
  %v123 = vand.u32 %v53, 7
  %v124 = vand.u32 %v54, 7
  %v125 = vand.u32 %v55, 7
  %v126 = vand.u32 %v56, 7
  %v127 = vand.u32 %v57, 7
  %v128 = vand.u32 %v58, 7
  %v129 = vand.u32 %v83, 7
  %v130 = vand.u32 %v84, 7
  %v131 = vand.u32 %v85, 7
  %v132 = vand.u32 %v86, 7
  %v133 = vand.u32 %v87, 7
  %v134 = vand.u32 %v88, 7
  %v135 = vand.u32 %v89, 7
  %v136 = vand.u32 %v90, 7
  %vm137 = vcmp.eq.s32.totalorder %v123, %v41
  %vm138 = vcmp.eq.s32.totalorder %v124, %v41
  %vm139 = vcmp.eq.s32.totalorder %v125, %v41
  %vm140 = vcmp.eq.s32.totalorder %v126, %v41
  %vm141 = vcmp.eq.s32.totalorder %v127, %v41
  %vm142 = vcmp.eq.s32.totalorder %v128, %v41
  %vm143 = vcmp.eq.s32.totalorder %v129, %v41
  %vm144 = vcmp.eq.s32.totalorder %v130, %v41
  %vm145 = vcmp.eq.s32.totalorder %v131, %v41
  %vm146 = vcmp.eq.s32.totalorder %v132, %v41
  %vm147 = vcmp.eq.s32.totalorder %v133, %v41
  %vm148 = vcmp.eq.s32.totalorder %v134, %v41
  %vm149 = vcmp.eq.s32.totalorder %v135, %v41
  %vm150 = vcmp.eq.s32.totalorder %v136, %v41
  %vm151 = vmand %vm107, %vm42
  %vm152 = vmand %vm108, %vm43
  %vm153 = vmand %vm109, %vm137
  %vm154 = vmand %vm110, %vm138
  %vm155 = vmand %vm111, %vm139
  %vm156 = vmand %vm112, %vm140
  %vm157 = vmand %vm113, %vm141
  %vm158 = vmand %vm114, %vm142
  %vm159 = vmand %vm115, %vm143
  %vm160 = vmand %vm116, %vm144
  %vm161 = vmand %vm117, %vm145
  %vm162 = vmand %vm118, %vm146
  %vm163 = vmand %vm119, %vm147
  %vm164 = vmand %vm120, %vm148
  %vm165 = vmand %vm121, %vm149
  %vm166 = vmand %vm122, %vm150
  %v167 = vsel %vm151, 1.0, 0.0
  %v168 = vsel %vm152, 1.0, 0.0
  %v169 = vsel %vm153, 1.0, 0.0
  %v170 = vsel %vm154, 1.0, 0.0
  %v171 = vsel %vm155, 1.0, 0.0
  %v172 = vsel %vm156, 1.0, 0.0
  %v173 = vsel %vm157, 1.0, 0.0
  %v174 = vsel %vm158, 1.0, 0.0
  %v175 = vsel %vm159, 1.0, 0.0
  %v176 = vsel %vm160, 1.0, 0.0
  %v177 = vsel %vm161, 1.0, 0.0
  %v178 = vsel %vm162, 1.0, 0.0
  %v179 = vsel %vm163, 1.0, 0.0
  %v180 = vsel %vm164, 1.0, 0.0
  %v181 = vsel %vm165, 1.0, 0.0
  %v182 = vsel %vm166, 1.0, 0.0
  %v183 = vshra.s32 %v83, 3
  %v184 = vshra.s32 %v84, 3
  %v185 = vshra.s32 %v85, 3
  %v186 = vshra.s32 %v86, 3
  %v187 = vshra.s32 %v87, 3
  %v188 = vshra.s32 %v88, 3
  %v189 = vshra.s32 %v89, 3
  %v190 = vshra.s32 %v90, 3
  %v191 = vand.u32 %v34, 7
  %v192 = vand.u32 %v35, 7
  %v193 = vand.u32 %v59, 7
  %v194 = vand.u32 %v60, 7
  %v195 = vand.u32 %v61, 7
  %v196 = vand.u32 %v62, 7
  %v197 = vand.u32 %v63, 7
  %v198 = vand.u32 %v64, 7
  %v199 = vand.u32 %v183, 7
  %v200 = vand.u32 %v184, 7
  %v201 = vand.u32 %v185, 7
  %v202 = vand.u32 %v186, 7
  %v203 = vand.u32 %v187, 7
  %v204 = vand.u32 %v188, 7
  %v205 = vand.u32 %v189, 7
  %v206 = vand.u32 %v190, 7
  %vm207 = vcmp.eq.s32.totalorder %v191, %v65
  %vm208 = vcmp.eq.s32.totalorder %v192, %v65
  %vm209 = vcmp.eq.s32.totalorder %v193, %v65
  %vm210 = vcmp.eq.s32.totalorder %v194, %v65
  %vm211 = vcmp.eq.s32.totalorder %v195, %v65
  %vm212 = vcmp.eq.s32.totalorder %v196, %v65
  %vm213 = vcmp.eq.s32.totalorder %v197, %v65
  %vm214 = vcmp.eq.s32.totalorder %v198, %v65
  %vm215 = vcmp.eq.s32.totalorder %v199, %v65
  %vm216 = vcmp.eq.s32.totalorder %v200, %v65
  %vm217 = vcmp.eq.s32.totalorder %v201, %v65
  %vm218 = vcmp.eq.s32.totalorder %v202, %v65
  %vm219 = vcmp.eq.s32.totalorder %v203, %v65
  %vm220 = vcmp.eq.s32.totalorder %v204, %v65
  %vm221 = vcmp.eq.s32.totalorder %v205, %v65
  %vm222 = vcmp.eq.s32.totalorder %v206, %v65
  %v223 = vsel %vm207, 1.0, 0.0
  %v224 = vsel %vm208, 1.0, 0.0
  %v225 = vsel %vm209, 1.0, 0.0
  %v226 = vsel %vm210, 1.0, 0.0
  %v227 = vsel %vm211, 1.0, 0.0
  %v228 = vsel %vm212, 1.0, 0.0
  %v229 = vsel %vm213, 1.0, 0.0
  %v230 = vsel %vm214, 1.0, 0.0
  %v231 = vsel %vm215, 1.0, 0.0
  %v232 = vsel %vm216, 1.0, 0.0
  %v233 = vsel %vm217, 1.0, 0.0
  %v234 = vsel %vm218, 1.0, 0.0
  %v235 = vsel %vm219, 1.0, 0.0
  %v236 = vsel %vm220, 1.0, 0.0
  %v237 = vsel %vm221, 1.0, 0.0
  %v238 = vsel %vm222, 1.0, 0.0
  %vm239 = vcmp.eq.s32.totalorder %v34, %v65
  %vm240 = vcmp.eq.s32.totalorder %v35, %v65
  %vm241 = vcmp.eq.s32.totalorder %v59, %v65
  %vm242 = vcmp.eq.s32.totalorder %v60, %v65
  %vm243 = vcmp.eq.s32.totalorder %v61, %v65
  %vm244 = vcmp.eq.s32.totalorder %v62, %v65
  %vm245 = vcmp.eq.s32.totalorder %v63, %v65
  %vm246 = vcmp.eq.s32.totalorder %v64, %v65
  %vm247 = vcmp.eq.s32.totalorder %v183, %v65
  %vm248 = vcmp.eq.s32.totalorder %v184, %v65
  %vm249 = vcmp.eq.s32.totalorder %v185, %v65
  %vm250 = vcmp.eq.s32.totalorder %v186, %v65
  %vm251 = vcmp.eq.s32.totalorder %v187, %v65
  %vm252 = vcmp.eq.s32.totalorder %v188, %v65
  %vm253 = vcmp.eq.s32.totalorder %v189, %v65
  %vm254 = vcmp.eq.s32.totalorder %v190, %v65
  %v255 = vsel %vm239, 1.0, 0.0
  %v256 = vsel %vm240, 1.0, 0.0
  %v257 = vsel %vm241, 1.0, 0.0
  %v258 = vsel %vm242, 1.0, 0.0
  %v259 = vsel %vm243, 1.0, 0.0
  %v260 = vsel %vm244, 1.0, 0.0
  %v261 = vsel %vm245, 1.0, 0.0
  %v262 = vsel %vm246, 1.0, 0.0
  %v263 = vsel %vm247, 1.0, 0.0
  %v264 = vsel %vm248, 1.0, 0.0
  %v265 = vsel %vm249, 1.0, 0.0
  %v266 = vsel %vm250, 1.0, 0.0
  %v267 = vsel %vm251, 1.0, 0.0
  %v268 = vsel %vm252, 1.0, 0.0
  %v269 = vsel %vm253, 1.0, 0.0
  %v270 = vsel %vm254, 1.0, 0.0
  %v271 = vld [vmem:[%s0] sm:$0xff]
  %v272 = vld [vmem:[%s0 + $0x8] sm:$0xff]
  %v273 = vld [vmem:[%s0 + $0x10] sm:$0xff]
  %v274 = vld [vmem:[%s0 + $0x18] sm:$0xff]
  %v275 = vld [vmem:[%s2] sm:$0xff]
  %v276 = vld [vmem:[%s2 + $0x8] sm:$0xff]
  %v277 = vld [vmem:[%s2 + $0x10] sm:$0xff]
  %v278 = vld [vmem:[%s2 + $0x18] sm:$0xff]
  %v279 = vld [vmem:[%s2 + $0x20] sm:$0xff]
  %v280 = vld [vmem:[%s2 + $0x28] sm:$0xff]
  %v281 = vld [vmem:[%s2 + $0x30] sm:$0xff]
  %v282 = vld [vmem:[%s2 + $0x38] sm:$0xff]
  %v283 = vld [vmem:[%s2 + $0x40] sm:$0xff]
  %v284 = vld [vmem:[%s2 + $0x48] sm:$0xff]
  %v285 = vld [vmem:[%s2 + $0x50] sm:$0xff]
  %v286 = vld [vmem:[%s2 + $0x58] sm:$0xff]
  %v287 = vld [vmem:[%s2 + $0x60] sm:$0xff]
  %v288 = vld [vmem:[%s2 + $0x68] sm:$0xff]
  %v289 = vld [vmem:[%s2 + $0x70] sm:$0xff]
  %v290 = vld [vmem:[%s2 + $0x78] sm:$0xff]
  %v291 = vld [vmem:[%s2 + $0x80] sm:$0xff]
  %v292 = vld [vmem:[%s2 + $0x88] sm:$0xff]
  %v293 = vld [vmem:[%s2 + $0x90] sm:$0xff]
  %v294 = vld [vmem:[%s2 + $0x98] sm:$0xff]
  %v295 = vld [vmem:[%s2 + $0xa0] sm:$0xff]
  %v296 = vld [vmem:[%s2 + $0xa8] sm:$0xff]
  %v297 = vld [vmem:[%s2 + $0xb0] sm:$0xff]
  %v298 = vld [vmem:[%s2 + $0xb8] sm:$0xff]
  %v299 = vld [vmem:[%s1] sm:$0xff]
  %v300 = vld [vmem:[%s1 + $0x8] sm:$0xff]
  %vm301 = vcmask 523264
  %v303 = vsel %vm301, %v272, 0
  %v306 = vsel %vm301, %v274, 0
  %308 = vmatprep.subr.mxu0 0.0
  %309 = vmatpush1.msra.mxu0 %v275
  %310 = vmatprep.subr.mxu0 0.0
  %311 = vmatpush1.msra.mxu0 %v276
  %312 = vmatprep.subr.mxu0 0.0
  %313 = vmatpush1.msra.mxu0 %v277
  %314 = vmatprep.subr.mxu0 0.0
  %315 = vmatpush1.msra.mxu0 %v278
  %316 = vmatprep.subr.mxu0 0.0
  %317 = vmatpush1.msra.mxu0 %v279
  %318 = vmatprep.subr.mxu0 0.0
  %319 = vmatpush1.msra.mxu0 %v280
  %320 = vmatprep.subr.mxu0 0.0
  %321 = vmatpush1.msra.mxu0 %v281
  %322 = vmatprep.subr.mxu0 0.0
  %323 = vmatpush1.msra.mxu0 %v282
  %324 = vmatprep.subr.mxu0 0.0
  %325 = vmatpush1.msra.mxu0 %v283
  %326 = vmatprep.subr.mxu0 0.0
  %327 = vmatpush1.msra.mxu0 %v284
  %328 = vmatprep.subr.mxu0 0.0
  %329 = vmatpush1.msra.mxu0 %v285
  %330 = vmatprep.subr.mxu0 0.0
  %331 = vmatpush1.msra.mxu0 %v286
  %332 = vmatprep.subr.mxu0 0.0
  %333 = vmatpush1.msra.mxu0 %v287
  %334 = vmatprep.subr.mxu0 0.0
  %335 = vmatpush1.msra.mxu0 %v288
  %336 = vmatprep.subr.mxu0 0.0
  %337 = vmatpush1.msra.mxu0 %v289
  %338 = vmatprep.subr.mxu0 0.0
  %339 = vmatpush1.msra.mxu0 %v290
  %340 = vmatprep.subr.mxu0 0.0
  %341 = vmatpush1.msra.mxu0 %v291
  %342 = vmatprep.subr.mxu0 0.0
  %343 = vmatpush1.msra.mxu0 %v292
  %344 = vmatprep.subr.mxu0 0.0
  %345 = vmatpush1.msra.mxu0 %v293
  %346 = vmatprep.subr.mxu0 0.0
  %347 = vmatpush1.msra.mxu0 %v294
  %348 = vmatprep.subr.mxu0 0.0
  %349 = vmatpush1.msra.mxu0 %v295
  %350 = vmatprep.subr.mxu0 0.0
  %351 = vmatpush1.msra.mxu0 %v296
  %352 = vmatprep.subr.mxu0 0.0
  %353 = vmatpush1.msra.mxu0 %v297
  %354 = vmatprep.subr.mxu0 0.0
  %355 = vmatpush1.msra.mxu0 %v298
  %356 = vmatprep.subr.mxu0 0.0
  %357 = vmatpush1.msra.mxu0 0.0
  %358 = vmatprep.subr.mxu0 0.0
  %359 = vmatpush1.msra.mxu0 0.0
  %360 = vmatprep.subr.mxu0 0.0
  %361 = vmatpush1.msra.mxu0 0.0
  %362 = vmatprep.subr.mxu0 0.0
  %363 = vmatpush1.msra.mxu0 0.0
  %364 = vmatprep.subr.mxu0 0.0
  %365 = vmatpush1.msra.mxu0 0.0
  %366 = vmatprep.subr.mxu0 0.0
  %367 = vmatpush1.msra.mxu0 0.0
  %368 = vmatprep.subr.mxu0 0.0
  %369 = vmatpush1.msra.mxu0 0.0
  %370 = vmatprep.subr.mxu0 0.0
  %371 = vmatpush1.msra.mxu0 0.0
  %372 = vmatprep.mubr.f32.mxu0 %v303
  %373 = vmatmul.mubr.f32.gmra.mrb[0].mxu0 %v271
  %v374 = vpop.f32.mrb[0].mxu0
  %v375 = vadd.f32 %v299, %v374
  %v376 = vpop.f32.mrb[0].mxu0
  %377 = vmatprep.mubr.f32.mxu0 %v306
  %378 = vmatmul.mubr.f32.gmra.mrb[0].mxu0 %v273
  %v379 = vpop.f32.mrb[0].mxu0
  %v380 = vadd.f32 %v300, %v379
  %v381 = vpop.f32.mrb[0].mxu0
  %382 = vdwg.mxu0
  %v383 = vld [vmem:[%s3] sm:$0xff]
  %v384 = vld [vmem:[%s3 + $0x8] sm:$0xff]
  %v385 = vld [vmem:[%s3 + $0x10] sm:$0xff]
  %v386 = vld [vmem:[%s3 + $0x18] sm:$0xff]
  %v387 = vld [vmem:[%s3 + $0x20] sm:$0xff]
  %v388 = vld [vmem:[%s3 + $0x28] sm:$0xff]
  %v389 = vld [vmem:[%s3 + $0x30] sm:$0xff]
  %v390 = vld [vmem:[%s3 + $0x38] sm:$0xff]
  %v391 = vld [vmem:[%s3 + $0x40] sm:$0xff]
  %v392 = vld [vmem:[%s3 + $0x48] sm:$0xff]
  %v393 = vld [vmem:[%s3 + $0x50] sm:$0xff]
  %v394 = vld [vmem:[%s3 + $0x58] sm:$0xff]
  %v395 = vld [vmem:[%s3 + $0x60] sm:$0xff]
  %v396 = vld [vmem:[%s3 + $0x68] sm:$0xff]
  %v397 = vld [vmem:[%s3 + $0x70] sm:$0xff]
  %v398 = vld [vmem:[%s3 + $0x78] sm:$0xff]
  %v399 = vld [vmem:[%s4] sm:$0xff]
  %v400 = vld [vmem:[%s4 + $0x8] sm:$0xff]
  %v401 = vld [vmem:[%s4 + $0x10] sm:$0xff]
  %v402 = vld [vmem:[%s4 + $0x18] sm:$0xff]
  %v403 = vld [vmem:[%s4 + $0x20] sm:$0xff]
  %v404 = vld [vmem:[%s4 + $0x28] sm:$0xff]
  %v405 = vld [vmem:[%s4 + $0x30] sm:$0xff]
  %v406 = vld [vmem:[%s4 + $0x38] sm:$0xff]
  %v407 = vld [vmem:[%s5] sm:$0xff]
  %v408 = vld [vmem:[%s5 + $0x8] sm:$0xff]
  %v409 = vld [vmem:[%s5 + $0x10] sm:$0xff]
  %v410 = vld [vmem:[%s5 + $0x18] sm:$0xff]
  %v411 = vld [vmem:[%s5 + $0x20] sm:$0xff]
  %v412 = vld [vmem:[%s5 + $0x28] sm:$0xff]
  %v413 = vld [vmem:[%s5 + $0x30] sm:$0xff]
  %v414 = vld [vmem:[%s5 + $0x38] sm:$0xff]
  %v415 = vld [vmem:[%s5 + $0x40] sm:$0xff]
  %v416 = vld [vmem:[%s5 + $0x48] sm:$0xff]
  %v417 = vld [vmem:[%s5 + $0x50] sm:$0xff]
  %v418 = vld [vmem:[%s5 + $0x58] sm:$0xff]
  %v419 = vld [vmem:[%s5 + $0x60] sm:$0xff]
  %v420 = vld [vmem:[%s5 + $0x68] sm:$0xff]
  %v421 = vld [vmem:[%s5 + $0x70] sm:$0xff]
  %v422 = vld [vmem:[%s5 + $0x78] sm:$0xff]
  %v423 = vld [vmem:[%s6] sm:$0xff]
  %v424 = vld [vmem:[%s6 + $0x8] sm:$0xff]
  %v425 = vld [vmem:[%s6 + $0x10] sm:$0xff]
  %v426 = vld [vmem:[%s6 + $0x18] sm:$0xff]
  %v427 = vld [vmem:[%s6 + $0x20] sm:$0xff]
  %v428 = vld [vmem:[%s6 + $0x28] sm:$0xff]
  %v429 = vld [vmem:[%s6 + $0x30] sm:$0xff]
  %v430 = vld [vmem:[%s6 + $0x38] sm:$0xff]
  %v431 = vld [vmem:[%s6 + $0x40] sm:$0xff]
  %v432 = vld [vmem:[%s6 + $0x48] sm:$0xff]
  %v433 = vld [vmem:[%s6 + $0x50] sm:$0xff]
  %v434 = vld [vmem:[%s6 + $0x58] sm:$0xff]
  %v435 = vld [vmem:[%s6 + $0x60] sm:$0xff]
  %v436 = vld [vmem:[%s6 + $0x68] sm:$0xff]
  %v437 = vld [vmem:[%s6 + $0x70] sm:$0xff]
  %v438 = vld [vmem:[%s6 + $0x78] sm:$0xff]
  %v439 = vld [vmem:[%s6 + $0x80] sm:$0xff]
  %v440 = vld [vmem:[%s6 + $0x88] sm:$0xff]
  %v441 = vld [vmem:[%s6 + $0x90] sm:$0xff]
  %v442 = vld [vmem:[%s6 + $0x98] sm:$0xff]
  %v443 = vld [vmem:[%s6 + $0xa0] sm:$0xff]
  %v444 = vld [vmem:[%s6 + $0xa8] sm:$0xff]
  %v445 = vld [vmem:[%s6 + $0xb0] sm:$0xff]
  %v446 = vld [vmem:[%s6 + $0xb8] sm:$0xff]
  %v447 = vld [vmem:[%s6 + $0xc0] sm:$0xff]
  %v448 = vld [vmem:[%s6 + $0xc8] sm:$0xff]
  %v449 = vld [vmem:[%s6 + $0xd0] sm:$0xff]
  %v450 = vld [vmem:[%s6 + $0xd8] sm:$0xff]
  %v451 = vld [vmem:[%s6 + $0xe0] sm:$0xff]
  %v452 = vld [vmem:[%s6 + $0xe8] sm:$0xff]
  %v453 = vld [vmem:[%s6 + $0xf0] sm:$0xff]
  %v454 = vld [vmem:[%s6 + $0xf8] sm:$0xff]
  %v455 = vld [vmem:[%s7] sm:$0xff]
  %v456 = vld [vmem:[%s7 + $0x8] sm:$0xff]
  %v457 = vlaneseq
  %v458 = vshrl.u32 %v457, 7
  %v459 = vsub.s32 0, %v458
  %v460 = vrot.slane %v455, %v459
  %v461 = vlaneseq
  %v462 = vshrl.u32 %v461, 7
  %v463 = vsub.s32 0, %v462
  %v464 = vrot.slane %v456, %v463
  %v466 = vsel %vm301, %v375, 0
  %v469 = vsel %vm301, %v380, 0
  %471 = vmatprep.subr.mxu0 %v384
  %472 = vmatpush1.msra.mxu0 %v383
  %473 = vmatprep.subr.mxu0 %v386
  %474 = vmatpush1.msra.mxu0 %v385
  %475 = vmatprep.subr.mxu0 %v388
  %476 = vmatpush1.msra.mxu0 %v387
  %477 = vmatprep.subr.mxu0 %v390
  %478 = vmatpush1.msra.mxu0 %v389
  %479 = vmatprep.subr.mxu0 %v392
  %480 = vmatpush1.msra.mxu0 %v391
  %481 = vmatprep.subr.mxu0 %v394
  %482 = vmatpush1.msra.mxu0 %v393
  %483 = vmatprep.subr.mxu0 %v396
  %484 = vmatpush1.msra.mxu0 %v395
  %485 = vmatprep.subr.mxu0 %v398
  %486 = vmatpush1.msra.mxu0 %v397
  %487 = vmatprep.subr.mxu0 0.0
  %488 = vmatpush1.msra.mxu0 0.0
  %489 = vmatprep.subr.mxu0 0.0
  %490 = vmatpush1.msra.mxu0 0.0
  %491 = vmatprep.subr.mxu0 0.0
  %492 = vmatpush1.msra.mxu0 0.0
  %493 = vmatprep.subr.mxu0 0.0
  %494 = vmatpush1.msra.mxu0 0.0
  %495 = vmatprep.subr.mxu0 0.0
  %496 = vmatpush1.msra.mxu0 0.0
  %497 = vmatprep.subr.mxu0 0.0
  %498 = vmatpush1.msra.mxu0 0.0
  %499 = vmatprep.subr.mxu0 0.0
  %500 = vmatpush1.msra.mxu0 0.0
  %501 = vmatprep.subr.mxu0 0.0
  %502 = vmatpush1.msra.mxu0 0.0
  %503 = vmatprep.subr.mxu0 0.0
  %504 = vmatpush1.msra.mxu0 0.0
  %505 = vmatprep.subr.mxu0 0.0
  %506 = vmatpush1.msra.mxu0 0.0
  %507 = vmatprep.subr.mxu0 0.0
  %508 = vmatpush1.msra.mxu0 0.0
  %509 = vmatprep.subr.mxu0 0.0
  %510 = vmatpush1.msra.mxu0 0.0
  %511 = vmatprep.subr.mxu0 0.0
  %512 = vmatpush1.msra.mxu0 0.0
  %513 = vmatprep.subr.mxu0 0.0
  %514 = vmatpush1.msra.mxu0 0.0
  %515 = vmatprep.subr.mxu0 0.0
  %516 = vmatpush1.msra.mxu0 0.0
  %517 = vmatprep.subr.mxu0 0.0
  %518 = vmatpush1.msra.mxu0 0.0
  %519 = vmatprep.subr.mxu0 0.0
  %520 = vmatpush1.msra.mxu0 0.0
  %521 = vmatprep.subr.mxu0 0.0
  %522 = vmatpush1.msra.mxu0 0.0
  %523 = vmatprep.subr.mxu0 0.0
  %524 = vmatpush1.msra.mxu0 0.0
  %525 = vmatprep.subr.mxu0 0.0
  %526 = vmatpush1.msra.mxu0 0.0
  %527 = vmatprep.subr.mxu0 0.0
  %528 = vmatpush1.msra.mxu0 0.0
  %529 = vmatprep.subr.mxu0 0.0
  %530 = vmatpush1.msra.mxu0 0.0
  %531 = vmatprep.subr.mxu0 0.0
  %532 = vmatpush1.msra.mxu0 0.0
  %533 = vmatprep.subr.mxu0 0.0
  %534 = vmatpush1.msra.mxu0 0.0
  %535 = vmatprep.mubr.f32.mxu0 0.0
  %536 = vmatmul.mubr.f32.gmra.mrb[0].mxu0 %v466
  %v537 = vpop.f32.mrb[0].mxu0
  %v538 = vadd.f32 %v460, %v537
  %v539 = vpop.f32.mrb[0].mxu0
  %v540 = vadd.f32 %v464, %v539
  %541 = vmatprep.mubr.f32.mxu0 0.0
  %542 = vmatmul.mubr.f32.gmra.mrb[0].mxu0 %v469
  %v543 = vpop.f32.mrb[0].mxu0
  %v544 = vadd.f32 %v460, %v543
  %v545 = vpop.f32.mrb[0].mxu0
  %v546 = vadd.f32 %v464, %v545
  %547 = vdwg.mxu0
  %550 = vrot.lane.b32.xlu0 %v538, 64
  %v551 = vpop.permute.xlu0 %550
  %552 = vrot.lane.b32.xlu0 %v544, 64
  %v553 = vpop.permute.xlu0 %552
  %556 = vxpose.xlu0.b32.start [1/16] %v551, 128
  %557 = vxpose.xlu0.b32.cont [2/16] %v553, 128
  %558 = vxpose.xlu0.b32.cont [3/16] 0.0, 128
  %559 = vxpose.xlu0.b32.cont [4/16] 0.0, 128
  %560 = vxpose.xlu0.b32.cont [5/16] 0.0, 128
  %561 = vxpose.xlu0.b32.cont [6/16] 0.0, 128
  %562 = vxpose.xlu0.b32.cont [7/16] 0.0, 128
  %563 = vxpose.xlu0.b32.cont [8/16] 0.0, 128
  %564 = vxpose.xlu0.b32.cont [9/16] 0.0, 128
  %565 = vxpose.xlu0.b32.cont [10/16] 0.0, 128
  %566 = vxpose.xlu0.b32.cont [11/16] 0.0, 128
  %567 = vxpose.xlu0.b32.cont [12/16] 0.0, 128
  %568 = vxpose.xlu0.b32.cont [13/16] 0.0, 128
  %569 = vxpose.xlu0.b32.cont [14/16] 0.0, 128
  %570 = vxpose.xlu0.b32.cont [15/16] 0.0, 128
  %571 = vxpose.xlu0.b32.end [16/16] 0.0, 128
  %v572 = vpop.trf.xlu0
  %v573 = vpop.trf.xlu0
  %v574 = vpop.trf.xlu0
  %v575 = vpop.trf.xlu0
  %v576 = vpop.trf.xlu0
  %v577 = vpop.trf.xlu0
  %v578 = vpop.trf.xlu0
  %v579 = vpop.trf.xlu0
  %v580 = vpop.trf.xlu0
  %v581 = vpop.trf.xlu0
  %v582 = vpop.trf.xlu0
  %v583 = vpop.trf.xlu0
  %v584 = vpop.trf.xlu0
  %v585 = vpop.trf.xlu0
  %v586 = vpop.trf.xlu0
  %v587 = vpop.trf.xlu0
  %vm588 = vcmask 130048
  %v590 = vsel %vm588, %v572, 0
  %v593 = vsel %vm588, %v573, 0
  %v596 = vsel %vm588, %v574, 0
  %v599 = vsel %vm588, %v575, 0
  %v602 = vsel %vm588, %v576, 0
  %v605 = vsel %vm588, %v577, 0
  %v608 = vsel %vm588, %v578, 0
  %v611 = vsel %vm588, %v579, 0
  %613 = vmatprep.subr.mxu0 0.0
  %614 = vmatpush1.msra.mxu0 %v46
  %615 = vmatprep.subr.mxu0 0.0
  %616 = vmatpush1.msra.mxu0 %v47
  %617 = vmatprep.subr.mxu0 0.0
  %618 = vmatpush1.msra.mxu0 0.0
  %619 = vmatprep.subr.mxu0 0.0
  %620 = vmatpush1.msra.mxu0 0.0
  %621 = vmatprep.subr.mxu0 0.0
  %622 = vmatpush1.msra.mxu0 0.0
  %623 = vmatprep.subr.mxu0 0.0
  %624 = vmatpush1.msra.mxu0 0.0
  %625 = vmatprep.subr.mxu0 0.0
  %626 = vmatpush1.msra.mxu0 0.0
  %627 = vmatprep.subr.mxu0 0.0
  %628 = vmatpush1.msra.mxu0 0.0
  %629 = vmatprep.subr.mxu0 0.0
  %630 = vmatpush1.msra.mxu0 0.0
  %631 = vmatprep.subr.mxu0 0.0
  %632 = vmatpush1.msra.mxu0 0.0
  %633 = vmatprep.subr.mxu0 0.0
  %634 = vmatpush1.msra.mxu0 0.0
  %635 = vmatprep.subr.mxu0 0.0
  %636 = vmatpush1.msra.mxu0 0.0
  %637 = vmatprep.subr.mxu0 0.0
  %638 = vmatpush1.msra.mxu0 0.0
  %639 = vmatprep.subr.mxu0 0.0
  %640 = vmatpush1.msra.mxu0 0.0
  %641 = vmatprep.subr.mxu0 0.0
  %642 = vmatpush1.msra.mxu0 0.0
  %643 = vmatprep.subr.mxu0 0.0
  %644 = vmatpush1.msra.mxu0 0.0
  %645 = vmatprep.subr.mxu0 0.0
  %646 = vmatpush1.msra.mxu0 0.0
  %647 = vmatprep.subr.mxu0 0.0
  %648 = vmatpush1.msra.mxu0 0.0
  %649 = vmatprep.subr.mxu0 0.0
  %650 = vmatpush1.msra.mxu0 0.0
  %651 = vmatprep.subr.mxu0 0.0
  %652 = vmatpush1.msra.mxu0 0.0
  %653 = vmatprep.subr.mxu0 0.0
  %654 = vmatpush1.msra.mxu0 0.0
  %655 = vmatprep.subr.mxu0 0.0
  %656 = vmatpush1.msra.mxu0 0.0
  %657 = vmatprep.subr.mxu0 0.0
  %658 = vmatpush1.msra.mxu0 0.0
  %659 = vmatprep.subr.mxu0 0.0
  %660 = vmatpush1.msra.mxu0 0.0
  %661 = vmatprep.subr.mxu0 0.0
  %662 = vmatpush1.msra.mxu0 0.0
  %663 = vmatprep.subr.mxu0 0.0
  %664 = vmatpush1.msra.mxu0 0.0
  %665 = vmatprep.subr.mxu0 0.0
  %666 = vmatpush1.msra.mxu0 0.0
  %667 = vmatprep.subr.mxu0 0.0
  %668 = vmatpush1.msra.mxu0 0.0
  %669 = vmatprep.subr.mxu0 0.0
  %670 = vmatpush1.msra.mxu0 0.0
  %671 = vmatprep.subr.mxu0 0.0
  %672 = vmatpush1.msra.mxu0 0.0
  %673 = vmatprep.subr.mxu0 0.0
  %674 = vmatpush1.msra.mxu0 0.0
  %675 = vmatprep.subr.mxu0 0.0
  %676 = vmatpush1.msra.mxu0 0.0
  %677 = vmatprep.mubr.f32.mxu0 0.0
  %678 = vmatmul.mubr.f32.gmra.mrb[0].mxu0 %v590
  %v679 = vpop.f32.mrb[0].mxu0
  %v680 = vadd.f32 0.0, %v679
  %v681 = vpop.f32.mrb[0].mxu0
  %682 = vmatprep.mubr.f32.mxu0 0.0
  %683 = vmatmul.mubr.f32.gmra.mrb[0].mxu0 %v593
  %v684 = vpop.f32.mrb[0].mxu0
  %v685 = vadd.f32 0.0, %v684
  %v686 = vpop.f32.mrb[0].mxu0
  %687 = vmatprep.mubr.f32.mxu0 0.0
  %688 = vmatmul.mubr.f32.gmra.mrb[0].mxu0 %v596
  %v689 = vpop.f32.mrb[0].mxu0
  %v690 = vadd.f32 0.0, %v689
  %v691 = vpop.f32.mrb[0].mxu0
  %692 = vmatprep.mubr.f32.mxu0 0.0
  %693 = vmatmul.mubr.f32.gmra.mrb[0].mxu0 %v599
  %v694 = vpop.f32.mrb[0].mxu0
  %v695 = vadd.f32 0.0, %v694
  %v696 = vpop.f32.mrb[0].mxu0
  %697 = vmatprep.mubr.f32.mxu0 0.0
  %698 = vmatmul.mubr.f32.gmra.mrb[0].mxu0 %v602
  %v699 = vpop.f32.mrb[0].mxu0
  %v700 = vadd.f32 0.0, %v699
  %v701 = vpop.f32.mrb[0].mxu0
  %702 = vmatprep.mubr.f32.mxu0 0.0
  %703 = vmatmul.mubr.f32.gmra.mrb[0].mxu0 %v605
  %v704 = vpop.f32.mrb[0].mxu0
  %v705 = vadd.f32 0.0, %v704
  %v706 = vpop.f32.mrb[0].mxu0
  %707 = vmatprep.mubr.f32.mxu0 0.0
  %708 = vmatmul.mubr.f32.gmra.mrb[0].mxu0 %v608
  %v709 = vpop.f32.mrb[0].mxu0
  %v710 = vadd.f32 0.0, %v709
  %v711 = vpop.f32.mrb[0].mxu0
  %712 = vmatprep.mubr.f32.mxu0 0.0
  %713 = vmatmul.mubr.f32.gmra.mrb[0].mxu0 %v611
  %v714 = vpop.f32.mrb[0].mxu0
  %v715 = vadd.f32 0.0, %v714
  %v716 = vpop.f32.mrb[0].mxu0
  %717 = vdwg.mxu0
  %v718 = vmul.f32 %v680, %v75
  %v719 = vmul.f32 %v685, %v76
  %v720 = vmul.f32 %v690, %v77
  %v721 = vmul.f32 %v695, %v78
  %v722 = vmul.f32 %v700, %v79
  %v723 = vmul.f32 %v705, %v80
  %v724 = vmul.f32 %v710, %v81
  %v725 = vmul.f32 %v715, %v82
  %v726 = vsel %vm301, %v538, 0
  %v728 = vsel %vm301, %v544, 0
  %730 = vmatprep.subr.mxu0 0.0
  %731 = vmatpush1.msra.mxu0 %v718
  %732 = vmatprep.subr.mxu0 0.0
  %733 = vmatpush1.msra.mxu0 %v719
  %734 = vmatprep.subr.mxu0 0.0
  %735 = vmatpush1.msra.mxu0 %v720
  %736 = vmatprep.subr.mxu0 0.0
  %737 = vmatpush1.msra.mxu0 %v721
  %738 = vmatprep.subr.mxu0 0.0
  %739 = vmatpush1.msra.mxu0 %v722
  %740 = vmatprep.subr.mxu0 0.0
  %741 = vmatpush1.msra.mxu0 %v723
  %742 = vmatprep.subr.mxu0 0.0
  %743 = vmatpush1.msra.mxu0 %v724
  %744 = vmatprep.subr.mxu0 0.0
  %745 = vmatpush1.msra.mxu0 %v725
  %746 = vmatprep.subr.mxu0 0.0
  %747 = vmatpush1.msra.mxu0 0.0
  %748 = vmatprep.subr.mxu0 0.0
  %749 = vmatpush1.msra.mxu0 0.0
  %750 = vmatprep.subr.mxu0 0.0
  %751 = vmatpush1.msra.mxu0 0.0
  %752 = vmatprep.subr.mxu0 0.0
  %753 = vmatpush1.msra.mxu0 0.0
  %754 = vmatprep.subr.mxu0 0.0
  %755 = vmatpush1.msra.mxu0 0.0
  %756 = vmatprep.subr.mxu0 0.0
  %757 = vmatpush1.msra.mxu0 0.0
  %758 = vmatprep.subr.mxu0 0.0
  %759 = vmatpush1.msra.mxu0 0.0
  %760 = vmatprep.subr.mxu0 0.0
  %761 = vmatpush1.msra.mxu0 0.0
  %762 = vmatprep.subr.mxu0 0.0
  %763 = vmatpush1.msra.mxu0 0.0
  %764 = vmatprep.subr.mxu0 0.0
  %765 = vmatpush1.msra.mxu0 0.0
  %766 = vmatprep.subr.mxu0 0.0
  %767 = vmatpush1.msra.mxu0 0.0
  %768 = vmatprep.subr.mxu0 0.0
  %769 = vmatpush1.msra.mxu0 0.0
  %770 = vmatprep.subr.mxu0 0.0
  %771 = vmatpush1.msra.mxu0 0.0
  %772 = vmatprep.subr.mxu0 0.0
  %773 = vmatpush1.msra.mxu0 0.0
  %774 = vmatprep.subr.mxu0 0.0
  %775 = vmatpush1.msra.mxu0 0.0
  %776 = vmatprep.subr.mxu0 0.0
  %777 = vmatpush1.msra.mxu0 0.0
  %778 = vmatprep.subr.mxu0 0.0
  %779 = vmatpush1.msra.mxu0 0.0
  %780 = vmatprep.subr.mxu0 0.0
  %781 = vmatpush1.msra.mxu0 0.0
  %782 = vmatprep.subr.mxu0 0.0
  %783 = vmatpush1.msra.mxu0 0.0
  %784 = vmatprep.subr.mxu0 0.0
  %785 = vmatpush1.msra.mxu0 0.0
  %786 = vmatprep.subr.mxu0 0.0
  %787 = vmatpush1.msra.mxu0 0.0
  %788 = vmatprep.subr.mxu0 0.0
  %789 = vmatpush1.msra.mxu0 0.0
  %790 = vmatprep.subr.mxu0 0.0
  %791 = vmatpush1.msra.mxu0 0.0
  %792 = vmatprep.subr.mxu0 0.0
  %793 = vmatpush1.msra.mxu0 0.0
  %794 = vmatprep.mubr.f32.mxu0 0.0
  %795 = vmatmul.mubr.f32.gmra.mrb[0].mxu0 %v726
  %v796 = vpop.f32.mrb[0].mxu0
  %v797 = vadd.f32 0.0, %v796
  %v798 = vpop.f32.mrb[0].mxu0
  %799 = vmatprep.mubr.f32.mxu0 0.0
  %800 = vmatmul.mubr.f32.gmra.mrb[0].mxu0 %v728
  %v801 = vpop.f32.mrb[0].mxu0
  %v802 = vadd.f32 0.0, %v801
  %v803 = vpop.f32.mrb[0].mxu0
  %804 = vdwg.mxu0
  %v805 = vmul.f32 %v797, 0.35355338
  %v806 = vmul.f32 %v802, 0.35355338
  %v807 = vadd.f32 %v805, %v51
  %v808 = vadd.f32 %v806, %v52
  %809 = vmax.xlane.f32.xlu0 %v807
  %v810 = vpop.xlane.xlu0 %809
  %811 = vmax.xlane.f32.xlu0 %v808
  %v812 = vpop.xlane.xlu0 %811
  %v813 = vsub.f32 %v807, %v810
  %v814 = vsub.f32 %v808, %v812
  %v815 = vmul.f32 %v813, 1.442695
  %v816 = vpow.pop %v815
  %v817 = vmul.f32 %v814, 1.442695
  %v818 = vpow.pop %v817
  %819 = vmatprep.subr.mxu0 0.0
  %820 = vmatpush1.msra.mxu0 %v255
  %821 = vmatprep.subr.mxu0 0.0
  %822 = vmatpush1.msra.mxu0 %v256
  %823 = vmatprep.subr.mxu0 0.0
  %824 = vmatpush1.msra.mxu0 %v257
  %825 = vmatprep.subr.mxu0 0.0
  %826 = vmatpush1.msra.mxu0 %v258
  %827 = vmatprep.subr.mxu0 0.0
  %828 = vmatpush1.msra.mxu0 %v259
  %829 = vmatprep.subr.mxu0 0.0
  %830 = vmatpush1.msra.mxu0 %v260
  %831 = vmatprep.subr.mxu0 0.0
  %832 = vmatpush1.msra.mxu0 %v261
  %833 = vmatprep.subr.mxu0 0.0
  %834 = vmatpush1.msra.mxu0 %v262
  %835 = vmatprep.subr.mxu0 0.0
  %836 = vmatpush1.msra.mxu0 %v263
  %837 = vmatprep.subr.mxu0 0.0
  %838 = vmatpush1.msra.mxu0 %v264
  %839 = vmatprep.subr.mxu0 0.0
  %840 = vmatpush1.msra.mxu0 %v265
  %841 = vmatprep.subr.mxu0 0.0
  %842 = vmatpush1.msra.mxu0 %v266
  %843 = vmatprep.subr.mxu0 0.0
  %844 = vmatpush1.msra.mxu0 %v267
  %845 = vmatprep.subr.mxu0 0.0
  %846 = vmatpush1.msra.mxu0 %v268
  %847 = vmatprep.subr.mxu0 0.0
  %848 = vmatpush1.msra.mxu0 %v269
  %849 = vmatprep.subr.mxu0 0.0
  %850 = vmatpush1.msra.mxu0 %v270
  %851 = vmatprep.subr.mxu0 0.0
  %852 = vmatpush1.msra.mxu0 0.0
  %853 = vmatprep.subr.mxu0 0.0
  %854 = vmatpush1.msra.mxu0 0.0
  %855 = vmatprep.subr.mxu0 0.0
  %856 = vmatpush1.msra.mxu0 0.0
  %857 = vmatprep.subr.mxu0 0.0
  %858 = vmatpush1.msra.mxu0 0.0
  %859 = vmatprep.subr.mxu0 0.0
  %860 = vmatpush1.msra.mxu0 0.0
  %861 = vmatprep.subr.mxu0 0.0
  %862 = vmatpush1.msra.mxu0 0.0
  %863 = vmatprep.subr.mxu0 0.0
  %864 = vmatpush1.msra.mxu0 0.0
  %865 = vmatprep.subr.mxu0 0.0
  %866 = vmatpush1.msra.mxu0 0.0
  %867 = vmatprep.subr.mxu0 0.0
  %868 = vmatpush1.msra.mxu0 0.0
  %869 = vmatprep.subr.mxu0 0.0
  %870 = vmatpush1.msra.mxu0 0.0
  %871 = vmatprep.subr.mxu0 0.0
  %872 = vmatpush1.msra.mxu0 0.0
  %873 = vmatprep.subr.mxu0 0.0
  %874 = vmatpush1.msra.mxu0 0.0
  %875 = vmatprep.subr.mxu0 0.0
  %876 = vmatpush1.msra.mxu0 0.0
  %877 = vmatprep.subr.mxu0 0.0
  %878 = vmatpush1.msra.mxu0 0.0
  %879 = vmatprep.subr.mxu0 0.0
  %880 = vmatpush1.msra.mxu0 0.0
  %881 = vmatprep.subr.mxu0 0.0
  %882 = vmatpush1.msra.mxu0 0.0
  %883 = vmatprep.mubr.f32.mxu0 0.0
  %884 = vmatmul.mubr.f32.gmra.mrb[0].mxu0 %v816
  %v885 = vpop.f32.mrb[0].mxu0
  %v886 = vadd.f32 1e-30, %v885
  %v887 = vpop.f32.mrb[0].mxu0
  %888 = vmatprep.mubr.f32.mxu0 0.0
  %889 = vmatmul.mubr.f32.gmra.mrb[0].mxu0 %v818
  %v890 = vpop.f32.mrb[0].mxu0
  %v891 = vadd.f32 1e-30, %v890
  %v892 = vpop.f32.mrb[0].mxu0
  %893 = vdwg.mxu0
  %v894 = vrcp.pop %v886
  %v895 = vrcp.pop %v891
  %v896 = vmul.f32 %v886, %v894
  %v897 = vmul.f32 %v891, %v895
  %v898 = vsub.f32 2.0, %v896
  %v899 = vsub.f32 2.0, %v897
  %v900 = vmul.f32 %v894, %v898
  %v901 = vmul.f32 %v895, %v899
  %v902 = vmul.f32 %v816, %v900
  %v903 = vmul.f32 %v818, %v901
  %v905 = vsel %vm588, %v167, 0
  %v908 = vsel %vm588, %v168, 0
  %v911 = vsel %vm588, %v169, 0
  %v914 = vsel %vm588, %v170, 0
  %v917 = vsel %vm588, %v171, 0
  %v920 = vsel %vm588, %v172, 0
  %v923 = vsel %vm588, %v173, 0
  %v926 = vsel %vm588, %v174, 0
  %v929 = vsel %vm588, %v175, 0
  %v932 = vsel %vm588, %v176, 0
  %v935 = vsel %vm588, %v177, 0
  %v938 = vsel %vm588, %v178, 0
  %v941 = vsel %vm588, %v179, 0
  %v944 = vsel %vm588, %v180, 0
  %v947 = vsel %vm588, %v181, 0
  %v950 = vsel %vm588, %v182, 0
  %952 = vmatprep.subr.mxu0 0.0
  %953 = vmatpush1.msra.mxu0 %v540
  %954 = vmatprep.subr.mxu0 0.0
  %955 = vmatpush1.msra.mxu0 %v546
  %956 = vmatprep.subr.mxu0 0.0
  %957 = vmatpush1.msra.mxu0 0.0
  %958 = vmatprep.subr.mxu0 0.0
  %959 = vmatpush1.msra.mxu0 0.0
  %960 = vmatprep.subr.mxu0 0.0
  %961 = vmatpush1.msra.mxu0 0.0
  %962 = vmatprep.subr.mxu0 0.0
  %963 = vmatpush1.msra.mxu0 0.0
  %964 = vmatprep.subr.mxu0 0.0
  %965 = vmatpush1.msra.mxu0 0.0
  %966 = vmatprep.subr.mxu0 0.0
  %967 = vmatpush1.msra.mxu0 0.0
  %968 = vmatprep.subr.mxu0 0.0
  %969 = vmatpush1.msra.mxu0 0.0
  %970 = vmatprep.subr.mxu0 0.0
  %971 = vmatpush1.msra.mxu0 0.0
  %972 = vmatprep.subr.mxu0 0.0
  %973 = vmatpush1.msra.mxu0 0.0
  %974 = vmatprep.subr.mxu0 0.0
  %975 = vmatpush1.msra.mxu0 0.0
  %976 = vmatprep.subr.mxu0 0.0
  %977 = vmatpush1.msra.mxu0 0.0
  %978 = vmatprep.subr.mxu0 0.0
  %979 = vmatpush1.msra.mxu0 0.0
  %980 = vmatprep.subr.mxu0 0.0
  %981 = vmatpush1.msra.mxu0 0.0
  %982 = vmatprep.subr.mxu0 0.0
  %983 = vmatpush1.msra.mxu0 0.0
  %984 = vmatprep.subr.mxu0 0.0
  %985 = vmatpush1.msra.mxu0 0.0
  %986 = vmatprep.subr.mxu0 0.0
  %987 = vmatpush1.msra.mxu0 0.0
  %988 = vmatprep.subr.mxu0 0.0
  %989 = vmatpush1.msra.mxu0 0.0
  %990 = vmatprep.subr.mxu0 0.0
  %991 = vmatpush1.msra.mxu0 0.0
  %992 = vmatprep.subr.mxu0 0.0
  %993 = vmatpush1.msra.mxu0 0.0
  %994 = vmatprep.subr.mxu0 0.0
  %995 = vmatpush1.msra.mxu0 0.0
  %996 = vmatprep.subr.mxu0 0.0
  %997 = vmatpush1.msra.mxu0 0.0
  %998 = vmatprep.subr.mxu0 0.0
  %999 = vmatpush1.msra.mxu0 0.0
  %1000 = vmatprep.subr.mxu0 0.0
  %1001 = vmatpush1.msra.mxu0 0.0
  %1002 = vmatprep.subr.mxu0 0.0
  %1003 = vmatpush1.msra.mxu0 0.0
  %1004 = vmatprep.subr.mxu0 0.0
  %1005 = vmatpush1.msra.mxu0 0.0
  %1006 = vmatprep.subr.mxu0 0.0
  %1007 = vmatpush1.msra.mxu0 0.0
  %1008 = vmatprep.subr.mxu0 0.0
  %1009 = vmatpush1.msra.mxu0 0.0
  %1010 = vmatprep.subr.mxu0 0.0
  %1011 = vmatpush1.msra.mxu0 0.0
  %1012 = vmatprep.subr.mxu0 0.0
  %1013 = vmatpush1.msra.mxu0 0.0
  %1014 = vmatprep.subr.mxu0 0.0
  %1015 = vmatpush1.msra.mxu0 0.0
  %1016 = vmatprep.mubr.f32.mxu0 0.0
  %1017 = vmatmul.mubr.f32.gmra.mrb[0].mxu0 %v905
  %v1018 = vpop.f32.mrb[0].mxu0
  %v1019 = vadd.f32 0.0, %v1018
  %v1020 = vpop.f32.mrb[0].mxu0
  %1021 = vmatprep.mubr.f32.mxu0 0.0
  %1022 = vmatmul.mubr.f32.gmra.mrb[0].mxu0 %v908
  %v1023 = vpop.f32.mrb[0].mxu0
  %v1024 = vadd.f32 0.0, %v1023
  %v1025 = vpop.f32.mrb[0].mxu0
  %1026 = vmatprep.mubr.f32.mxu0 0.0
  %1027 = vmatmul.mubr.f32.gmra.mrb[0].mxu0 %v911
  %v1028 = vpop.f32.mrb[0].mxu0
  %v1029 = vadd.f32 0.0, %v1028
  %v1030 = vpop.f32.mrb[0].mxu0
  %1031 = vmatprep.mubr.f32.mxu0 0.0
  %1032 = vmatmul.mubr.f32.gmra.mrb[0].mxu0 %v914
  %v1033 = vpop.f32.mrb[0].mxu0
  %v1034 = vadd.f32 0.0, %v1033
  %v1035 = vpop.f32.mrb[0].mxu0
  %1036 = vmatprep.mubr.f32.mxu0 0.0
  %1037 = vmatmul.mubr.f32.gmra.mrb[0].mxu0 %v917
  %v1038 = vpop.f32.mrb[0].mxu0
  %v1039 = vadd.f32 0.0, %v1038
  %v1040 = vpop.f32.mrb[0].mxu0
  %1041 = vmatprep.mubr.f32.mxu0 0.0
  %1042 = vmatmul.mubr.f32.gmra.mrb[0].mxu0 %v920
  %v1043 = vpop.f32.mrb[0].mxu0
  %v1044 = vadd.f32 0.0, %v1043
  %v1045 = vpop.f32.mrb[0].mxu0
  %1046 = vmatprep.mubr.f32.mxu0 0.0
  %1047 = vmatmul.mubr.f32.gmra.mrb[0].mxu0 %v923
  %v1048 = vpop.f32.mrb[0].mxu0
  %v1049 = vadd.f32 0.0, %v1048
  %v1050 = vpop.f32.mrb[0].mxu0
  %1051 = vmatprep.mubr.f32.mxu0 0.0
  %1052 = vmatmul.mubr.f32.gmra.mrb[0].mxu0 %v926
  %v1053 = vpop.f32.mrb[0].mxu0
  %v1054 = vadd.f32 0.0, %v1053
  %v1055 = vpop.f32.mrb[0].mxu0
  %1056 = vmatprep.mubr.f32.mxu0 0.0
  %1057 = vmatmul.mubr.f32.gmra.mrb[0].mxu0 %v929
  %v1058 = vpop.f32.mrb[0].mxu0
  %v1059 = vadd.f32 0.0, %v1058
  %v1060 = vpop.f32.mrb[0].mxu0
  %1061 = vmatprep.mubr.f32.mxu0 0.0
  %1062 = vmatmul.mubr.f32.gmra.mrb[0].mxu0 %v932
  %v1063 = vpop.f32.mrb[0].mxu0
  %v1064 = vadd.f32 0.0, %v1063
  %v1065 = vpop.f32.mrb[0].mxu0
  %1066 = vmatprep.mubr.f32.mxu0 0.0
  %1067 = vmatmul.mubr.f32.gmra.mrb[0].mxu0 %v935
  %v1068 = vpop.f32.mrb[0].mxu0
  %v1069 = vadd.f32 0.0, %v1068
  %v1070 = vpop.f32.mrb[0].mxu0
  %1071 = vmatprep.mubr.f32.mxu0 0.0
  %1072 = vmatmul.mubr.f32.gmra.mrb[0].mxu0 %v938
  %v1073 = vpop.f32.mrb[0].mxu0
  %v1074 = vadd.f32 0.0, %v1073
  %v1075 = vpop.f32.mrb[0].mxu0
  %1076 = vmatprep.mubr.f32.mxu0 0.0
  %1077 = vmatmul.mubr.f32.gmra.mrb[0].mxu0 %v941
  %v1078 = vpop.f32.mrb[0].mxu0
  %v1079 = vadd.f32 0.0, %v1078
  %v1080 = vpop.f32.mrb[0].mxu0
  %1081 = vmatprep.mubr.f32.mxu0 0.0
  %1082 = vmatmul.mubr.f32.gmra.mrb[0].mxu0 %v944
  %v1083 = vpop.f32.mrb[0].mxu0
  %v1084 = vadd.f32 0.0, %v1083
  %v1085 = vpop.f32.mrb[0].mxu0
  %1086 = vmatprep.mubr.f32.mxu0 0.0
  %1087 = vmatmul.mubr.f32.gmra.mrb[0].mxu0 %v947
  %v1088 = vpop.f32.mrb[0].mxu0
  %v1089 = vadd.f32 0.0, %v1088
  %v1090 = vpop.f32.mrb[0].mxu0
  %1091 = vmatprep.mubr.f32.mxu0 0.0
  %1092 = vmatmul.mubr.f32.gmra.mrb[0].mxu0 %v950
  %v1093 = vpop.f32.mrb[0].mxu0
  %v1094 = vadd.f32 0.0, %v1093
  %v1095 = vpop.f32.mrb[0].mxu0
  %1096 = vdwg.mxu0
  %v1097 = vmul.f32 %v1019, %v223
  %v1098 = vmul.f32 %v1024, %v224
  %v1099 = vmul.f32 %v1029, %v225
  %v1100 = vmul.f32 %v1034, %v226
  %v1101 = vmul.f32 %v1039, %v227
  %v1102 = vmul.f32 %v1044, %v228
  %v1103 = vmul.f32 %v1049, %v229
  %v1104 = vmul.f32 %v1054, %v230
  %v1105 = vmul.f32 %v1059, %v231
  %v1106 = vmul.f32 %v1064, %v232
  %v1107 = vmul.f32 %v1069, %v233
  %v1108 = vmul.f32 %v1074, %v234
  %v1109 = vmul.f32 %v1079, %v235
  %v1110 = vmul.f32 %v1084, %v236
  %v1111 = vmul.f32 %v1089, %v237
  %v1112 = vmul.f32 %v1094, %v238
  %1113 = vmatprep.subr.mxu0 0.0
  %1114 = vmatpush1.msra.mxu0 %v1097
  %1115 = vmatprep.subr.mxu0 0.0
  %1116 = vmatpush1.msra.mxu0 %v1098
  %1117 = vmatprep.subr.mxu0 0.0
  %1118 = vmatpush1.msra.mxu0 %v1099
  %1119 = vmatprep.subr.mxu0 0.0
  %1120 = vmatpush1.msra.mxu0 %v1100
  %1121 = vmatprep.subr.mxu0 0.0
  %1122 = vmatpush1.msra.mxu0 %v1101
  %1123 = vmatprep.subr.mxu0 0.0
  %1124 = vmatpush1.msra.mxu0 %v1102
  %1125 = vmatprep.subr.mxu0 0.0
  %1126 = vmatpush1.msra.mxu0 %v1103
  %1127 = vmatprep.subr.mxu0 0.0
  %1128 = vmatpush1.msra.mxu0 %v1104
  %1129 = vmatprep.subr.mxu0 0.0
  %1130 = vmatpush1.msra.mxu0 %v1105
  %1131 = vmatprep.subr.mxu0 0.0
  %1132 = vmatpush1.msra.mxu0 %v1106
  %1133 = vmatprep.subr.mxu0 0.0
  %1134 = vmatpush1.msra.mxu0 %v1107
  %1135 = vmatprep.subr.mxu0 0.0
  %1136 = vmatpush1.msra.mxu0 %v1108
  %1137 = vmatprep.subr.mxu0 0.0
  %1138 = vmatpush1.msra.mxu0 %v1109
  %1139 = vmatprep.subr.mxu0 0.0
  %1140 = vmatpush1.msra.mxu0 %v1110
  %1141 = vmatprep.subr.mxu0 0.0
  %1142 = vmatpush1.msra.mxu0 %v1111
  %1143 = vmatprep.subr.mxu0 0.0
  %1144 = vmatpush1.msra.mxu0 %v1112
  %1145 = vmatprep.subr.mxu0 0.0
  %1146 = vmatpush1.msra.mxu0 0.0
  %1147 = vmatprep.subr.mxu0 0.0
  %1148 = vmatpush1.msra.mxu0 0.0
  %1149 = vmatprep.subr.mxu0 0.0
  %1150 = vmatpush1.msra.mxu0 0.0
  %1151 = vmatprep.subr.mxu0 0.0
  %1152 = vmatpush1.msra.mxu0 0.0
  %1153 = vmatprep.subr.mxu0 0.0
  %1154 = vmatpush1.msra.mxu0 0.0
  %1155 = vmatprep.subr.mxu0 0.0
  %1156 = vmatpush1.msra.mxu0 0.0
  %1157 = vmatprep.subr.mxu0 0.0
  %1158 = vmatpush1.msra.mxu0 0.0
  %1159 = vmatprep.subr.mxu0 0.0
  %1160 = vmatpush1.msra.mxu0 0.0
  %1161 = vmatprep.subr.mxu0 0.0
  %1162 = vmatpush1.msra.mxu0 0.0
  %1163 = vmatprep.subr.mxu0 0.0
  %1164 = vmatpush1.msra.mxu0 0.0
  %1165 = vmatprep.subr.mxu0 0.0
  %1166 = vmatpush1.msra.mxu0 0.0
  %1167 = vmatprep.subr.mxu0 0.0
  %1168 = vmatpush1.msra.mxu0 0.0
  %1169 = vmatprep.subr.mxu0 0.0
  %1170 = vmatpush1.msra.mxu0 0.0
  %1171 = vmatprep.subr.mxu0 0.0
  %1172 = vmatpush1.msra.mxu0 0.0
  %1173 = vmatprep.subr.mxu0 0.0
  %1174 = vmatpush1.msra.mxu0 0.0
  %1175 = vmatprep.subr.mxu0 0.0
  %1176 = vmatpush1.msra.mxu0 0.0
  %1177 = vmatprep.mubr.f32.mxu0 0.0
  %1178 = vmatmul.mubr.f32.gmra.mrb[0].mxu0 %v902
  %v1179 = vpop.f32.mrb[0].mxu0
  %v1180 = vadd.f32 0.0, %v1179
  %v1181 = vpop.f32.mrb[0].mxu0
  %1182 = vmatprep.mubr.f32.mxu0 0.0
  %1183 = vmatmul.mubr.f32.gmra.mrb[0].mxu0 %v903
  %v1184 = vpop.f32.mrb[0].mxu0
  %v1185 = vadd.f32 0.0, %v1184
  %v1186 = vpop.f32.mrb[0].mxu0
  %1187 = vdwg.mxu0
  %v1188 = vlaneseq
  %v1189 = vshrl.u32 %v1188, 7
  %v1190 = vsub.s32 1, %v1189
  %v1191 = vrot.slane %v455, %v1190
  %v1193 = vsel %vm301, %v1180, 0
  %v1196 = vsel %vm301, %v1185, 0
  %1198 = vmatprep.subr.mxu0 0.0
  %1199 = vmatpush1.msra.mxu0 %v399
  %1200 = vmatprep.subr.mxu0 0.0
  %1201 = vmatpush1.msra.mxu0 %v400
  %1202 = vmatprep.subr.mxu0 0.0
  %1203 = vmatpush1.msra.mxu0 %v401
  %1204 = vmatprep.subr.mxu0 0.0
  %1205 = vmatpush1.msra.mxu0 %v402
  %1206 = vmatprep.subr.mxu0 0.0
  %1207 = vmatpush1.msra.mxu0 %v403
  %1208 = vmatprep.subr.mxu0 0.0
  %1209 = vmatpush1.msra.mxu0 %v404
  %1210 = vmatprep.subr.mxu0 0.0
  %1211 = vmatpush1.msra.mxu0 %v405
  %1212 = vmatprep.subr.mxu0 0.0
  %1213 = vmatpush1.msra.mxu0 %v406
  %1214 = vmatprep.subr.mxu0 0.0
  %1215 = vmatpush1.msra.mxu0 0.0
  %1216 = vmatprep.subr.mxu0 0.0
  %1217 = vmatpush1.msra.mxu0 0.0
  %1218 = vmatprep.subr.mxu0 0.0
  %1219 = vmatpush1.msra.mxu0 0.0
  %1220 = vmatprep.subr.mxu0 0.0
  %1221 = vmatpush1.msra.mxu0 0.0
  %1222 = vmatprep.subr.mxu0 0.0
  %1223 = vmatpush1.msra.mxu0 0.0
  %1224 = vmatprep.subr.mxu0 0.0
  %1225 = vmatpush1.msra.mxu0 0.0
  %1226 = vmatprep.subr.mxu0 0.0
  %1227 = vmatpush1.msra.mxu0 0.0
  %1228 = vmatprep.subr.mxu0 0.0
  %1229 = vmatpush1.msra.mxu0 0.0
  %1230 = vmatprep.subr.mxu0 0.0
  %1231 = vmatpush1.msra.mxu0 0.0
  %1232 = vmatprep.subr.mxu0 0.0
  %1233 = vmatpush1.msra.mxu0 0.0
  %1234 = vmatprep.subr.mxu0 0.0
  %1235 = vmatpush1.msra.mxu0 0.0
  %1236 = vmatprep.subr.mxu0 0.0
  %1237 = vmatpush1.msra.mxu0 0.0
  %1238 = vmatprep.subr.mxu0 0.0
  %1239 = vmatpush1.msra.mxu0 0.0
  %1240 = vmatprep.subr.mxu0 0.0
  %1241 = vmatpush1.msra.mxu0 0.0
  %1242 = vmatprep.subr.mxu0 0.0
  %1243 = vmatpush1.msra.mxu0 0.0
  %1244 = vmatprep.subr.mxu0 0.0
  %1245 = vmatpush1.msra.mxu0 0.0
  %1246 = vmatprep.subr.mxu0 0.0
  %1247 = vmatpush1.msra.mxu0 0.0
  %1248 = vmatprep.subr.mxu0 0.0
  %1249 = vmatpush1.msra.mxu0 0.0
  %1250 = vmatprep.subr.mxu0 0.0
  %1251 = vmatpush1.msra.mxu0 0.0
  %1252 = vmatprep.subr.mxu0 0.0
  %1253 = vmatpush1.msra.mxu0 0.0
  %1254 = vmatprep.subr.mxu0 0.0
  %1255 = vmatpush1.msra.mxu0 0.0
  %1256 = vmatprep.subr.mxu0 0.0
  %1257 = vmatpush1.msra.mxu0 0.0
  %1258 = vmatprep.subr.mxu0 0.0
  %1259 = vmatpush1.msra.mxu0 0.0
  %1260 = vmatprep.subr.mxu0 0.0
  %1261 = vmatpush1.msra.mxu0 0.0
  %1262 = vmatprep.mubr.f32.mxu0 0.0
  %1263 = vmatmul.mubr.f32.gmra.mrb[0].mxu0 %v1193
  %v1264 = vpop.f32.mrb[0].mxu0
  %v1265 = vadd.f32 %v1191, %v1264
  %v1266 = vpop.f32.mrb[0].mxu0
  %1267 = vmatprep.mubr.f32.mxu0 0.0
  %1268 = vmatmul.mubr.f32.gmra.mrb[0].mxu0 %v1196
  %v1269 = vpop.f32.mrb[0].mxu0
  %v1270 = vadd.f32 %v1191, %v1269
  %v1271 = vpop.f32.mrb[0].mxu0
  %1272 = vdwg.mxu0
  %v1273 = vsel %vm301, %v1265, 0.0
  %1274 = vadd.xlane.f32.xlu0 %v1273
  %v1275 = vpop.xlane.xlu0 %1274
  %v1276 = vsel %vm301, %v1270, 0.0
  %1277 = vadd.xlane.f32.xlu0 %v1276
  %v1278 = vpop.xlane.xlu0 %1277
  %v1279 = vrcp.pop 64.0
  %v1280 = vmul.f32 %v1275, %v1279
  %v1281 = vmul.f32 %v1278, %v1279
  %v1282 = vsub.f32 %v1265, %v1280
  %v1283 = vsub.f32 %v1270, %v1281
  %v1284 = vmul.f32 %v1282, %v1282
  %v1285 = vmul.f32 %v1283, %v1283
  %v1286 = vsel %vm301, %v1284, 0.0
  %1287 = vadd.xlane.f32.xlu0 %v1286
  %v1288 = vpop.xlane.xlu0 %1287
  %v1289 = vsel %vm301, %v1285, 0.0
  %1290 = vadd.xlane.f32.xlu0 %v1289
  %v1291 = vpop.xlane.xlu0 %1290
  %v1292 = vmul.f32 %v1288, %v1279
  %v1293 = vmul.f32 %v1291, %v1279
  %v1294 = vadd.f32 %v1292, 1e-05
  %v1295 = vadd.f32 %v1293, 1e-05
  %v1296 = vrsqrt.pop %v1294
  %v1297 = vrsqrt.pop %v1295
  %v1298 = vmul.f32 %v1282, %v1296
  %v1299 = vmul.f32 %v1283, %v1297
  %v1300 = vlaneseq
  %v1301 = vshrl.u32 %v1300, 7
  %v1302 = vsub.s32 2, %v1301
  %v1303 = vrot.slane %v455, %v1302
  %v1304 = vmul.f32 %v1298, %v1303
  %v1305 = vmul.f32 %v1299, %v1303
  %v1306 = vlaneseq
  %v1307 = vshrl.u32 %v1306, 7
  %v1308 = vsub.s32 3, %v1307
  %v1309 = vrot.slane %v455, %v1308
  %v1310 = vadd.f32 %v1304, %v1309
  %v1311 = vadd.f32 %v1305, %v1309
  %v1312 = vadd.f32 %v1310, %v375
  %v1313 = vadd.f32 %v1311, %v380
  %v1314 = vlaneseq
  %v1315 = vshrl.u32 %v1314, 7
  %v1316 = vsub.s32 4, %v1315
  %v1317 = vrot.slane %v455, %v1316
  %v1318 = vlaneseq
  %v1319 = vshrl.u32 %v1318, 7
  %v1320 = vsub.s32 4, %v1319
  %v1321 = vrot.slane %v456, %v1320
  %v1323 = vsel %vm301, %v1312, 0
  %v1326 = vsel %vm301, %v1313, 0
  %1328 = vmatprep.subr.mxu0 %v408
  %1329 = vmatpush1.msra.mxu0 %v407
  %1330 = vmatprep.subr.mxu0 %v410
  %1331 = vmatpush1.msra.mxu0 %v409
  %1332 = vmatprep.subr.mxu0 %v412
  %1333 = vmatpush1.msra.mxu0 %v411
  %1334 = vmatprep.subr.mxu0 %v414
  %1335 = vmatpush1.msra.mxu0 %v413
  %1336 = vmatprep.subr.mxu0 %v416
  %1337 = vmatpush1.msra.mxu0 %v415
  %1338 = vmatprep.subr.mxu0 %v418
  %1339 = vmatpush1.msra.mxu0 %v417
  %1340 = vmatprep.subr.mxu0 %v420
  %1341 = vmatpush1.msra.mxu0 %v419
  %1342 = vmatprep.subr.mxu0 %v422
  %1343 = vmatpush1.msra.mxu0 %v421
  %1344 = vmatprep.subr.mxu0 0.0
  %1345 = vmatpush1.msra.mxu0 0.0
  %1346 = vmatprep.subr.mxu0 0.0
  %1347 = vmatpush1.msra.mxu0 0.0
  %1348 = vmatprep.subr.mxu0 0.0
  %1349 = vmatpush1.msra.mxu0 0.0
  %1350 = vmatprep.subr.mxu0 0.0
  %1351 = vmatpush1.msra.mxu0 0.0
  %1352 = vmatprep.subr.mxu0 0.0
  %1353 = vmatpush1.msra.mxu0 0.0
  %1354 = vmatprep.subr.mxu0 0.0
  %1355 = vmatpush1.msra.mxu0 0.0
  %1356 = vmatprep.subr.mxu0 0.0
  %1357 = vmatpush1.msra.mxu0 0.0
  %1358 = vmatprep.subr.mxu0 0.0
  %1359 = vmatpush1.msra.mxu0 0.0
  %1360 = vmatprep.subr.mxu0 0.0
  %1361 = vmatpush1.msra.mxu0 0.0
  %1362 = vmatprep.subr.mxu0 0.0
  %1363 = vmatpush1.msra.mxu0 0.0
  %1364 = vmatprep.subr.mxu0 0.0
  %1365 = vmatpush1.msra.mxu0 0.0
  %1366 = vmatprep.subr.mxu0 0.0
  %1367 = vmatpush1.msra.mxu0 0.0
  %1368 = vmatprep.subr.mxu0 0.0
  %1369 = vmatpush1.msra.mxu0 0.0
  %1370 = vmatprep.subr.mxu0 0.0
  %1371 = vmatpush1.msra.mxu0 0.0
  %1372 = vmatprep.subr.mxu0 0.0
  %1373 = vmatpush1.msra.mxu0 0.0
  %1374 = vmatprep.subr.mxu0 0.0
  %1375 = vmatpush1.msra.mxu0 0.0
  %1376 = vmatprep.subr.mxu0 0.0
  %1377 = vmatpush1.msra.mxu0 0.0
  %1378 = vmatprep.subr.mxu0 0.0
  %1379 = vmatpush1.msra.mxu0 0.0
  %1380 = vmatprep.subr.mxu0 0.0
  %1381 = vmatpush1.msra.mxu0 0.0
  %1382 = vmatprep.subr.mxu0 0.0
  %1383 = vmatpush1.msra.mxu0 0.0
  %1384 = vmatprep.subr.mxu0 0.0
  %1385 = vmatpush1.msra.mxu0 0.0
  %1386 = vmatprep.subr.mxu0 0.0
  %1387 = vmatpush1.msra.mxu0 0.0
  %1388 = vmatprep.subr.mxu0 0.0
  %1389 = vmatpush1.msra.mxu0 0.0
  %1390 = vmatprep.subr.mxu0 0.0
  %1391 = vmatpush1.msra.mxu0 0.0
  %1392 = vmatprep.mubr.f32.mxu0 0.0
  %1393 = vmatmul.mubr.f32.gmra.mrb[0].mxu0 %v1323
  %v1394 = vpop.f32.mrb[0].mxu0
  %v1395 = vadd.f32 %v1317, %v1394
  %v1396 = vpop.f32.mrb[0].mxu0
  %v1397 = vadd.f32 %v1321, %v1396
  %1398 = vmatprep.mubr.f32.mxu0 0.0
  %1399 = vmatmul.mubr.f32.gmra.mrb[0].mxu0 %v1326
  %v1400 = vpop.f32.mrb[0].mxu0
  %v1401 = vadd.f32 %v1317, %v1400
  %v1402 = vpop.f32.mrb[0].mxu0
  %v1403 = vadd.f32 %v1321, %v1402
  %1404 = vdwg.mxu0
  %v1405 = vmul.f32 %v1395, 0.5
  %v1406 = vmul.f32 %v1397, 0.5
  %v1407 = vmul.f32 %v1401, 0.5
  %v1408 = vmul.f32 %v1403, 0.5
  %v1409 = vmul.f32 %v1395, 0.70710677
  %v1410 = vmul.f32 %v1397, 0.70710677
  %v1411 = vmul.f32 %v1401, 0.70710677
  %v1412 = vmul.f32 %v1403, 0.70710677
  %v1413 = verf.f32.pop %v1409
  %v1414 = verf.f32.pop %v1410
  %v1415 = verf.f32.pop %v1411
  %v1416 = verf.f32.pop %v1412
  %v1417 = vadd.f32 %v1413, 1.0
  %v1418 = vadd.f32 %v1414, 1.0
  %v1419 = vadd.f32 %v1415, 1.0
  %v1420 = vadd.f32 %v1416, 1.0
  %v1421 = vmul.f32 %v1405, %v1417
  %v1422 = vmul.f32 %v1406, %v1418
  %v1423 = vmul.f32 %v1407, %v1419
  %v1424 = vmul.f32 %v1408, %v1420
  %v1425 = vlaneseq
  %v1426 = vshrl.u32 %v1425, 7
  %v1427 = vsub.s32 5, %v1426
  %v1428 = vrot.slane %v455, %v1427
  %1429 = vmatprep.subr.mxu0 0.0
  %1430 = vmatpush1.msra.mxu0 %v423
  %1431 = vmatprep.subr.mxu0 0.0
  %1432 = vmatpush1.msra.mxu0 %v424
  %1433 = vmatprep.subr.mxu0 0.0
  %1434 = vmatpush1.msra.mxu0 %v425
  %1435 = vmatprep.subr.mxu0 0.0
  %1436 = vmatpush1.msra.mxu0 %v426
  %1437 = vmatprep.subr.mxu0 0.0
  %1438 = vmatpush1.msra.mxu0 %v427
  %1439 = vmatprep.subr.mxu0 0.0
  %1440 = vmatpush1.msra.mxu0 %v428
  %1441 = vmatprep.subr.mxu0 0.0
  %1442 = vmatpush1.msra.mxu0 %v429
  %1443 = vmatprep.subr.mxu0 0.0
  %1444 = vmatpush1.msra.mxu0 %v430
  %1445 = vmatprep.subr.mxu0 0.0
  %1446 = vmatpush1.msra.mxu0 %v431
  %1447 = vmatprep.subr.mxu0 0.0
  %1448 = vmatpush1.msra.mxu0 %v432
  %1449 = vmatprep.subr.mxu0 0.0
  %1450 = vmatpush1.msra.mxu0 %v433
  %1451 = vmatprep.subr.mxu0 0.0
  %1452 = vmatpush1.msra.mxu0 %v434
  %1453 = vmatprep.subr.mxu0 0.0
  %1454 = vmatpush1.msra.mxu0 %v435
  %1455 = vmatprep.subr.mxu0 0.0
  %1456 = vmatpush1.msra.mxu0 %v436
  %1457 = vmatprep.subr.mxu0 0.0
  %1458 = vmatpush1.msra.mxu0 %v437
  %1459 = vmatprep.subr.mxu0 0.0
  %1460 = vmatpush1.msra.mxu0 %v438
  %1461 = vmatprep.subr.mxu0 0.0
  %1462 = vmatpush1.msra.mxu0 %v439
  %1463 = vmatprep.subr.mxu0 0.0
  %1464 = vmatpush1.msra.mxu0 %v440
  %1465 = vmatprep.subr.mxu0 0.0
  %1466 = vmatpush1.msra.mxu0 %v441
  %1467 = vmatprep.subr.mxu0 0.0
  %1468 = vmatpush1.msra.mxu0 %v442
  %1469 = vmatprep.subr.mxu0 0.0
  %1470 = vmatpush1.msra.mxu0 %v443
  %1471 = vmatprep.subr.mxu0 0.0
  %1472 = vmatpush1.msra.mxu0 %v444
  %1473 = vmatprep.subr.mxu0 0.0
  %1474 = vmatpush1.msra.mxu0 %v445
  %1475 = vmatprep.subr.mxu0 0.0
  %1476 = vmatpush1.msra.mxu0 %v446
  %1477 = vmatprep.subr.mxu0 0.0
  %1478 = vmatpush1.msra.mxu0 %v447
  %1479 = vmatprep.subr.mxu0 0.0
  %1480 = vmatpush1.msra.mxu0 %v448
  %1481 = vmatprep.subr.mxu0 0.0
  %1482 = vmatpush1.msra.mxu0 %v449
  %1483 = vmatprep.subr.mxu0 0.0
  %1484 = vmatpush1.msra.mxu0 %v450
  %1485 = vmatprep.subr.mxu0 0.0
  %1486 = vmatpush1.msra.mxu0 %v451
  %1487 = vmatprep.subr.mxu0 0.0
  %1488 = vmatpush1.msra.mxu0 %v452
  %1489 = vmatprep.subr.mxu0 0.0
  %1490 = vmatpush1.msra.mxu0 %v453
  %1491 = vmatprep.subr.mxu0 0.0
  %1492 = vmatpush1.msra.mxu0 %v454
  %1493 = vmatprep.mubr.f32.mxu0 %v1422
  %1494 = vmatmul.mubr.f32.gmra.mrb[0].mxu0 %v1421
  %v1495 = vpop.f32.mrb[0].mxu0
  %v1496 = vadd.f32 %v1428, %v1495
  %v1497 = vpop.f32.mrb[0].mxu0
  %1498 = vmatprep.mubr.f32.mxu0 %v1424
  %1499 = vmatmul.mubr.f32.gmra.mrb[0].mxu0 %v1423
  %v1500 = vpop.f32.mrb[0].mxu0
  %v1501 = vadd.f32 %v1428, %v1500
  %v1502 = vpop.f32.mrb[0].mxu0
  %1503 = vdwg.mxu0
  %v1504 = vsel %vm301, %v1496, 0.0
  %1505 = vadd.xlane.f32.xlu0 %v1504
  %v1506 = vpop.xlane.xlu0 %1505
  %v1507 = vsel %vm301, %v1501, 0.0
  %1508 = vadd.xlane.f32.xlu0 %v1507
  %v1509 = vpop.xlane.xlu0 %1508
  %v1510 = vmul.f32 %v1506, %v1279
  %v1511 = vmul.f32 %v1509, %v1279
  %v1512 = vsub.f32 %v1496, %v1510
  %v1513 = vsub.f32 %v1501, %v1511
  %v1514 = vmul.f32 %v1512, %v1512
  %v1515 = vmul.f32 %v1513, %v1513
  %v1516 = vsel %vm301, %v1514, 0.0
  %1517 = vadd.xlane.f32.xlu0 %v1516
  %v1518 = vpop.xlane.xlu0 %1517
  %v1519 = vsel %vm301, %v1515, 0.0
  %1520 = vadd.xlane.f32.xlu0 %v1519
  %v1521 = vpop.xlane.xlu0 %1520
  %v1522 = vmul.f32 %v1518, %v1279
  %v1523 = vmul.f32 %v1521, %v1279
  %v1524 = vadd.f32 %v1522, 1e-05
  %v1525 = vadd.f32 %v1523, 1e-05
  %v1526 = vrsqrt.pop %v1524
  %v1527 = vrsqrt.pop %v1525
  %v1528 = vmul.f32 %v1512, %v1526
  %v1529 = vmul.f32 %v1513, %v1527
  %v1530 = vlaneseq
  %v1531 = vshrl.u32 %v1530, 7
  %v1532 = vsub.s32 6, %v1531
  %v1533 = vrot.slane %v455, %v1532
  %v1534 = vmul.f32 %v1528, %v1533
  %v1535 = vmul.f32 %v1529, %v1533
  %v1536 = vlaneseq
  %v1537 = vshrl.u32 %v1536, 7
  %v1538 = vsub.s32 7, %v1537
  %v1539 = vrot.slane %v455, %v1538
  %v1540 = vadd.f32 %v1534, %v1539
  %v1541 = vadd.f32 %v1535, %v1539
  %v1542 = vadd.f32 %v1540, %v1312
  %v1543 = vadd.f32 %v1541, %v1313
  %s1544 = scalar_lea.vmem %s3, 128
  %v1545 = vld [vmem:[%s1544] sm:$0xff]
  %v1546 = vld [vmem:[%s1544 + $0x8] sm:$0xff]
  %v1547 = vld [vmem:[%s1544 + $0x10] sm:$0xff]
  %v1548 = vld [vmem:[%s1544 + $0x18] sm:$0xff]
  %v1549 = vld [vmem:[%s1544 + $0x20] sm:$0xff]
  %v1550 = vld [vmem:[%s1544 + $0x28] sm:$0xff]
  %v1551 = vld [vmem:[%s1544 + $0x30] sm:$0xff]
  %v1552 = vld [vmem:[%s1544 + $0x38] sm:$0xff]
  %v1553 = vld [vmem:[%s1544 + $0x40] sm:$0xff]
  %v1554 = vld [vmem:[%s1544 + $0x48] sm:$0xff]
  %v1555 = vld [vmem:[%s1544 + $0x50] sm:$0xff]
  %v1556 = vld [vmem:[%s1544 + $0x58] sm:$0xff]
  %v1557 = vld [vmem:[%s1544 + $0x60] sm:$0xff]
  %v1558 = vld [vmem:[%s1544 + $0x68] sm:$0xff]
  %v1559 = vld [vmem:[%s1544 + $0x70] sm:$0xff]
  %v1560 = vld [vmem:[%s1544 + $0x78] sm:$0xff]
  %s1561 = scalar_lea.vmem %s4, 64
  %v1562 = vld [vmem:[%s1561] sm:$0xff]
  %v1563 = vld [vmem:[%s1561 + $0x8] sm:$0xff]
  %v1564 = vld [vmem:[%s1561 + $0x10] sm:$0xff]
  %v1565 = vld [vmem:[%s1561 + $0x18] sm:$0xff]
  %v1566 = vld [vmem:[%s1561 + $0x20] sm:$0xff]
  %v1567 = vld [vmem:[%s1561 + $0x28] sm:$0xff]
  %v1568 = vld [vmem:[%s1561 + $0x30] sm:$0xff]
  %v1569 = vld [vmem:[%s1561 + $0x38] sm:$0xff]
  %s1570 = scalar_lea.vmem %s5, 128
  %v1571 = vld [vmem:[%s1570] sm:$0xff]
  %v1572 = vld [vmem:[%s1570 + $0x8] sm:$0xff]
  %v1573 = vld [vmem:[%s1570 + $0x10] sm:$0xff]
  %v1574 = vld [vmem:[%s1570 + $0x18] sm:$0xff]
  %v1575 = vld [vmem:[%s1570 + $0x20] sm:$0xff]
  %v1576 = vld [vmem:[%s1570 + $0x28] sm:$0xff]
  %v1577 = vld [vmem:[%s1570 + $0x30] sm:$0xff]
  %v1578 = vld [vmem:[%s1570 + $0x38] sm:$0xff]
  %v1579 = vld [vmem:[%s1570 + $0x40] sm:$0xff]
  %v1580 = vld [vmem:[%s1570 + $0x48] sm:$0xff]
  %v1581 = vld [vmem:[%s1570 + $0x50] sm:$0xff]
  %v1582 = vld [vmem:[%s1570 + $0x58] sm:$0xff]
  %v1583 = vld [vmem:[%s1570 + $0x60] sm:$0xff]
  %v1584 = vld [vmem:[%s1570 + $0x68] sm:$0xff]
  %v1585 = vld [vmem:[%s1570 + $0x70] sm:$0xff]
  %v1586 = vld [vmem:[%s1570 + $0x78] sm:$0xff]
  %s1587 = scalar_lea.vmem %s6, 256
  %v1588 = vld [vmem:[%s1587] sm:$0xff]
  %v1589 = vld [vmem:[%s1587 + $0x8] sm:$0xff]
  %v1590 = vld [vmem:[%s1587 + $0x10] sm:$0xff]
  %v1591 = vld [vmem:[%s1587 + $0x18] sm:$0xff]
  %v1592 = vld [vmem:[%s1587 + $0x20] sm:$0xff]
  %v1593 = vld [vmem:[%s1587 + $0x28] sm:$0xff]
  %v1594 = vld [vmem:[%s1587 + $0x30] sm:$0xff]
  %v1595 = vld [vmem:[%s1587 + $0x38] sm:$0xff]
  %v1596 = vld [vmem:[%s1587 + $0x40] sm:$0xff]
  %v1597 = vld [vmem:[%s1587 + $0x48] sm:$0xff]
  %v1598 = vld [vmem:[%s1587 + $0x50] sm:$0xff]
  %v1599 = vld [vmem:[%s1587 + $0x58] sm:$0xff]
  %v1600 = vld [vmem:[%s1587 + $0x60] sm:$0xff]
  %v1601 = vld [vmem:[%s1587 + $0x68] sm:$0xff]
  %v1602 = vld [vmem:[%s1587 + $0x70] sm:$0xff]
  %v1603 = vld [vmem:[%s1587 + $0x78] sm:$0xff]
  %v1604 = vld [vmem:[%s1587 + $0x80] sm:$0xff]
  %v1605 = vld [vmem:[%s1587 + $0x88] sm:$0xff]
  %v1606 = vld [vmem:[%s1587 + $0x90] sm:$0xff]
  %v1607 = vld [vmem:[%s1587 + $0x98] sm:$0xff]
  %v1608 = vld [vmem:[%s1587 + $0xa0] sm:$0xff]
  %v1609 = vld [vmem:[%s1587 + $0xa8] sm:$0xff]
  %v1610 = vld [vmem:[%s1587 + $0xb0] sm:$0xff]
  %v1611 = vld [vmem:[%s1587 + $0xb8] sm:$0xff]
  %v1612 = vld [vmem:[%s1587 + $0xc0] sm:$0xff]
  %v1613 = vld [vmem:[%s1587 + $0xc8] sm:$0xff]
  %v1614 = vld [vmem:[%s1587 + $0xd0] sm:$0xff]
  %v1615 = vld [vmem:[%s1587 + $0xd8] sm:$0xff]
  %v1616 = vld [vmem:[%s1587 + $0xe0] sm:$0xff]
  %v1617 = vld [vmem:[%s1587 + $0xe8] sm:$0xff]
  %v1618 = vld [vmem:[%s1587 + $0xf0] sm:$0xff]
  %v1619 = vld [vmem:[%s1587 + $0xf8] sm:$0xff]
  %s1620 = scalar_lea.vmem %s7, 16
  %v1621 = vld [vmem:[%s1620] sm:$0xff]
  %v1622 = vld [vmem:[%s1620 + $0x8] sm:$0xff]
  %v1623 = vlaneseq
  %v1624 = vshrl.u32 %v1623, 7
  %v1625 = vsub.s32 0, %v1624
  %v1626 = vrot.slane %v1621, %v1625
  %v1627 = vlaneseq
  %v1628 = vshrl.u32 %v1627, 7
  %v1629 = vsub.s32 0, %v1628
  %v1630 = vrot.slane %v1622, %v1629
  %v1632 = vsel %vm301, %v1542, 0
  %v1635 = vsel %vm301, %v1543, 0
  %1637 = vmatprep.subr.mxu0 %v1546
  %1638 = vmatpush1.msra.mxu0 %v1545
  %1639 = vmatprep.subr.mxu0 %v1548
  %1640 = vmatpush1.msra.mxu0 %v1547
  %1641 = vmatprep.subr.mxu0 %v1550
  %1642 = vmatpush1.msra.mxu0 %v1549
  %1643 = vmatprep.subr.mxu0 %v1552
  %1644 = vmatpush1.msra.mxu0 %v1551
  %1645 = vmatprep.subr.mxu0 %v1554
  %1646 = vmatpush1.msra.mxu0 %v1553
  %1647 = vmatprep.subr.mxu0 %v1556
  %1648 = vmatpush1.msra.mxu0 %v1555
  %1649 = vmatprep.subr.mxu0 %v1558
  %1650 = vmatpush1.msra.mxu0 %v1557
  %1651 = vmatprep.subr.mxu0 %v1560
  %1652 = vmatpush1.msra.mxu0 %v1559
  %1653 = vmatprep.subr.mxu0 0.0
  %1654 = vmatpush1.msra.mxu0 0.0
  %1655 = vmatprep.subr.mxu0 0.0
  %1656 = vmatpush1.msra.mxu0 0.0
  %1657 = vmatprep.subr.mxu0 0.0
  %1658 = vmatpush1.msra.mxu0 0.0
  %1659 = vmatprep.subr.mxu0 0.0
  %1660 = vmatpush1.msra.mxu0 0.0
  %1661 = vmatprep.subr.mxu0 0.0
  %1662 = vmatpush1.msra.mxu0 0.0
  %1663 = vmatprep.subr.mxu0 0.0
  %1664 = vmatpush1.msra.mxu0 0.0
  %1665 = vmatprep.subr.mxu0 0.0
  %1666 = vmatpush1.msra.mxu0 0.0
  %1667 = vmatprep.subr.mxu0 0.0
  %1668 = vmatpush1.msra.mxu0 0.0
  %1669 = vmatprep.subr.mxu0 0.0
  %1670 = vmatpush1.msra.mxu0 0.0
  %1671 = vmatprep.subr.mxu0 0.0
  %1672 = vmatpush1.msra.mxu0 0.0
  %1673 = vmatprep.subr.mxu0 0.0
  %1674 = vmatpush1.msra.mxu0 0.0
  %1675 = vmatprep.subr.mxu0 0.0
  %1676 = vmatpush1.msra.mxu0 0.0
  %1677 = vmatprep.subr.mxu0 0.0
  %1678 = vmatpush1.msra.mxu0 0.0
  %1679 = vmatprep.subr.mxu0 0.0
  %1680 = vmatpush1.msra.mxu0 0.0
  %1681 = vmatprep.subr.mxu0 0.0
  %1682 = vmatpush1.msra.mxu0 0.0
  %1683 = vmatprep.subr.mxu0 0.0
  %1684 = vmatpush1.msra.mxu0 0.0
  %1685 = vmatprep.subr.mxu0 0.0
  %1686 = vmatpush1.msra.mxu0 0.0
  %1687 = vmatprep.subr.mxu0 0.0
  %1688 = vmatpush1.msra.mxu0 0.0
  %1689 = vmatprep.subr.mxu0 0.0
  %1690 = vmatpush1.msra.mxu0 0.0
  %1691 = vmatprep.subr.mxu0 0.0
  %1692 = vmatpush1.msra.mxu0 0.0
  %1693 = vmatprep.subr.mxu0 0.0
  %1694 = vmatpush1.msra.mxu0 0.0
  %1695 = vmatprep.subr.mxu0 0.0
  %1696 = vmatpush1.msra.mxu0 0.0
  %1697 = vmatprep.subr.mxu0 0.0
  %1698 = vmatpush1.msra.mxu0 0.0
  %1699 = vmatprep.subr.mxu0 0.0
  %1700 = vmatpush1.msra.mxu0 0.0
  %1701 = vmatprep.mubr.f32.mxu0 0.0
  %1702 = vmatmul.mubr.f32.gmra.mrb[0].mxu0 %v1632
  %v1703 = vpop.f32.mrb[0].mxu0
  %v1704 = vadd.f32 %v1626, %v1703
  %v1705 = vpop.f32.mrb[0].mxu0
  %v1706 = vadd.f32 %v1630, %v1705
  %1707 = vmatprep.mubr.f32.mxu0 0.0
  %1708 = vmatmul.mubr.f32.gmra.mrb[0].mxu0 %v1635
  %v1709 = vpop.f32.mrb[0].mxu0
  %v1710 = vadd.f32 %v1626, %v1709
  %v1711 = vpop.f32.mrb[0].mxu0
  %v1712 = vadd.f32 %v1630, %v1711
  %1713 = vdwg.mxu0
  %1716 = vrot.lane.b32.xlu0 %v1704, 64
  %v1717 = vpop.permute.xlu0 %1716
  %1718 = vrot.lane.b32.xlu0 %v1710, 64
  %v1719 = vpop.permute.xlu0 %1718
  %1722 = vxpose.xlu0.b32.start [1/16] %v1717, 128
  %1723 = vxpose.xlu0.b32.cont [2/16] %v1719, 128
  %1724 = vxpose.xlu0.b32.cont [3/16] 0.0, 128
  %1725 = vxpose.xlu0.b32.cont [4/16] 0.0, 128
  %1726 = vxpose.xlu0.b32.cont [5/16] 0.0, 128
  %1727 = vxpose.xlu0.b32.cont [6/16] 0.0, 128
  %1728 = vxpose.xlu0.b32.cont [7/16] 0.0, 128
  %1729 = vxpose.xlu0.b32.cont [8/16] 0.0, 128
  %1730 = vxpose.xlu0.b32.cont [9/16] 0.0, 128
  %1731 = vxpose.xlu0.b32.cont [10/16] 0.0, 128
  %1732 = vxpose.xlu0.b32.cont [11/16] 0.0, 128
  %1733 = vxpose.xlu0.b32.cont [12/16] 0.0, 128
  %1734 = vxpose.xlu0.b32.cont [13/16] 0.0, 128
  %1735 = vxpose.xlu0.b32.cont [14/16] 0.0, 128
  %1736 = vxpose.xlu0.b32.cont [15/16] 0.0, 128
  %1737 = vxpose.xlu0.b32.end [16/16] 0.0, 128
  %v1738 = vpop.trf.xlu0
  %v1739 = vpop.trf.xlu0
  %v1740 = vpop.trf.xlu0
  %v1741 = vpop.trf.xlu0
  %v1742 = vpop.trf.xlu0
  %v1743 = vpop.trf.xlu0
  %v1744 = vpop.trf.xlu0
  %v1745 = vpop.trf.xlu0
  %v1746 = vpop.trf.xlu0
  %v1747 = vpop.trf.xlu0
  %v1748 = vpop.trf.xlu0
  %v1749 = vpop.trf.xlu0
  %v1750 = vpop.trf.xlu0
  %v1751 = vpop.trf.xlu0
  %v1752 = vpop.trf.xlu0
  %v1753 = vpop.trf.xlu0
  %v1755 = vsel %vm588, %v1738, 0
  %v1758 = vsel %vm588, %v1739, 0
  %v1761 = vsel %vm588, %v1740, 0
  %v1764 = vsel %vm588, %v1741, 0
  %v1767 = vsel %vm588, %v1742, 0
  %v1770 = vsel %vm588, %v1743, 0
  %v1773 = vsel %vm588, %v1744, 0
  %v1776 = vsel %vm588, %v1745, 0
  %1778 = vmatprep.subr.mxu0 0.0
  %1779 = vmatpush1.msra.mxu0 %v46
  %1780 = vmatprep.subr.mxu0 0.0
  %1781 = vmatpush1.msra.mxu0 %v47
  %1782 = vmatprep.subr.mxu0 0.0
  %1783 = vmatpush1.msra.mxu0 0.0
  %1784 = vmatprep.subr.mxu0 0.0
  %1785 = vmatpush1.msra.mxu0 0.0
  %1786 = vmatprep.subr.mxu0 0.0
  %1787 = vmatpush1.msra.mxu0 0.0
  %1788 = vmatprep.subr.mxu0 0.0
  %1789 = vmatpush1.msra.mxu0 0.0
  %1790 = vmatprep.subr.mxu0 0.0
  %1791 = vmatpush1.msra.mxu0 0.0
  %1792 = vmatprep.subr.mxu0 0.0
  %1793 = vmatpush1.msra.mxu0 0.0
  %1794 = vmatprep.subr.mxu0 0.0
  %1795 = vmatpush1.msra.mxu0 0.0
  %1796 = vmatprep.subr.mxu0 0.0
  %1797 = vmatpush1.msra.mxu0 0.0
  %1798 = vmatprep.subr.mxu0 0.0
  %1799 = vmatpush1.msra.mxu0 0.0
  %1800 = vmatprep.subr.mxu0 0.0
  %1801 = vmatpush1.msra.mxu0 0.0
  %1802 = vmatprep.subr.mxu0 0.0
  %1803 = vmatpush1.msra.mxu0 0.0
  %1804 = vmatprep.subr.mxu0 0.0
  %1805 = vmatpush1.msra.mxu0 0.0
  %1806 = vmatprep.subr.mxu0 0.0
  %1807 = vmatpush1.msra.mxu0 0.0
  %1808 = vmatprep.subr.mxu0 0.0
  %1809 = vmatpush1.msra.mxu0 0.0
  %1810 = vmatprep.subr.mxu0 0.0
  %1811 = vmatpush1.msra.mxu0 0.0
  %1812 = vmatprep.subr.mxu0 0.0
  %1813 = vmatpush1.msra.mxu0 0.0
  %1814 = vmatprep.subr.mxu0 0.0
  %1815 = vmatpush1.msra.mxu0 0.0
  %1816 = vmatprep.subr.mxu0 0.0
  %1817 = vmatpush1.msra.mxu0 0.0
  %1818 = vmatprep.subr.mxu0 0.0
  %1819 = vmatpush1.msra.mxu0 0.0
  %1820 = vmatprep.subr.mxu0 0.0
  %1821 = vmatpush1.msra.mxu0 0.0
  %1822 = vmatprep.subr.mxu0 0.0
  %1823 = vmatpush1.msra.mxu0 0.0
  %1824 = vmatprep.subr.mxu0 0.0
  %1825 = vmatpush1.msra.mxu0 0.0
  %1826 = vmatprep.subr.mxu0 0.0
  %1827 = vmatpush1.msra.mxu0 0.0
  %1828 = vmatprep.subr.mxu0 0.0
  %1829 = vmatpush1.msra.mxu0 0.0
  %1830 = vmatprep.subr.mxu0 0.0
  %1831 = vmatpush1.msra.mxu0 0.0
  %1832 = vmatprep.subr.mxu0 0.0
  %1833 = vmatpush1.msra.mxu0 0.0
  %1834 = vmatprep.subr.mxu0 0.0
  %1835 = vmatpush1.msra.mxu0 0.0
  %1836 = vmatprep.subr.mxu0 0.0
  %1837 = vmatpush1.msra.mxu0 0.0
  %1838 = vmatprep.subr.mxu0 0.0
  %1839 = vmatpush1.msra.mxu0 0.0
  %1840 = vmatprep.subr.mxu0 0.0
  %1841 = vmatpush1.msra.mxu0 0.0
  %1842 = vmatprep.mubr.f32.mxu0 0.0
  %1843 = vmatmul.mubr.f32.gmra.mrb[0].mxu0 %v1755
  %v1844 = vpop.f32.mrb[0].mxu0
  %v1845 = vadd.f32 0.0, %v1844
  %v1846 = vpop.f32.mrb[0].mxu0
  %1847 = vmatprep.mubr.f32.mxu0 0.0
  %1848 = vmatmul.mubr.f32.gmra.mrb[0].mxu0 %v1758
  %v1849 = vpop.f32.mrb[0].mxu0
  %v1850 = vadd.f32 0.0, %v1849
  %v1851 = vpop.f32.mrb[0].mxu0
  %1852 = vmatprep.mubr.f32.mxu0 0.0
  %1853 = vmatmul.mubr.f32.gmra.mrb[0].mxu0 %v1761
  %v1854 = vpop.f32.mrb[0].mxu0
  %v1855 = vadd.f32 0.0, %v1854
  %v1856 = vpop.f32.mrb[0].mxu0
  %1857 = vmatprep.mubr.f32.mxu0 0.0
  %1858 = vmatmul.mubr.f32.gmra.mrb[0].mxu0 %v1764
  %v1859 = vpop.f32.mrb[0].mxu0
  %v1860 = vadd.f32 0.0, %v1859
  %v1861 = vpop.f32.mrb[0].mxu0
  %1862 = vmatprep.mubr.f32.mxu0 0.0
  %1863 = vmatmul.mubr.f32.gmra.mrb[0].mxu0 %v1767
  %v1864 = vpop.f32.mrb[0].mxu0
  %v1865 = vadd.f32 0.0, %v1864
  %v1866 = vpop.f32.mrb[0].mxu0
  %1867 = vmatprep.mubr.f32.mxu0 0.0
  %1868 = vmatmul.mubr.f32.gmra.mrb[0].mxu0 %v1770
  %v1869 = vpop.f32.mrb[0].mxu0
  %v1870 = vadd.f32 0.0, %v1869
  %v1871 = vpop.f32.mrb[0].mxu0
  %1872 = vmatprep.mubr.f32.mxu0 0.0
  %1873 = vmatmul.mubr.f32.gmra.mrb[0].mxu0 %v1773
  %v1874 = vpop.f32.mrb[0].mxu0
  %v1875 = vadd.f32 0.0, %v1874
  %v1876 = vpop.f32.mrb[0].mxu0
  %1877 = vmatprep.mubr.f32.mxu0 0.0
  %1878 = vmatmul.mubr.f32.gmra.mrb[0].mxu0 %v1776
  %v1879 = vpop.f32.mrb[0].mxu0
  %v1880 = vadd.f32 0.0, %v1879
  %v1881 = vpop.f32.mrb[0].mxu0
  %1882 = vdwg.mxu0
  %v1883 = vmul.f32 %v1845, %v75
  %v1884 = vmul.f32 %v1850, %v76
  %v1885 = vmul.f32 %v1855, %v77
  %v1886 = vmul.f32 %v1860, %v78
  %v1887 = vmul.f32 %v1865, %v79
  %v1888 = vmul.f32 %v1870, %v80
  %v1889 = vmul.f32 %v1875, %v81
  %v1890 = vmul.f32 %v1880, %v82
  %v1891 = vsel %vm301, %v1704, 0
  %v1893 = vsel %vm301, %v1710, 0
  %1895 = vmatprep.subr.mxu0 0.0
  %1896 = vmatpush1.msra.mxu0 %v1883
  %1897 = vmatprep.subr.mxu0 0.0
  %1898 = vmatpush1.msra.mxu0 %v1884
  %1899 = vmatprep.subr.mxu0 0.0
  %1900 = vmatpush1.msra.mxu0 %v1885
  %1901 = vmatprep.subr.mxu0 0.0
  %1902 = vmatpush1.msra.mxu0 %v1886
  %1903 = vmatprep.subr.mxu0 0.0
  %1904 = vmatpush1.msra.mxu0 %v1887
  %1905 = vmatprep.subr.mxu0 0.0
  %1906 = vmatpush1.msra.mxu0 %v1888
  %1907 = vmatprep.subr.mxu0 0.0
  %1908 = vmatpush1.msra.mxu0 %v1889
  %1909 = vmatprep.subr.mxu0 0.0
  %1910 = vmatpush1.msra.mxu0 %v1890
  %1911 = vmatprep.subr.mxu0 0.0
  %1912 = vmatpush1.msra.mxu0 0.0
  %1913 = vmatprep.subr.mxu0 0.0
  %1914 = vmatpush1.msra.mxu0 0.0
  %1915 = vmatprep.subr.mxu0 0.0
  %1916 = vmatpush1.msra.mxu0 0.0
  %1917 = vmatprep.subr.mxu0 0.0
  %1918 = vmatpush1.msra.mxu0 0.0
  %1919 = vmatprep.subr.mxu0 0.0
  %1920 = vmatpush1.msra.mxu0 0.0
  %1921 = vmatprep.subr.mxu0 0.0
  %1922 = vmatpush1.msra.mxu0 0.0
  %1923 = vmatprep.subr.mxu0 0.0
  %1924 = vmatpush1.msra.mxu0 0.0
  %1925 = vmatprep.subr.mxu0 0.0
  %1926 = vmatpush1.msra.mxu0 0.0
  %1927 = vmatprep.subr.mxu0 0.0
  %1928 = vmatpush1.msra.mxu0 0.0
  %1929 = vmatprep.subr.mxu0 0.0
  %1930 = vmatpush1.msra.mxu0 0.0
  %1931 = vmatprep.subr.mxu0 0.0
  %1932 = vmatpush1.msra.mxu0 0.0
  %1933 = vmatprep.subr.mxu0 0.0
  %1934 = vmatpush1.msra.mxu0 0.0
  %1935 = vmatprep.subr.mxu0 0.0
  %1936 = vmatpush1.msra.mxu0 0.0
  %1937 = vmatprep.subr.mxu0 0.0
  %1938 = vmatpush1.msra.mxu0 0.0
  %1939 = vmatprep.subr.mxu0 0.0
  %1940 = vmatpush1.msra.mxu0 0.0
  %1941 = vmatprep.subr.mxu0 0.0
  %1942 = vmatpush1.msra.mxu0 0.0
  %1943 = vmatprep.subr.mxu0 0.0
  %1944 = vmatpush1.msra.mxu0 0.0
  %1945 = vmatprep.subr.mxu0 0.0
  %1946 = vmatpush1.msra.mxu0 0.0
  %1947 = vmatprep.subr.mxu0 0.0
  %1948 = vmatpush1.msra.mxu0 0.0
  %1949 = vmatprep.subr.mxu0 0.0
  %1950 = vmatpush1.msra.mxu0 0.0
  %1951 = vmatprep.subr.mxu0 0.0
  %1952 = vmatpush1.msra.mxu0 0.0
  %1953 = vmatprep.subr.mxu0 0.0
  %1954 = vmatpush1.msra.mxu0 0.0
  %1955 = vmatprep.subr.mxu0 0.0
  %1956 = vmatpush1.msra.mxu0 0.0
  %1957 = vmatprep.subr.mxu0 0.0
  %1958 = vmatpush1.msra.mxu0 0.0
  %1959 = vmatprep.mubr.f32.mxu0 0.0
  %1960 = vmatmul.mubr.f32.gmra.mrb[0].mxu0 %v1891
  %v1961 = vpop.f32.mrb[0].mxu0
  %v1962 = vadd.f32 0.0, %v1961
  %v1963 = vpop.f32.mrb[0].mxu0
  %1964 = vmatprep.mubr.f32.mxu0 0.0
  %1965 = vmatmul.mubr.f32.gmra.mrb[0].mxu0 %v1893
  %v1966 = vpop.f32.mrb[0].mxu0
  %v1967 = vadd.f32 0.0, %v1966
  %v1968 = vpop.f32.mrb[0].mxu0
  %1969 = vdwg.mxu0
  %v1970 = vmul.f32 %v1962, 0.35355338
  %v1971 = vmul.f32 %v1967, 0.35355338
  %v1972 = vadd.f32 %v1970, %v51
  %v1973 = vadd.f32 %v1971, %v52
  %1974 = vmax.xlane.f32.xlu0 %v1972
  %v1975 = vpop.xlane.xlu0 %1974
  %1976 = vmax.xlane.f32.xlu0 %v1973
  %v1977 = vpop.xlane.xlu0 %1976
  %v1978 = vsub.f32 %v1972, %v1975
  %v1979 = vsub.f32 %v1973, %v1977
  %v1980 = vmul.f32 %v1978, 1.442695
  %v1981 = vpow.pop %v1980
  %v1982 = vmul.f32 %v1979, 1.442695
  %v1983 = vpow.pop %v1982
  %1984 = vmatprep.subr.mxu0 0.0
  %1985 = vmatpush1.msra.mxu0 %v255
  %1986 = vmatprep.subr.mxu0 0.0
  %1987 = vmatpush1.msra.mxu0 %v256
  %1988 = vmatprep.subr.mxu0 0.0
  %1989 = vmatpush1.msra.mxu0 %v257
  %1990 = vmatprep.subr.mxu0 0.0
  %1991 = vmatpush1.msra.mxu0 %v258
  %1992 = vmatprep.subr.mxu0 0.0
  %1993 = vmatpush1.msra.mxu0 %v259
  %1994 = vmatprep.subr.mxu0 0.0
  %1995 = vmatpush1.msra.mxu0 %v260
  %1996 = vmatprep.subr.mxu0 0.0
  %1997 = vmatpush1.msra.mxu0 %v261
  %1998 = vmatprep.subr.mxu0 0.0
  %1999 = vmatpush1.msra.mxu0 %v262
  %2000 = vmatprep.subr.mxu0 0.0
  %2001 = vmatpush1.msra.mxu0 %v263
  %2002 = vmatprep.subr.mxu0 0.0
  %2003 = vmatpush1.msra.mxu0 %v264
  %2004 = vmatprep.subr.mxu0 0.0
  %2005 = vmatpush1.msra.mxu0 %v265
  %2006 = vmatprep.subr.mxu0 0.0
  %2007 = vmatpush1.msra.mxu0 %v266
  %2008 = vmatprep.subr.mxu0 0.0
  %2009 = vmatpush1.msra.mxu0 %v267
  %2010 = vmatprep.subr.mxu0 0.0
  %2011 = vmatpush1.msra.mxu0 %v268
  %2012 = vmatprep.subr.mxu0 0.0
  %2013 = vmatpush1.msra.mxu0 %v269
  %2014 = vmatprep.subr.mxu0 0.0
  %2015 = vmatpush1.msra.mxu0 %v270
  %2016 = vmatprep.subr.mxu0 0.0
  %2017 = vmatpush1.msra.mxu0 0.0
  %2018 = vmatprep.subr.mxu0 0.0
  %2019 = vmatpush1.msra.mxu0 0.0
  %2020 = vmatprep.subr.mxu0 0.0
  %2021 = vmatpush1.msra.mxu0 0.0
  %2022 = vmatprep.subr.mxu0 0.0
  %2023 = vmatpush1.msra.mxu0 0.0
  %2024 = vmatprep.subr.mxu0 0.0
  %2025 = vmatpush1.msra.mxu0 0.0
  %2026 = vmatprep.subr.mxu0 0.0
  %2027 = vmatpush1.msra.mxu0 0.0
  %2028 = vmatprep.subr.mxu0 0.0
  %2029 = vmatpush1.msra.mxu0 0.0
  %2030 = vmatprep.subr.mxu0 0.0
  %2031 = vmatpush1.msra.mxu0 0.0
  %2032 = vmatprep.subr.mxu0 0.0
  %2033 = vmatpush1.msra.mxu0 0.0
  %2034 = vmatprep.subr.mxu0 0.0
  %2035 = vmatpush1.msra.mxu0 0.0
  %2036 = vmatprep.subr.mxu0 0.0
  %2037 = vmatpush1.msra.mxu0 0.0
  %2038 = vmatprep.subr.mxu0 0.0
  %2039 = vmatpush1.msra.mxu0 0.0
  %2040 = vmatprep.subr.mxu0 0.0
  %2041 = vmatpush1.msra.mxu0 0.0
  %2042 = vmatprep.subr.mxu0 0.0
  %2043 = vmatpush1.msra.mxu0 0.0
  %2044 = vmatprep.subr.mxu0 0.0
  %2045 = vmatpush1.msra.mxu0 0.0
  %2046 = vmatprep.subr.mxu0 0.0
  %2047 = vmatpush1.msra.mxu0 0.0
  %2048 = vmatprep.mubr.f32.mxu0 0.0
  %2049 = vmatmul.mubr.f32.gmra.mrb[0].mxu0 %v1981
  %v2050 = vpop.f32.mrb[0].mxu0
  %v2051 = vadd.f32 1e-30, %v2050
  %v2052 = vpop.f32.mrb[0].mxu0
  %2053 = vmatprep.mubr.f32.mxu0 0.0
  %2054 = vmatmul.mubr.f32.gmra.mrb[0].mxu0 %v1983
  %v2055 = vpop.f32.mrb[0].mxu0
  %v2056 = vadd.f32 1e-30, %v2055
  %v2057 = vpop.f32.mrb[0].mxu0
  %2058 = vdwg.mxu0
  %v2059 = vrcp.pop %v2051
  %v2060 = vrcp.pop %v2056
  %v2061 = vmul.f32 %v2051, %v2059
  %v2062 = vmul.f32 %v2056, %v2060
  %v2063 = vsub.f32 2.0, %v2061
  %v2064 = vsub.f32 2.0, %v2062
  %v2065 = vmul.f32 %v2059, %v2063
  %v2066 = vmul.f32 %v2060, %v2064
  %v2067 = vmul.f32 %v1981, %v2065
  %v2068 = vmul.f32 %v1983, %v2066
  %2069 = vmatprep.subr.mxu0 0.0
  %2070 = vmatpush1.msra.mxu0 %v1706
  %2071 = vmatprep.subr.mxu0 0.0
  %2072 = vmatpush1.msra.mxu0 %v1712
  %2073 = vmatprep.subr.mxu0 0.0
  %2074 = vmatpush1.msra.mxu0 0.0
  %2075 = vmatprep.subr.mxu0 0.0
  %2076 = vmatpush1.msra.mxu0 0.0
  %2077 = vmatprep.subr.mxu0 0.0
  %2078 = vmatpush1.msra.mxu0 0.0
  %2079 = vmatprep.subr.mxu0 0.0
  %2080 = vmatpush1.msra.mxu0 0.0
  %2081 = vmatprep.subr.mxu0 0.0
  %2082 = vmatpush1.msra.mxu0 0.0
  %2083 = vmatprep.subr.mxu0 0.0
  %2084 = vmatpush1.msra.mxu0 0.0
  %2085 = vmatprep.subr.mxu0 0.0
  %2086 = vmatpush1.msra.mxu0 0.0
  %2087 = vmatprep.subr.mxu0 0.0
  %2088 = vmatpush1.msra.mxu0 0.0
  %2089 = vmatprep.subr.mxu0 0.0
  %2090 = vmatpush1.msra.mxu0 0.0
  %2091 = vmatprep.subr.mxu0 0.0
  %2092 = vmatpush1.msra.mxu0 0.0
  %2093 = vmatprep.subr.mxu0 0.0
  %2094 = vmatpush1.msra.mxu0 0.0
  %2095 = vmatprep.subr.mxu0 0.0
  %2096 = vmatpush1.msra.mxu0 0.0
  %2097 = vmatprep.subr.mxu0 0.0
  %2098 = vmatpush1.msra.mxu0 0.0
  %2099 = vmatprep.subr.mxu0 0.0
  %2100 = vmatpush1.msra.mxu0 0.0
  %2101 = vmatprep.subr.mxu0 0.0
  %2102 = vmatpush1.msra.mxu0 0.0
  %2103 = vmatprep.subr.mxu0 0.0
  %2104 = vmatpush1.msra.mxu0 0.0
  %2105 = vmatprep.subr.mxu0 0.0
  %2106 = vmatpush1.msra.mxu0 0.0
  %2107 = vmatprep.subr.mxu0 0.0
  %2108 = vmatpush1.msra.mxu0 0.0
  %2109 = vmatprep.subr.mxu0 0.0
  %2110 = vmatpush1.msra.mxu0 0.0
  %2111 = vmatprep.subr.mxu0 0.0
  %2112 = vmatpush1.msra.mxu0 0.0
  %2113 = vmatprep.subr.mxu0 0.0
  %2114 = vmatpush1.msra.mxu0 0.0
  %2115 = vmatprep.subr.mxu0 0.0
  %2116 = vmatpush1.msra.mxu0 0.0
  %2117 = vmatprep.subr.mxu0 0.0
  %2118 = vmatpush1.msra.mxu0 0.0
  %2119 = vmatprep.subr.mxu0 0.0
  %2120 = vmatpush1.msra.mxu0 0.0
  %2121 = vmatprep.subr.mxu0 0.0
  %2122 = vmatpush1.msra.mxu0 0.0
  %2123 = vmatprep.subr.mxu0 0.0
  %2124 = vmatpush1.msra.mxu0 0.0
  %2125 = vmatprep.subr.mxu0 0.0
  %2126 = vmatpush1.msra.mxu0 0.0
  %2127 = vmatprep.subr.mxu0 0.0
  %2128 = vmatpush1.msra.mxu0 0.0
  %2129 = vmatprep.subr.mxu0 0.0
  %2130 = vmatpush1.msra.mxu0 0.0
  %2131 = vmatprep.subr.mxu0 0.0
  %2132 = vmatpush1.msra.mxu0 0.0
  %2133 = vmatprep.mubr.f32.mxu0 0.0
  %2134 = vmatmul.mubr.f32.gmra.mrb[0].mxu0 %v905
  %v2135 = vpop.f32.mrb[0].mxu0
  %v2136 = vadd.f32 0.0, %v2135
  %v2137 = vpop.f32.mrb[0].mxu0
  %2138 = vmatprep.mubr.f32.mxu0 0.0
  %2139 = vmatmul.mubr.f32.gmra.mrb[0].mxu0 %v908
  %v2140 = vpop.f32.mrb[0].mxu0
  %v2141 = vadd.f32 0.0, %v2140
  %v2142 = vpop.f32.mrb[0].mxu0
  %2143 = vmatprep.mubr.f32.mxu0 0.0
  %2144 = vmatmul.mubr.f32.gmra.mrb[0].mxu0 %v911
  %v2145 = vpop.f32.mrb[0].mxu0
  %v2146 = vadd.f32 0.0, %v2145
  %v2147 = vpop.f32.mrb[0].mxu0
  %2148 = vmatprep.mubr.f32.mxu0 0.0
  %2149 = vmatmul.mubr.f32.gmra.mrb[0].mxu0 %v914
  %v2150 = vpop.f32.mrb[0].mxu0
  %v2151 = vadd.f32 0.0, %v2150
  %v2152 = vpop.f32.mrb[0].mxu0
  %2153 = vmatprep.mubr.f32.mxu0 0.0
  %2154 = vmatmul.mubr.f32.gmra.mrb[0].mxu0 %v917
  %v2155 = vpop.f32.mrb[0].mxu0
  %v2156 = vadd.f32 0.0, %v2155
  %v2157 = vpop.f32.mrb[0].mxu0
  %2158 = vmatprep.mubr.f32.mxu0 0.0
  %2159 = vmatmul.mubr.f32.gmra.mrb[0].mxu0 %v920
  %v2160 = vpop.f32.mrb[0].mxu0
  %v2161 = vadd.f32 0.0, %v2160
  %v2162 = vpop.f32.mrb[0].mxu0
  %2163 = vmatprep.mubr.f32.mxu0 0.0
  %2164 = vmatmul.mubr.f32.gmra.mrb[0].mxu0 %v923
  %v2165 = vpop.f32.mrb[0].mxu0
  %v2166 = vadd.f32 0.0, %v2165
  %v2167 = vpop.f32.mrb[0].mxu0
  %2168 = vmatprep.mubr.f32.mxu0 0.0
  %2169 = vmatmul.mubr.f32.gmra.mrb[0].mxu0 %v926
  %v2170 = vpop.f32.mrb[0].mxu0
  %v2171 = vadd.f32 0.0, %v2170
  %v2172 = vpop.f32.mrb[0].mxu0
  %2173 = vmatprep.mubr.f32.mxu0 0.0
  %2174 = vmatmul.mubr.f32.gmra.mrb[0].mxu0 %v929
  %v2175 = vpop.f32.mrb[0].mxu0
  %v2176 = vadd.f32 0.0, %v2175
  %v2177 = vpop.f32.mrb[0].mxu0
  %2178 = vmatprep.mubr.f32.mxu0 0.0
  %2179 = vmatmul.mubr.f32.gmra.mrb[0].mxu0 %v932
  %v2180 = vpop.f32.mrb[0].mxu0
  %v2181 = vadd.f32 0.0, %v2180
  %v2182 = vpop.f32.mrb[0].mxu0
  %2183 = vmatprep.mubr.f32.mxu0 0.0
  %2184 = vmatmul.mubr.f32.gmra.mrb[0].mxu0 %v935
  %v2185 = vpop.f32.mrb[0].mxu0
  %v2186 = vadd.f32 0.0, %v2185
  %v2187 = vpop.f32.mrb[0].mxu0
  %2188 = vmatprep.mubr.f32.mxu0 0.0
  %2189 = vmatmul.mubr.f32.gmra.mrb[0].mxu0 %v938
  %v2190 = vpop.f32.mrb[0].mxu0
  %v2191 = vadd.f32 0.0, %v2190
  %v2192 = vpop.f32.mrb[0].mxu0
  %2193 = vmatprep.mubr.f32.mxu0 0.0
  %2194 = vmatmul.mubr.f32.gmra.mrb[0].mxu0 %v941
  %v2195 = vpop.f32.mrb[0].mxu0
  %v2196 = vadd.f32 0.0, %v2195
  %v2197 = vpop.f32.mrb[0].mxu0
  %2198 = vmatprep.mubr.f32.mxu0 0.0
  %2199 = vmatmul.mubr.f32.gmra.mrb[0].mxu0 %v944
  %v2200 = vpop.f32.mrb[0].mxu0
  %v2201 = vadd.f32 0.0, %v2200
  %v2202 = vpop.f32.mrb[0].mxu0
  %2203 = vmatprep.mubr.f32.mxu0 0.0
  %2204 = vmatmul.mubr.f32.gmra.mrb[0].mxu0 %v947
  %v2205 = vpop.f32.mrb[0].mxu0
  %v2206 = vadd.f32 0.0, %v2205
  %v2207 = vpop.f32.mrb[0].mxu0
  %2208 = vmatprep.mubr.f32.mxu0 0.0
  %2209 = vmatmul.mubr.f32.gmra.mrb[0].mxu0 %v950
  %v2210 = vpop.f32.mrb[0].mxu0
  %v2211 = vadd.f32 0.0, %v2210
  %v2212 = vpop.f32.mrb[0].mxu0
  %2213 = vdwg.mxu0
  %v2214 = vmul.f32 %v2136, %v223
  %v2215 = vmul.f32 %v2141, %v224
  %v2216 = vmul.f32 %v2146, %v225
  %v2217 = vmul.f32 %v2151, %v226
  %v2218 = vmul.f32 %v2156, %v227
  %v2219 = vmul.f32 %v2161, %v228
  %v2220 = vmul.f32 %v2166, %v229
  %v2221 = vmul.f32 %v2171, %v230
  %v2222 = vmul.f32 %v2176, %v231
  %v2223 = vmul.f32 %v2181, %v232
  %v2224 = vmul.f32 %v2186, %v233
  %v2225 = vmul.f32 %v2191, %v234
  %v2226 = vmul.f32 %v2196, %v235
  %v2227 = vmul.f32 %v2201, %v236
  %v2228 = vmul.f32 %v2206, %v237
  %v2229 = vmul.f32 %v2211, %v238
  %2230 = vmatprep.subr.mxu0 0.0
  %2231 = vmatpush1.msra.mxu0 %v2214
  %2232 = vmatprep.subr.mxu0 0.0
  %2233 = vmatpush1.msra.mxu0 %v2215
  %2234 = vmatprep.subr.mxu0 0.0
  %2235 = vmatpush1.msra.mxu0 %v2216
  %2236 = vmatprep.subr.mxu0 0.0
  %2237 = vmatpush1.msra.mxu0 %v2217
  %2238 = vmatprep.subr.mxu0 0.0
  %2239 = vmatpush1.msra.mxu0 %v2218
  %2240 = vmatprep.subr.mxu0 0.0
  %2241 = vmatpush1.msra.mxu0 %v2219
  %2242 = vmatprep.subr.mxu0 0.0
  %2243 = vmatpush1.msra.mxu0 %v2220
  %2244 = vmatprep.subr.mxu0 0.0
  %2245 = vmatpush1.msra.mxu0 %v2221
  %2246 = vmatprep.subr.mxu0 0.0
  %2247 = vmatpush1.msra.mxu0 %v2222
  %2248 = vmatprep.subr.mxu0 0.0
  %2249 = vmatpush1.msra.mxu0 %v2223
  %2250 = vmatprep.subr.mxu0 0.0
  %2251 = vmatpush1.msra.mxu0 %v2224
  %2252 = vmatprep.subr.mxu0 0.0
  %2253 = vmatpush1.msra.mxu0 %v2225
  %2254 = vmatprep.subr.mxu0 0.0
  %2255 = vmatpush1.msra.mxu0 %v2226
  %2256 = vmatprep.subr.mxu0 0.0
  %2257 = vmatpush1.msra.mxu0 %v2227
  %2258 = vmatprep.subr.mxu0 0.0
  %2259 = vmatpush1.msra.mxu0 %v2228
  %2260 = vmatprep.subr.mxu0 0.0
  %2261 = vmatpush1.msra.mxu0 %v2229
  %2262 = vmatprep.subr.mxu0 0.0
  %2263 = vmatpush1.msra.mxu0 0.0
  %2264 = vmatprep.subr.mxu0 0.0
  %2265 = vmatpush1.msra.mxu0 0.0
  %2266 = vmatprep.subr.mxu0 0.0
  %2267 = vmatpush1.msra.mxu0 0.0
  %2268 = vmatprep.subr.mxu0 0.0
  %2269 = vmatpush1.msra.mxu0 0.0
  %2270 = vmatprep.subr.mxu0 0.0
  %2271 = vmatpush1.msra.mxu0 0.0
  %2272 = vmatprep.subr.mxu0 0.0
  %2273 = vmatpush1.msra.mxu0 0.0
  %2274 = vmatprep.subr.mxu0 0.0
  %2275 = vmatpush1.msra.mxu0 0.0
  %2276 = vmatprep.subr.mxu0 0.0
  %2277 = vmatpush1.msra.mxu0 0.0
  %2278 = vmatprep.subr.mxu0 0.0
  %2279 = vmatpush1.msra.mxu0 0.0
  %2280 = vmatprep.subr.mxu0 0.0
  %2281 = vmatpush1.msra.mxu0 0.0
  %2282 = vmatprep.subr.mxu0 0.0
  %2283 = vmatpush1.msra.mxu0 0.0
  %2284 = vmatprep.subr.mxu0 0.0
  %2285 = vmatpush1.msra.mxu0 0.0
  %2286 = vmatprep.subr.mxu0 0.0
  %2287 = vmatpush1.msra.mxu0 0.0
  %2288 = vmatprep.subr.mxu0 0.0
  %2289 = vmatpush1.msra.mxu0 0.0
  %2290 = vmatprep.subr.mxu0 0.0
  %2291 = vmatpush1.msra.mxu0 0.0
  %2292 = vmatprep.subr.mxu0 0.0
  %2293 = vmatpush1.msra.mxu0 0.0
  %2294 = vmatprep.mubr.f32.mxu0 0.0
  %2295 = vmatmul.mubr.f32.gmra.mrb[0].mxu0 %v2067
  %v2296 = vpop.f32.mrb[0].mxu0
  %v2297 = vadd.f32 0.0, %v2296
  %v2298 = vpop.f32.mrb[0].mxu0
  %2299 = vmatprep.mubr.f32.mxu0 0.0
  %2300 = vmatmul.mubr.f32.gmra.mrb[0].mxu0 %v2068
  %v2301 = vpop.f32.mrb[0].mxu0
  %v2302 = vadd.f32 0.0, %v2301
  %v2303 = vpop.f32.mrb[0].mxu0
  %2304 = vdwg.mxu0
  %v2305 = vlaneseq
  %v2306 = vshrl.u32 %v2305, 7
  %v2307 = vsub.s32 1, %v2306
  %v2308 = vrot.slane %v1621, %v2307
  %v2310 = vsel %vm301, %v2297, 0
  %v2313 = vsel %vm301, %v2302, 0
  %2315 = vmatprep.subr.mxu0 0.0
  %2316 = vmatpush1.msra.mxu0 %v1562
  %2317 = vmatprep.subr.mxu0 0.0
  %2318 = vmatpush1.msra.mxu0 %v1563
  %2319 = vmatprep.subr.mxu0 0.0
  %2320 = vmatpush1.msra.mxu0 %v1564
  %2321 = vmatprep.subr.mxu0 0.0
  %2322 = vmatpush1.msra.mxu0 %v1565
  %2323 = vmatprep.subr.mxu0 0.0
  %2324 = vmatpush1.msra.mxu0 %v1566
  %2325 = vmatprep.subr.mxu0 0.0
  %2326 = vmatpush1.msra.mxu0 %v1567
  %2327 = vmatprep.subr.mxu0 0.0
  %2328 = vmatpush1.msra.mxu0 %v1568
  %2329 = vmatprep.subr.mxu0 0.0
  %2330 = vmatpush1.msra.mxu0 %v1569
  %2331 = vmatprep.subr.mxu0 0.0
  %2332 = vmatpush1.msra.mxu0 0.0
  %2333 = vmatprep.subr.mxu0 0.0
  %2334 = vmatpush1.msra.mxu0 0.0
  %2335 = vmatprep.subr.mxu0 0.0
  %2336 = vmatpush1.msra.mxu0 0.0
  %2337 = vmatprep.subr.mxu0 0.0
  %2338 = vmatpush1.msra.mxu0 0.0
  %2339 = vmatprep.subr.mxu0 0.0
  %2340 = vmatpush1.msra.mxu0 0.0
  %2341 = vmatprep.subr.mxu0 0.0
  %2342 = vmatpush1.msra.mxu0 0.0
  %2343 = vmatprep.subr.mxu0 0.0
  %2344 = vmatpush1.msra.mxu0 0.0
  %2345 = vmatprep.subr.mxu0 0.0
  %2346 = vmatpush1.msra.mxu0 0.0
  %2347 = vmatprep.subr.mxu0 0.0
  %2348 = vmatpush1.msra.mxu0 0.0
  %2349 = vmatprep.subr.mxu0 0.0
  %2350 = vmatpush1.msra.mxu0 0.0
  %2351 = vmatprep.subr.mxu0 0.0
  %2352 = vmatpush1.msra.mxu0 0.0
  %2353 = vmatprep.subr.mxu0 0.0
  %2354 = vmatpush1.msra.mxu0 0.0
  %2355 = vmatprep.subr.mxu0 0.0
  %2356 = vmatpush1.msra.mxu0 0.0
  %2357 = vmatprep.subr.mxu0 0.0
  %2358 = vmatpush1.msra.mxu0 0.0
  %2359 = vmatprep.subr.mxu0 0.0
  %2360 = vmatpush1.msra.mxu0 0.0
  %2361 = vmatprep.subr.mxu0 0.0
  %2362 = vmatpush1.msra.mxu0 0.0
  %2363 = vmatprep.subr.mxu0 0.0
  %2364 = vmatpush1.msra.mxu0 0.0
  %2365 = vmatprep.subr.mxu0 0.0
  %2366 = vmatpush1.msra.mxu0 0.0
  %2367 = vmatprep.subr.mxu0 0.0
  %2368 = vmatpush1.msra.mxu0 0.0
  %2369 = vmatprep.subr.mxu0 0.0
  %2370 = vmatpush1.msra.mxu0 0.0
  %2371 = vmatprep.subr.mxu0 0.0
  %2372 = vmatpush1.msra.mxu0 0.0
  %2373 = vmatprep.subr.mxu0 0.0
  %2374 = vmatpush1.msra.mxu0 0.0
  %2375 = vmatprep.subr.mxu0 0.0
  %2376 = vmatpush1.msra.mxu0 0.0
  %2377 = vmatprep.subr.mxu0 0.0
  %2378 = vmatpush1.msra.mxu0 0.0
  %2379 = vmatprep.mubr.f32.mxu0 0.0
  %2380 = vmatmul.mubr.f32.gmra.mrb[0].mxu0 %v2310
  %v2381 = vpop.f32.mrb[0].mxu0
  %v2382 = vadd.f32 %v2308, %v2381
  %v2383 = vpop.f32.mrb[0].mxu0
  %2384 = vmatprep.mubr.f32.mxu0 0.0
  %2385 = vmatmul.mubr.f32.gmra.mrb[0].mxu0 %v2313
  %v2386 = vpop.f32.mrb[0].mxu0
  %v2387 = vadd.f32 %v2308, %v2386
  %v2388 = vpop.f32.mrb[0].mxu0
  %2389 = vdwg.mxu0
  %v2390 = vsel %vm301, %v2382, 0.0
  %2391 = vadd.xlane.f32.xlu0 %v2390
  %v2392 = vpop.xlane.xlu0 %2391
  %v2393 = vsel %vm301, %v2387, 0.0
  %2394 = vadd.xlane.f32.xlu0 %v2393
  %v2395 = vpop.xlane.xlu0 %2394
  %v2396 = vmul.f32 %v2392, %v1279
  %v2397 = vmul.f32 %v2395, %v1279
  %v2398 = vsub.f32 %v2382, %v2396
  %v2399 = vsub.f32 %v2387, %v2397
  %v2400 = vmul.f32 %v2398, %v2398
  %v2401 = vmul.f32 %v2399, %v2399
  %v2402 = vsel %vm301, %v2400, 0.0
  %2403 = vadd.xlane.f32.xlu0 %v2402
  %v2404 = vpop.xlane.xlu0 %2403
  %v2405 = vsel %vm301, %v2401, 0.0
  %2406 = vadd.xlane.f32.xlu0 %v2405
  %v2407 = vpop.xlane.xlu0 %2406
  %v2408 = vmul.f32 %v2404, %v1279
  %v2409 = vmul.f32 %v2407, %v1279
  %v2410 = vadd.f32 %v2408, 1e-05
  %v2411 = vadd.f32 %v2409, 1e-05
  %v2412 = vrsqrt.pop %v2410
  %v2413 = vrsqrt.pop %v2411
  %v2414 = vmul.f32 %v2398, %v2412
  %v2415 = vmul.f32 %v2399, %v2413
  %v2416 = vlaneseq
  %v2417 = vshrl.u32 %v2416, 7
  %v2418 = vsub.s32 2, %v2417
  %v2419 = vrot.slane %v1621, %v2418
  %v2420 = vmul.f32 %v2414, %v2419
  %v2421 = vmul.f32 %v2415, %v2419
  %v2422 = vlaneseq
  %v2423 = vshrl.u32 %v2422, 7
  %v2424 = vsub.s32 3, %v2423
  %v2425 = vrot.slane %v1621, %v2424
  %v2426 = vadd.f32 %v2420, %v2425
  %v2427 = vadd.f32 %v2421, %v2425
  %v2428 = vadd.f32 %v2426, %v1542
  %v2429 = vadd.f32 %v2427, %v1543
  %v2430 = vlaneseq
  %v2431 = vshrl.u32 %v2430, 7
  %v2432 = vsub.s32 4, %v2431
  %v2433 = vrot.slane %v1621, %v2432
  %v2434 = vlaneseq
  %v2435 = vshrl.u32 %v2434, 7
  %v2436 = vsub.s32 4, %v2435
  %v2437 = vrot.slane %v1622, %v2436
  %v2439 = vsel %vm301, %v2428, 0
  %v2442 = vsel %vm301, %v2429, 0
  %2444 = vmatprep.subr.mxu0 %v1572
  %2445 = vmatpush1.msra.mxu0 %v1571
  %2446 = vmatprep.subr.mxu0 %v1574
  %2447 = vmatpush1.msra.mxu0 %v1573
  %2448 = vmatprep.subr.mxu0 %v1576
  %2449 = vmatpush1.msra.mxu0 %v1575
  %2450 = vmatprep.subr.mxu0 %v1578
  %2451 = vmatpush1.msra.mxu0 %v1577
  %2452 = vmatprep.subr.mxu0 %v1580
  %2453 = vmatpush1.msra.mxu0 %v1579
  %2454 = vmatprep.subr.mxu0 %v1582
  %2455 = vmatpush1.msra.mxu0 %v1581
  %2456 = vmatprep.subr.mxu0 %v1584
  %2457 = vmatpush1.msra.mxu0 %v1583
  %2458 = vmatprep.subr.mxu0 %v1586
  %2459 = vmatpush1.msra.mxu0 %v1585
  %2460 = vmatprep.subr.mxu0 0.0
  %2461 = vmatpush1.msra.mxu0 0.0
  %2462 = vmatprep.subr.mxu0 0.0
  %2463 = vmatpush1.msra.mxu0 0.0
  %2464 = vmatprep.subr.mxu0 0.0
  %2465 = vmatpush1.msra.mxu0 0.0
  %2466 = vmatprep.subr.mxu0 0.0
  %2467 = vmatpush1.msra.mxu0 0.0
  %2468 = vmatprep.subr.mxu0 0.0
  %2469 = vmatpush1.msra.mxu0 0.0
  %2470 = vmatprep.subr.mxu0 0.0
  %2471 = vmatpush1.msra.mxu0 0.0
  %2472 = vmatprep.subr.mxu0 0.0
  %2473 = vmatpush1.msra.mxu0 0.0
  %2474 = vmatprep.subr.mxu0 0.0
  %2475 = vmatpush1.msra.mxu0 0.0
  %2476 = vmatprep.subr.mxu0 0.0
  %2477 = vmatpush1.msra.mxu0 0.0
  %2478 = vmatprep.subr.mxu0 0.0
  %2479 = vmatpush1.msra.mxu0 0.0
  %2480 = vmatprep.subr.mxu0 0.0
  %2481 = vmatpush1.msra.mxu0 0.0
  %2482 = vmatprep.subr.mxu0 0.0
  %2483 = vmatpush1.msra.mxu0 0.0
  %2484 = vmatprep.subr.mxu0 0.0
  %2485 = vmatpush1.msra.mxu0 0.0
  %2486 = vmatprep.subr.mxu0 0.0
  %2487 = vmatpush1.msra.mxu0 0.0
  %2488 = vmatprep.subr.mxu0 0.0
  %2489 = vmatpush1.msra.mxu0 0.0
  %2490 = vmatprep.subr.mxu0 0.0
  %2491 = vmatpush1.msra.mxu0 0.0
  %2492 = vmatprep.subr.mxu0 0.0
  %2493 = vmatpush1.msra.mxu0 0.0
  %2494 = vmatprep.subr.mxu0 0.0
  %2495 = vmatpush1.msra.mxu0 0.0
  %2496 = vmatprep.subr.mxu0 0.0
  %2497 = vmatpush1.msra.mxu0 0.0
  %2498 = vmatprep.subr.mxu0 0.0
  %2499 = vmatpush1.msra.mxu0 0.0
  %2500 = vmatprep.subr.mxu0 0.0
  %2501 = vmatpush1.msra.mxu0 0.0
  %2502 = vmatprep.subr.mxu0 0.0
  %2503 = vmatpush1.msra.mxu0 0.0
  %2504 = vmatprep.subr.mxu0 0.0
  %2505 = vmatpush1.msra.mxu0 0.0
  %2506 = vmatprep.subr.mxu0 0.0
  %2507 = vmatpush1.msra.mxu0 0.0
  %2508 = vmatprep.mubr.f32.mxu0 0.0
  %2509 = vmatmul.mubr.f32.gmra.mrb[0].mxu0 %v2439
  %v2510 = vpop.f32.mrb[0].mxu0
  %v2511 = vadd.f32 %v2433, %v2510
  %v2512 = vpop.f32.mrb[0].mxu0
  %v2513 = vadd.f32 %v2437, %v2512
  %2514 = vmatprep.mubr.f32.mxu0 0.0
  %2515 = vmatmul.mubr.f32.gmra.mrb[0].mxu0 %v2442
  %v2516 = vpop.f32.mrb[0].mxu0
  %v2517 = vadd.f32 %v2433, %v2516
  %v2518 = vpop.f32.mrb[0].mxu0
  %v2519 = vadd.f32 %v2437, %v2518
  %2520 = vdwg.mxu0
  %v2521 = vmul.f32 %v2511, 0.5
  %v2522 = vmul.f32 %v2513, 0.5
  %v2523 = vmul.f32 %v2517, 0.5
  %v2524 = vmul.f32 %v2519, 0.5
  %v2525 = vmul.f32 %v2511, 0.70710677
  %v2526 = vmul.f32 %v2513, 0.70710677
  %v2527 = vmul.f32 %v2517, 0.70710677
  %v2528 = vmul.f32 %v2519, 0.70710677
  %v2529 = verf.f32.pop %v2525
  %v2530 = verf.f32.pop %v2526
  %v2531 = verf.f32.pop %v2527
  %v2532 = verf.f32.pop %v2528
  %v2533 = vadd.f32 %v2529, 1.0
  %v2534 = vadd.f32 %v2530, 1.0
  %v2535 = vadd.f32 %v2531, 1.0
  %v2536 = vadd.f32 %v2532, 1.0
  %v2537 = vmul.f32 %v2521, %v2533
  %v2538 = vmul.f32 %v2522, %v2534
  %v2539 = vmul.f32 %v2523, %v2535
  %v2540 = vmul.f32 %v2524, %v2536
  %v2541 = vlaneseq
  %v2542 = vshrl.u32 %v2541, 7
  %v2543 = vsub.s32 5, %v2542
  %v2544 = vrot.slane %v1621, %v2543
  %2545 = vmatprep.subr.mxu0 0.0
  %2546 = vmatpush1.msra.mxu0 %v1588
  %2547 = vmatprep.subr.mxu0 0.0
  %2548 = vmatpush1.msra.mxu0 %v1589
  %2549 = vmatprep.subr.mxu0 0.0
  %2550 = vmatpush1.msra.mxu0 %v1590
  %2551 = vmatprep.subr.mxu0 0.0
  %2552 = vmatpush1.msra.mxu0 %v1591
  %2553 = vmatprep.subr.mxu0 0.0
  %2554 = vmatpush1.msra.mxu0 %v1592
  %2555 = vmatprep.subr.mxu0 0.0
  %2556 = vmatpush1.msra.mxu0 %v1593
  %2557 = vmatprep.subr.mxu0 0.0
  %2558 = vmatpush1.msra.mxu0 %v1594
  %2559 = vmatprep.subr.mxu0 0.0
  %2560 = vmatpush1.msra.mxu0 %v1595
  %2561 = vmatprep.subr.mxu0 0.0
  %2562 = vmatpush1.msra.mxu0 %v1596
  %2563 = vmatprep.subr.mxu0 0.0
  %2564 = vmatpush1.msra.mxu0 %v1597
  %2565 = vmatprep.subr.mxu0 0.0
  %2566 = vmatpush1.msra.mxu0 %v1598
  %2567 = vmatprep.subr.mxu0 0.0
  %2568 = vmatpush1.msra.mxu0 %v1599
  %2569 = vmatprep.subr.mxu0 0.0
  %2570 = vmatpush1.msra.mxu0 %v1600
  %2571 = vmatprep.subr.mxu0 0.0
  %2572 = vmatpush1.msra.mxu0 %v1601
  %2573 = vmatprep.subr.mxu0 0.0
  %2574 = vmatpush1.msra.mxu0 %v1602
  %2575 = vmatprep.subr.mxu0 0.0
  %2576 = vmatpush1.msra.mxu0 %v1603
  %2577 = vmatprep.subr.mxu0 0.0
  %2578 = vmatpush1.msra.mxu0 %v1604
  %2579 = vmatprep.subr.mxu0 0.0
  %2580 = vmatpush1.msra.mxu0 %v1605
  %2581 = vmatprep.subr.mxu0 0.0
  %2582 = vmatpush1.msra.mxu0 %v1606
  %2583 = vmatprep.subr.mxu0 0.0
  %2584 = vmatpush1.msra.mxu0 %v1607
  %2585 = vmatprep.subr.mxu0 0.0
  %2586 = vmatpush1.msra.mxu0 %v1608
  %2587 = vmatprep.subr.mxu0 0.0
  %2588 = vmatpush1.msra.mxu0 %v1609
  %2589 = vmatprep.subr.mxu0 0.0
  %2590 = vmatpush1.msra.mxu0 %v1610
  %2591 = vmatprep.subr.mxu0 0.0
  %2592 = vmatpush1.msra.mxu0 %v1611
  %2593 = vmatprep.subr.mxu0 0.0
  %2594 = vmatpush1.msra.mxu0 %v1612
  %2595 = vmatprep.subr.mxu0 0.0
  %2596 = vmatpush1.msra.mxu0 %v1613
  %2597 = vmatprep.subr.mxu0 0.0
  %2598 = vmatpush1.msra.mxu0 %v1614
  %2599 = vmatprep.subr.mxu0 0.0
  %2600 = vmatpush1.msra.mxu0 %v1615
  %2601 = vmatprep.subr.mxu0 0.0
  %2602 = vmatpush1.msra.mxu0 %v1616
  %2603 = vmatprep.subr.mxu0 0.0
  %2604 = vmatpush1.msra.mxu0 %v1617
  %2605 = vmatprep.subr.mxu0 0.0
  %2606 = vmatpush1.msra.mxu0 %v1618
  %2607 = vmatprep.subr.mxu0 0.0
  %2608 = vmatpush1.msra.mxu0 %v1619
  %2609 = vmatprep.mubr.f32.mxu0 %v2538
  %2610 = vmatmul.mubr.f32.gmra.mrb[0].mxu0 %v2537
  %v2611 = vpop.f32.mrb[0].mxu0
  %v2612 = vadd.f32 %v2544, %v2611
  %v2613 = vpop.f32.mrb[0].mxu0
  %2614 = vmatprep.mubr.f32.mxu0 %v2540
  %2615 = vmatmul.mubr.f32.gmra.mrb[0].mxu0 %v2539
  %v2616 = vpop.f32.mrb[0].mxu0
  %v2617 = vadd.f32 %v2544, %v2616
  %v2618 = vpop.f32.mrb[0].mxu0
  %2619 = vdwg.mxu0
  %v2620 = vsel %vm301, %v2612, 0.0
  %2621 = vadd.xlane.f32.xlu0 %v2620
  %v2622 = vpop.xlane.xlu0 %2621
  %v2623 = vsel %vm301, %v2617, 0.0
  %2624 = vadd.xlane.f32.xlu0 %v2623
  %v2625 = vpop.xlane.xlu0 %2624
  %v2626 = vmul.f32 %v2622, %v1279
  %v2627 = vmul.f32 %v2625, %v1279
  %v2628 = vsub.f32 %v2612, %v2626
  %v2629 = vsub.f32 %v2617, %v2627
  %v2630 = vmul.f32 %v2628, %v2628
  %v2631 = vmul.f32 %v2629, %v2629
  %v2632 = vsel %vm301, %v2630, 0.0
  %2633 = vadd.xlane.f32.xlu0 %v2632
  %v2634 = vpop.xlane.xlu0 %2633
  %v2635 = vsel %vm301, %v2631, 0.0
  %2636 = vadd.xlane.f32.xlu0 %v2635
  %v2637 = vpop.xlane.xlu0 %2636
  %v2638 = vmul.f32 %v2634, %v1279
  %v2639 = vmul.f32 %v2637, %v1279
  %v2640 = vadd.f32 %v2638, 1e-05
  %v2641 = vadd.f32 %v2639, 1e-05
  %v2642 = vrsqrt.pop %v2640
  %v2643 = vrsqrt.pop %v2641
  %v2644 = vmul.f32 %v2628, %v2642
  %v2645 = vmul.f32 %v2629, %v2643
  %v2646 = vlaneseq
  %v2647 = vshrl.u32 %v2646, 7
  %v2648 = vsub.s32 6, %v2647
  %v2649 = vrot.slane %v1621, %v2648
  %v2650 = vmul.f32 %v2644, %v2649
  %v2651 = vmul.f32 %v2645, %v2649
  %v2652 = vlaneseq
  %v2653 = vshrl.u32 %v2652, 7
  %v2654 = vsub.s32 7, %v2653
  %v2655 = vrot.slane %v1621, %v2654
  %v2656 = vadd.f32 %v2650, %v2655
  %v2657 = vadd.f32 %v2651, %v2655
  %v2658 = vadd.f32 %v2656, %v2428
  %v2659 = vadd.f32 %v2657, %v2429
  %2660 = vst.msk [vmem:[%s8] sm:$0xff] %vm301, %v2658
  %2661 = vst.msk [vmem:[%s8 + $0x8] sm:$0xff] %vm301, %v2659
  // Predicated region
  $region34: #{vit_forward.1} parent=0 // pred_check
    _
  $region35: #{vit_forward.1} parent=0 // pred_check_branch
    %2663 = sbr.rel (0) target = $region37
  $region36: #{vit_forward.1} parent=0 // pred_region
    _
  $region37: #{vit_forward.1} parent=0 // pred_fallthru
    _
  // Predicated region
  $region38: #{vit_forward.1} parent=0 // pred_check
    _
  $region39: #{vit_forward.1} parent=0 // pred_check_branch
    %2665 = sbr.rel (0) target = $region41
  $region40: #{vit_forward.1} parent=0 // pred_region
    _
  $region41: #{vit_forward.1} parent=0 // pred_fallthru
    _

</llo_original>
